<compile_context>
chip_gen: v6e
topology: v6e:2x2x1
jax: 0.10.0
libtpu: 0.0.40
codegen_flags: <defaults>
</compile_context>

<pallas_src>
import functools
import numpy as np

import jax
import jax.numpy as jnp
from jax.experimental import pallas as pl
from jax.experimental.pallas import tpu as pltpu

# ----------------------------- synthetic configuration -----------------------------
IMG = 16          # img_size
PATCH = 8         # patch_size
T_FRAMES = 8      # number of input frames
TUBELET = 2       # tubelet_size
IN_CHANS = 3      # encoder_in_chans

ENC_DIM = 64      # encoder_embed_dim
ENC_DEPTH = 3     # encoder_depth
ENC_HEADS = 4     # encoder_num_heads

DEC_DIM = 32      # decoder_embed_dim
DEC_DEPTH = 2     # decoder_depth
DEC_HEADS = 4     # decoder_num_heads

MLP_RATIO = 4.0
ENC_HID = int(ENC_DIM * MLP_RATIO)                          # 256
DEC_HID = int(DEC_DIM * MLP_RATIO)                          # 128
KDIM = IN_CHANS * TUBELET * PATCH * PATCH                   # 384
DEC_NUM_CLASSES = IN_CHANS * TUBELET * PATCH * PATCH        # 384
NUM_PATCHES = (IMG // PATCH) ** 2 * (T_FRAMES // TUBELET)   # 4 * 4 = 16 tokens

B = 2
N_MASK = 8                      # masked tokens per sample (same count per sample)
N_VIS = NUM_PATCHES - N_MASK    # visible tokens per sample (8)
LN_EPS = 1e-5

VMEM_LIMIT = 32 * 1024 * 1024   # explicit budget; safe on v5e/v6e/v7x


# ----------------------------- sinusoid position table -----------------------------
def get_sinusoid_encoding_table(n_position, d_hid):
    pos = np.arange(n_position, dtype=np.float64)[:, None]
    hid = np.arange(d_hid, dtype=np.float64)[None, :]
    angle = pos / np.power(10000.0, 2.0 * (np.floor(hid / 2.0)) / d_hid)
    table = np.zeros((n_position, d_hid), dtype=np.float32)
    table[:, 0::2] = np.sin(angle[:, 0::2])
    table[:, 1::2] = np.cos(angle[:, 1::2])
    return table                                    # np.ndarray (N, D)


# ----------------------------- in-kernel helpers -----------------------------
def _layernorm(x, g, b):
    # f32 statistics (v5e has no bf16 VALU/EUP).
    mu = jnp.mean(x, axis=-1, keepdims=True)
    var = jnp.mean(jnp.square(x - mu), axis=-1, keepdims=True)
    return (x - mu) * jax.lax.rsqrt(var + LN_EPS) * g + b


def _block_step(x, ln1g, ln1b, wqkv, wproj, bproj, ln2g, ln2b,
                wfc1, bfc1, wfc2, bfc2, *, num_heads):
    """One pre-norm ViT block on a single sample's (N, D) f32 slab."""
    D = x.shape[-1]
    dh = D // num_heads
    cdt = wqkv.dtype                                   # bf16 compute dtype for the MXU

    # ---- attention ----
    h = _layernorm(x, ln1g, ln1b).astype(cdt)
    qkv = jnp.dot(h, wqkv, preferred_element_type=jnp.float32)   # (N, 3D), Q pre-scaled
    qkv_c = qkv.astype(cdt)
    heads = []
    for i in range(num_heads):                         # static, small head count
        q_h = qkv_c[:, i * dh:(i + 1) * dh]
        k_h = qkv_c[:, D + i * dh:D + (i + 1) * dh]
        v_h = qkv_c[:, 2 * D + i * dh:2 * D + (i + 1) * dh]
        s = jax.lax.dot_general(q_h, k_h, (((1,), (1,)), ((), ())),
                                preferred_element_type=jnp.float32)   # (N, N) f32
        s = s - jnp.max(s, axis=-1, keepdims=True)
        p = jnp.exp(s)
        p = p * pl.reciprocal(jnp.sum(p, axis=-1, keepdims=True), approx=True)
        heads.append(jnp.dot(p.astype(cdt), v_h, preferred_element_type=jnp.float32))
    attn = jnp.concatenate(heads, axis=-1).astype(cdt)              # lane-concat (N, D)
    x = x + jnp.dot(attn, wproj, preferred_element_type=jnp.float32) + bproj

    # ---- MLP ----
    h2 = _layernorm(x, ln2g, ln2b).astype(cdt)
    h2 = jnp.dot(h2, wfc1, preferred_element_type=jnp.float32) + bfc1
    # TODO(synk): PyTorch nn.GELU default is exact erf-GELU; tanh approximation is used
    # for Mosaic lowering compatibility (small systematic numeric drift).
    h2 = jax.nn.gelu(h2, approximate=True).astype(cdt)
    h2 = jnp.dot(h2, wfc2, preferred_element_type=jnp.float32) + bfc2
    return x + h2


# ----------------------------- Pallas kernels -----------------------------
def _encoder_kernel(xt_ref, pw_ref, pb_ref, pose_ref,
                    ln1g, ln1b, wqkv, wproj, bproj, ln2g, ln2b,
                    wfc1, bfc1, wfc2, bfc2,
                    fng, fnb, e2dw, posd_ref,
                    o_ref, x_sc, *, num_heads):
    """grid = (B, ENC_DEPTH).  Fuses patch embed + pos + all encoder blocks +
    final norm + encoder_to_decoder + visible decoder-pos add for one sample."""
    d = pl.program_id(1)

    @pl.when(d == 0)
    def _():
        # patch embed (bf16 MXU, f32 accumulate) + bias + encoder sinusoid pos
        x_sc[...] = (jnp.dot(xt_ref[...], pw_ref[...],
                             preferred_element_type=jnp.float32)
                     + pb_ref[...] + pose_ref[...])

    x_sc[...] = _block_step(
        x_sc[...],
        ln1g[...], ln1b[...], wqkv[...], wproj[...], bproj[...],
        ln2g[...], ln2b[...], wfc1[...], bfc1[...], wfc2[...], bfc2[...],
        num_heads=num_heads)

    @pl.when(d == pl.num_programs(1) - 1)
    def _():
        h = _layernorm(x_sc[...], fng[...], fnb[...])
        o_ref[...] = (jnp.dot(h.astype(jnp.bfloat16), e2dw[...],
                              preferred_element_type=jnp.float32)
                      + posd_ref[...])


def _decoder_kernel(xv_ref, mtok_ref, posm_ref,
                    ln1g, ln1b, wqkv, wproj, bproj, ln2g, ln2b,
                    wfc1, bfc1, wfc2, bfc2,
                    fng, fnb, hw_ref, hb_ref,
                    o_ref, x_sc, *, num_heads, n_vis):
    """grid = (B, DEC_DEPTH).  Fuses mask-token assembly + all decoder blocks +
    final norm + prediction head (lane-dense 384-wide output) for one sample."""
    d = pl.program_id(1)

    @pl.when(d == 0)
    def _():
        x_sc[:n_vis, :] = xv_ref[...]                     # visible tokens (pos already added)
        x_sc[n_vis:, :] = mtok_ref[...] + posm_ref[...]   # mask token + masked pos

    x_sc[...] = _block_step(
        x_sc[...],
        ln1g[...], ln1b[...], wqkv[...], wproj[...], bproj[...],
        ln2g[...], ln2b[...], wfc1[...], bfc1[...], wfc2[...], bfc2[...],
        num_heads=num_heads)

    @pl.when(d == pl.num_programs(1) - 1)
    def _():
        xm = x_sc[n_vis:, :]                              # last N_MASK tokens
        h = _layernorm(xm, fng[...], fnb[...])
        o_ref[...] = (jnp.dot(h.astype(jnp.bfloat16), hw_ref[...],
                              preferred_element_type=jnp.float32)
                      + hb_ref[...])


# ----------------------------- spec / arg helpers -----------------------------
_BLOCK_KEYS = ("ln1_g", "ln1_b", "w_qkv", "w_proj", "b_proj",
               "ln2_g", "ln2_b", "w_fc1", "b_fc1", "w_fc2", "b_fc2")


def _block_specs(dim, hidden, dmap):
    shapes = {
        "ln1_g": (None, 1, dim), "ln1_b": (None, 1, dim),
        "w_qkv": (None, dim, 3 * dim),
        "w_proj": (None, dim, dim), "b_proj": (None, 1, dim),
        "ln2_g": (None, 1, dim), "ln2_b": (None, 1, dim),
        "w_fc1": (None, dim, hidden), "b_fc1": (None, 1, hidden),
        "w_fc2": (None, hidden, dim), "b_fc2": (None, 1, dim),
    }
    return [pl.BlockSpec(shapes[k], dmap) for k in _BLOCK_KEYS]


def _block_args(stacked):
    return [stacked[k] for k in _BLOCK_KEYS]


# ----------------------------- pallas_call wrappers -----------------------------
def encoder_forward(pp, xt_vis, pos_enc_vis, pos_dec_vis):
    bsz = xt_vis.shape[0]
    bmap = lambda b, d: (b, 0, 0)
    wmap = lambda b, d: (0, 0)
    dmap = lambda b, d: (d, 0, 0)
    kern = functools.partial(_encoder_kernel, num_heads=ENC_HEADS)
    return pl.pallas_call(
        kern,
        grid=(bsz, ENC_DEPTH),
        out_shape=jax.ShapeDtypeStruct((bsz, N_VIS, DEC_DIM), jnp.float32),
        in_specs=[
            pl.BlockSpec((None, N_VIS, KDIM), bmap),        # visible tubelet pixels
            pl.BlockSpec((KDIM, ENC_DIM), wmap),            # patch_w
            pl.BlockSpec((1, ENC_DIM), wmap),               # patch_b
            pl.BlockSpec((None, N_VIS, ENC_DIM), bmap),     # encoder pos (visible)
            *_block_specs(ENC_DIM, ENC_HID, dmap),          # per-depth block weights
            pl.BlockSpec((1, ENC_DIM), wmap),               # enc_norm_g
            pl.BlockSpec((1, ENC_DIM), wmap),               # enc_norm_b
            pl.BlockSpec((ENC_DIM, DEC_DIM), wmap),         # encoder_to_decoder (no bias)
            pl.BlockSpec((None, N_VIS, DEC_DIM), bmap),     # decoder pos (visible)
        ],
        out_specs=pl.BlockSpec((None, N_VIS, DEC_DIM), bmap),
        scratch_shapes=[pltpu.VMEM((N_VIS, ENC_DIM), jnp.float32)],
        compiler_params=pltpu.CompilerParams(
            dimension_semantics=("parallel", "arbitrary"),
            vmem_limit_bytes=VMEM_LIMIT),
    )(xt_vis, pp["patch_w"], pp["patch_b"], pos_enc_vis,
      *_block_args(pp["enc_blocks"]),
      pp["enc_norm_g"], pp["enc_norm_b"], pp["enc2dec_w"], pos_dec_vis)


def decoder_forward(pp, x_vis_dec, pos_dec_msk):
    bsz = x_vis_dec.shape[0]
    bmap = lambda b, d: (b, 0, 0)
    wmap = lambda b, d: (0, 0)
    dmap = lambda b, d: (d, 0, 0)
    kern = functools.partial(_decoder_kernel, num_heads=DEC_HEADS, n_vis=N_VIS)
    return pl.pallas_call(
        kern,
        grid=(bsz, DEC_DEPTH),
        out_shape=jax.ShapeDtypeStruct((bsz, N_MASK, DEC_NUM_CLASSES), jnp.float32),
        in_specs=[
            pl.BlockSpec((None, N_VIS, DEC_DIM), bmap),     # visible tokens (pos added)
            pl.BlockSpec((1, DEC_DIM), wmap),               # mask token
            pl.BlockSpec((None, N_MASK, DEC_DIM), bmap),    # decoder pos (masked)
            *_block_specs(DEC_DIM, DEC_HID, dmap),          # per-depth block weights
            pl.BlockSpec((1, DEC_DIM), wmap),               # dec_norm_g
            pl.BlockSpec((1, DEC_DIM), wmap),               # dec_norm_b
            pl.BlockSpec((DEC_DIM, DEC_NUM_CLASSES), wmap), # head_w
            pl.BlockSpec((1, DEC_NUM_CLASSES), wmap),       # head_b
        ],
        out_specs=pl.BlockSpec((None, N_MASK, DEC_NUM_CLASSES), bmap),
        scratch_shapes=[pltpu.VMEM((NUM_PATCHES, DEC_DIM), jnp.float32)],
        compiler_params=pltpu.CompilerParams(
            dimension_semantics=("parallel", "arbitrary"),
            vmem_limit_bytes=VMEM_LIMIT),
    )(x_vis_dec, pp["mask_token"], pos_dec_msk,
      *_block_args(pp["dec_blocks"]),
      pp["dec_norm_g"], pp["dec_norm_b"], pp["head_w"], pp["head_b"])


# ----------------------------- parameters -----------------------------
def init_params(key):
    keys = iter(jax.random.split(key, 64))

    def nrm(shape, std=0.02):
        return std * jax.random.normal(next(keys), shape, jnp.float32)

    def make_block(dim):
        hid = int(dim * MLP_RATIO)
        return dict(
            ln1_g=jnp.ones((1, dim), jnp.float32), ln1_b=jnp.zeros((1, dim), jnp.float32),
            w_qkv=nrm((dim, 3 * dim)),                      # qkv_bias=False
            w_proj=nrm((dim, dim)), b_proj=jnp.zeros((1, dim), jnp.float32),
            ln2_g=jnp.ones((1, dim), jnp.float32), ln2_b=jnp.zeros((1, dim), jnp.float32),
            w_fc1=nrm((dim, hid)), b_fc1=jnp.zeros((1, hid), jnp.float32),
            w_fc2=nrm((hid, dim)), b_fc2=jnp.zeros((1, dim), jnp.float32),
        )

    return dict(
        patch_w=nrm((KDIM, ENC_DIM)),
        patch_b=jnp.zeros((1, ENC_DIM), jnp.float32),
        enc_blocks=[make_block(ENC_DIM) for _ in range(ENC_DEPTH)],
        enc_norm_g=jnp.ones((1, ENC_DIM), jnp.float32),
        enc_norm_b=jnp.zeros((1, ENC_DIM), jnp.float32),
        enc2dec_w=nrm((ENC_DIM, DEC_DIM)),                  # nn.Linear(..., bias=False)
        mask_token=nrm((1, 1, DEC_DIM)),
        dec_blocks=[make_block(DEC_DIM) for _ in range(DEC_DEPTH)],
        dec_norm_g=jnp.ones((1, DEC_DIM), jnp.float32),
        dec_norm_b=jnp.zeros((1, DEC_DIM), jnp.float32),
        head_w=nrm((DEC_DIM, DEC_NUM_CLASSES)),
        head_b=jnp.zeros((1, DEC_NUM_CLASSES), jnp.float32),
    )


def _stack_blocks(blocks, dim, heads):
    """Stack per-block params along a leading depth axis; fold softmax scale into the
    Q columns of the fused QKV weight; store matmul weights in bf16."""
    scale = jnp.float32((dim // heads) ** -0.5)

    def fold_scale(wqkv):
        return jnp.concatenate([wqkv[:, :dim] * scale, wqkv[:, dim:]], axis=1)

    def stack(name, bf16=False, fn=None):
        arrs = [(b[name] if fn is None else fn(b[name])) for b in blocks]
        out = jnp.stack(arrs, axis=0)
        return out.astype(jnp.bfloat16) if bf16 else out

    return dict(
        ln1_g=stack("ln1_g"), ln1_b=stack("ln1_b"),
        w_qkv=stack("w_qkv", bf16=True, fn=fold_scale),
        w_proj=stack("w_proj", bf16=True), b_proj=stack("b_proj"),
        ln2_g=stack("ln2_g"), ln2_b=stack("ln2_b"),
        w_fc1=stack("w_fc1", bf16=True), b_fc1=stack("b_fc1"),
        w_fc2=stack("w_fc2", bf16=True), b_fc2=stack("b_fc2"),
    )


def pack_params(p):
    """One-time repacking into kernel-ready form."""
    return dict(
        patch_w=p["patch_w"].astype(jnp.bfloat16),
        patch_b=p["patch_b"],
        enc_pos=jnp.asarray(get_sinusoid_encoding_table(NUM_PATCHES, ENC_DIM)),
        enc_blocks=_stack_blocks(p["enc_blocks"], ENC_DIM, ENC_HEADS),
        enc_norm_g=p["enc_norm_g"], enc_norm_b=p["enc_norm_b"],
        enc2dec_w=p["enc2dec_w"].astype(jnp.bfloat16),
        mask_token=p["mask_token"].reshape(1, DEC_DIM),
        dec_pos=jnp.asarray(get_sinusoid_encoding_table(NUM_PATCHES, DEC_DIM)),
        dec_blocks=_stack_blocks(p["dec_blocks"], DEC_DIM, DEC_HEADS),
        dec_norm_g=p["dec_norm_g"], dec_norm_b=p["dec_norm_b"],
        head_w=p["head_w"].astype(jnp.bfloat16),
        head_b=p["head_b"],
    )


# ----------------------------- forward -----------------------------
def forward(pp, clip, mask):
    """clip: (B, T, C, H, W) float32;  mask: (B, NUM_PATCHES) bool (True = masked)."""
    clip_p = jnp.transpose(clip, (0, 2, 1, 3, 4))          # (B, C, T, H, W)
    mask_b = mask.astype(bool)

    # ----- tubelet unfold (JAX plumbing) -----
    bsz, C, T, H, W = clip_p.shape
    t, h, w = T // TUBELET, H // PATCH, W // PATCH
    xt = clip_p.reshape(bsz, C, t, TUBELET, h, PATCH, w, PATCH)
    xt = xt.transpose(0, 2, 4, 6, 1, 3, 5, 7)              # (B, t, h, w, C, ts, p, p)
    xt = xt.reshape(bsz, NUM_PATCHES, KDIM)
    # TODO(synk): at production video resolution, express this unfold via a BlockSpec
    # index_map on the 5-D clip instead of materializing xt in HBM.

    # ----- visible/masked selection with static counts (original token order kept) -----
    order = jnp.argsort(mask_b.astype(jnp.int32), axis=1, stable=True)
    vis_idx, msk_idx = order[:, :N_VIS], order[:, N_VIS:]

    def gather(tokens, idx):
        idx3 = jnp.broadcast_to(idx[:, :, None], idx.shape + (tokens.shape[-1],))
        return jnp.take_along_axis(tokens, idx3, axis=1)

    xt_vis = gather(xt, vis_idx).astype(jnp.bfloat16)      # only visible tokens are embedded

    enc_pos = jnp.broadcast_to(pp["enc_pos"][None], (bsz, NUM_PATCHES, ENC_DIM))
    dec_pos = jnp.broadcast_to(pp["dec_pos"][None], (bsz, NUM_PATCHES, DEC_DIM))
    pos_enc_vis = gather(enc_pos, vis_idx)                 # (B, N_VIS, ENC_DIM)
    pos_dec_vis = gather(dec_pos, vis_idx)                 # (B, N_VIS, DEC_DIM)
    pos_dec_msk = gather(dec_pos, msk_idx)                 # (B, N_MASK, DEC_DIM)

    # ----- ONE fused kernel: patch embed + encoder + norm + enc2dec + visible pos -----
    x_vis_dec = encoder_forward(pp, xt_vis, pos_enc_vis, pos_dec_vis)

    # ----- ONE fused kernel: mask-token assembly + decoder + norm + head -----
    logits = decoder_forward(pp, x_vis_dec, pos_dec_msk)   # (B, N_MASK, 384)

    return {
        "videomae_logits": logits,
        "videomae": clip_p,
        "bool_masked_pos": mask_b,
        "logits": None,
    }


# ----------------------------- driver -----------------------------
if __name__ == "__main__":
    key = jax.random.PRNGKey(0)
    k_params, k_clip = jax.random.split(key)

    params = init_params(k_params)
    packed = pack_params(params)                 # one-time kernel-ready repacking
    clip = jax.random.normal(k_clip, (B, T_FRAMES, IN_CHANS, IMG, IMG), jnp.float32)

    # deterministic mask with exactly N_MASK masked tokens per sample
    rng = np.random.RandomState(0)
    mask_np = np.zeros((B, NUM_PATCHES), dtype=bool)
    for b in range(B):
        mask_np[b, rng.permutation(NUM_PATCHES)[:N_MASK]] = True
    mask = jnp.asarray(mask_np)

    fwd = jax.jit(forward)
    out = fwd(packed, clip, mask)
    logits = jax.block_until_ready(out["videomae_logits"])

    assert logits.shape == (B, N_MASK, DEC_NUM_CLASSES)
    assert out["videomae"].shape == (B, IN_CHANS, T_FRAMES, IMG, IMG)
    assert out["bool_masked_pos"].shape == (B, NUM_PATCHES)
    assert bool(jnp.all(jnp.isfinite(logits)))
    print("KERNEL_OK")
</pallas_src>

<mosaic_0001>
module attributes {stable_mosaic.version = 11 : i64} {
  func.func @_encoder_kernel(%arg0: i32, %arg1: i32, %arg2: memref<1x8x384xbf16, #tpu.memory_space<vmem>>, %arg3: memref<384x64xbf16, #tpu.memory_space<vmem>>, %arg4: memref<1x64xf32, #tpu.memory_space<vmem>>, %arg5: memref<1x8x64xf32, #tpu.memory_space<vmem>>, %arg6: memref<1x1x64xf32, #tpu.memory_space<vmem>>, %arg7: memref<1x1x64xf32, #tpu.memory_space<vmem>>, %arg8: memref<1x64x192xbf16, #tpu.memory_space<vmem>>, %arg9: memref<1x64x64xbf16, #tpu.memory_space<vmem>>, %arg10: memref<1x1x64xf32, #tpu.memory_space<vmem>>, %arg11: memref<1x1x64xf32, #tpu.memory_space<vmem>>, %arg12: memref<1x1x64xf32, #tpu.memory_space<vmem>>, %arg13: memref<1x64x256xbf16, #tpu.memory_space<vmem>>, %arg14: memref<1x1x256xf32, #tpu.memory_space<vmem>>, %arg15: memref<1x256x64xbf16, #tpu.memory_space<vmem>>, %arg16: memref<1x1x64xf32, #tpu.memory_space<vmem>>, %arg17: memref<1x64xf32, #tpu.memory_space<vmem>>, %arg18: memref<1x64xf32, #tpu.memory_space<vmem>>, %arg19: memref<64x32xbf16, #tpu.memory_space<vmem>>, %arg20: memref<1x8x32xf32, #tpu.memory_space<vmem>>, %arg21: memref<1x8x32xf32, #tpu.memory_space<vmem>>, %arg22: memref<8x64xf32, #tpu.memory_space<vmem>>) attributes {dimension_semantics = [#tpu.dimension_semantics<parallel>, #tpu.dimension_semantics<arbitrary>], iteration_bounds = array<i64: 2, 3>, scalar_prefetch = 0 : i64, scratch_operands = 1 : i64, tpu.core_type = #tpu.core_type<tc>, window_params = [{transform_indices = @transform_0, window_bounds = array<i64: 1, 8, 384>}, {pipeline_mode = #tpu.pipeline_mode<synchronous>, transform_indices = @transform_1, window_bounds = array<i64: 384, 64>}, {pipeline_mode = #tpu.pipeline_mode<synchronous>, transform_indices = @transform_2, window_bounds = array<i64: 1, 64>}, {transform_indices = @transform_3, window_bounds = array<i64: 1, 8, 64>}, {transform_indices = @transform_4, window_bounds = array<i64: 1, 1, 64>}, {transform_indices = @transform_5, window_bounds = array<i64: 1, 1, 64>}, {transform_indices = @transform_6, window_bounds = array<i64: 1, 64, 192>}, {transform_indices = @transform_7, window_bounds = array<i64: 1, 64, 64>}, {transform_indices = @transform_8, window_bounds = array<i64: 1, 1, 64>}, {transform_indices = @transform_9, window_bounds = array<i64: 1, 1, 64>}, {transform_indices = @transform_10, window_bounds = array<i64: 1, 1, 64>}, {transform_indices = @transform_11, window_bounds = array<i64: 1, 64, 256>}, {transform_indices = @transform_12, window_bounds = array<i64: 1, 1, 256>}, {transform_indices = @transform_13, window_bounds = array<i64: 1, 256, 64>}, {transform_indices = @transform_14, window_bounds = array<i64: 1, 1, 64>}, {pipeline_mode = #tpu.pipeline_mode<synchronous>, transform_indices = @transform_15, window_bounds = array<i64: 1, 64>}, {pipeline_mode = #tpu.pipeline_mode<synchronous>, transform_indices = @transform_16, window_bounds = array<i64: 1, 64>}, {pipeline_mode = #tpu.pipeline_mode<synchronous>, transform_indices = @transform_17, window_bounds = array<i64: 64, 32>}, {transform_indices = @transform_18, window_bounds = array<i64: 1, 8, 32>}, {transform_indices = @transform_19, window_bounds = array<i64: 1, 8, 32>}]} {
    %c0_i32 = arith.constant 0 : i32
    %0 = arith.cmpi eq, %arg1, %c0_i32 : i32
    %1 = arith.extui %0 : i1 to i32
    %c0_i32_0 = arith.constant 0 : i32
    %2 = arith.cmpi ne, %1, %c0_i32_0 : i32
    scf.if %2 {
      %c0_71 = arith.constant 0 : index
      %c0_72 = arith.constant 0 : index
      %c0_73 = arith.constant 0 : index
      %169 = vector.load %arg2[%c0_71, %c0_72, %c0_73] : memref<1x8x384xbf16, #tpu.memory_space<vmem>>, vector<1x8x384xbf16>
      %170 = vector.shape_cast %169 : vector<1x8x384xbf16> to vector<8x384xbf16>
      %c0_74 = arith.constant 0 : index
      %c0_75 = arith.constant 0 : index
      %171 = vector.load %arg3[%c0_74, %c0_75] : memref<384x64xbf16, #tpu.memory_space<vmem>>, vector<384x64xbf16>
      %cst_76 = arith.constant dense<0.000000e+00> : vector<8x64xf32>
      %172 = tpu.matmul %170, %171, %cst_76 {dimension_numbers = #tpu.dot_dimension_numbers<[1], [0], [0], [1], [0, 0, 1, 1], [], []>} : vector<8x384xbf16>, vector<384x64xbf16>, vector<8x64xf32> -> vector<8x64xf32>
      %c0_77 = arith.constant 0 : index
      %c0_78 = arith.constant 0 : index
      %173 = vector.load %arg4[%c0_77, %c0_78] : memref<1x64xf32, #tpu.memory_space<vmem>>, vector<1x64xf32>
      %174 = vector.broadcast %173 : vector<1x64xf32> to vector<8x64xf32>
      %175 = arith.addf %172, %174 : vector<8x64xf32>
      %c0_79 = arith.constant 0 : index
      %c0_80 = arith.constant 0 : index
      %c0_81 = arith.constant 0 : index
      %176 = vector.load %arg5[%c0_79, %c0_80, %c0_81] : memref<1x8x64xf32, #tpu.memory_space<vmem>>, vector<1x8x64xf32>
      %177 = vector.shape_cast %176 : vector<1x8x64xf32> to vector<8x64xf32>
      %178 = arith.addf %175, %177 : vector<8x64xf32>
      %c0_82 = arith.constant 0 : index
      %c0_83 = arith.constant 0 : index
      %179 = vector.load %arg22[%c0_82, %c0_83] : memref<8x64xf32, #tpu.memory_space<vmem>>, vector<8x64xf32>
      tpu.vector_store %arg22[%c0_82, %c0_83], %178 {strides = array<i32>} : memref<8x64xf32, #tpu.memory_space<vmem>>, vector<8x64xf32>,
    } else {
    }
    %c0 = arith.constant 0 : index
    %c0_1 = arith.constant 0 : index
    %3 = vector.load %arg22[%c0, %c0_1] : memref<8x64xf32, #tpu.memory_space<vmem>>, vector<8x64xf32>
    %c0_2 = arith.constant 0 : index
    %c0_3 = arith.constant 0 : index
    %c0_4 = arith.constant 0 : index
    %4 = vector.load %arg6[%c0_2, %c0_3, %c0_4] : memref<1x1x64xf32, #tpu.memory_space<vmem>>, vector<1x1x64xf32>
    %5 = vector.shape_cast %4 : vector<1x1x64xf32> to vector<1x64xf32>
    %c0_5 = arith.constant 0 : index
    %c0_6 = arith.constant 0 : index
    %c0_7 = arith.constant 0 : index
    %6 = vector.load %arg7[%c0_5, %c0_6, %c0_7] : memref<1x1x64xf32, #tpu.memory_space<vmem>>, vector<1x1x64xf32>
    %7 = vector.shape_cast %6 : vector<1x1x64xf32> to vector<1x64xf32>
    %c0_8 = arith.constant 0 : index
    %c0_9 = arith.constant 0 : index
    %c0_10 = arith.constant 0 : index
    %8 = vector.load %arg8[%c0_8, %c0_9, %c0_10] : memref<1x64x192xbf16, #tpu.memory_space<vmem>>, vector<1x64x192xbf16>
    %9 = vector.shape_cast %8 : vector<1x64x192xbf16> to vector<64x192xbf16>
    %c0_11 = arith.constant 0 : index
    %c0_12 = arith.constant 0 : index
    %c0_13 = arith.constant 0 : index
    %10 = vector.load %arg9[%c0_11, %c0_12, %c0_13] : memref<1x64x64xbf16, #tpu.memory_space<vmem>>, vector<1x64x64xbf16>
    %11 = vector.shape_cast %10 : vector<1x64x64xbf16> to vector<64x64xbf16>
    %c0_14 = arith.constant 0 : index
    %c0_15 = arith.constant 0 : index
    %c0_16 = arith.constant 0 : index
    %12 = vector.load %arg10[%c0_14, %c0_15, %c0_16] : memref<1x1x64xf32, #tpu.memory_space<vmem>>, vector<1x1x64xf32>
    %13 = vector.shape_cast %12 : vector<1x1x64xf32> to vector<1x64xf32>
    %c0_17 = arith.constant 0 : index
    %c0_18 = arith.constant 0 : index
    %c0_19 = arith.constant 0 : index
    %14 = vector.load %arg11[%c0_17, %c0_18, %c0_19] : memref<1x1x64xf32, #tpu.memory_space<vmem>>, vector<1x1x64xf32>
    %15 = vector.shape_cast %14 : vector<1x1x64xf32> to vector<1x64xf32>
    %c0_20 = arith.constant 0 : index
    %c0_21 = arith.constant 0 : index
    %c0_22 = arith.constant 0 : index
    %16 = vector.load %arg12[%c0_20, %c0_21, %c0_22] : memref<1x1x64xf32, #tpu.memory_space<vmem>>, vector<1x1x64xf32>
    %17 = vector.shape_cast %16 : vector<1x1x64xf32> to vector<1x64xf32>
    %c0_23 = arith.constant 0 : index
    %c0_24 = arith.constant 0 : index
    %c0_25 = arith.constant 0 : index
    %18 = vector.load %arg13[%c0_23, %c0_24, %c0_25] : memref<1x64x256xbf16, #tpu.memory_space<vmem>>, vector<1x64x256xbf16>
    %19 = vector.shape_cast %18 : vector<1x64x256xbf16> to vector<64x256xbf16>
    %c0_26 = arith.constant 0 : index
    %c0_27 = arith.constant 0 : index
    %c0_28 = arith.constant 0 : index
    %20 = vector.load %arg14[%c0_26, %c0_27, %c0_28] : memref<1x1x256xf32, #tpu.memory_space<vmem>>, vector<1x1x256xf32>
    %21 = vector.shape_cast %20 : vector<1x1x256xf32> to vector<1x256xf32>
    %c0_29 = arith.constant 0 : index
    %c0_30 = arith.constant 0 : index
    %c0_31 = arith.constant 0 : index
    %22 = vector.load %arg15[%c0_29, %c0_30, %c0_31] : memref<1x256x64xbf16, #tpu.memory_space<vmem>>, vector<1x256x64xbf16>
    %23 = vector.shape_cast %22 : vector<1x256x64xbf16> to vector<256x64xbf16>
    %c0_32 = arith.constant 0 : index
    %c0_33 = arith.constant 0 : index
    %c0_34 = arith.constant 0 : index
    %24 = vector.load %arg16[%c0_32, %c0_33, %c0_34] : memref<1x1x64xf32, #tpu.memory_space<vmem>>, vector<1x1x64xf32>
    %25 = vector.shape_cast %24 : vector<1x1x64xf32> to vector<1x64xf32>
    %cst = arith.constant dense<0.000000e+00> : vector<8xf32>
    %26 = vector.multi_reduction <add>, %3, %cst [1] : vector<8x64xf32> to vector<8xf32>
    %27 = vector.shape_cast %26 : vector<8xf32> to vector<8x1xf32>
    %cst_35 = arith.constant 6.400000e+01 : f32
    %28 = vector.broadcast %cst_35 : f32 to vector<8x1xf32>
    %29 = arith.divf %27, %28 : vector<8x1xf32>
    %30 = vector.broadcast %29 : vector<8x1xf32> to vector<8x64xf32>
    %31 = arith.subf %3, %30 : vector<8x64xf32>
    %32 = arith.mulf %31, %31 : vector<8x64xf32>
    %cst_36 = arith.constant dense<0.000000e+00> : vector<8xf32>
    %33 = vector.multi_reduction <add>, %32, %cst_36 [1] : vector<8x64xf32> to vector<8xf32>
    %34 = vector.shape_cast %33 : vector<8xf32> to vector<8x1xf32>
    %cst_37 = arith.constant 6.400000e+01 : f32
    %35 = vector.broadcast %cst_37 : f32 to vector<8x1xf32>
    %36 = arith.divf %34, %35 : vector<8x1xf32>
    %37 = vector.broadcast %29 : vector<8x1xf32> to vector<8x64xf32>
    %38 = arith.subf %3, %37 : vector<8x64xf32>
    %cst_38 = arith.constant 9.99999974E-6 : f32
    %39 = vector.broadcast %cst_38 : f32 to vector<8x1xf32>
    %40 = arith.addf %36, %39 : vector<8x1xf32>
    %41 = math.rsqrt %40 : vector<8x1xf32>
    %42 = vector.broadcast %41 : vector<8x1xf32> to vector<8x64xf32>
    %43 = arith.mulf %38, %42 : vector<8x64xf32>
    %44 = vector.broadcast %5 : vector<1x64xf32> to vector<8x64xf32>
    %45 = arith.mulf %43, %44 : vector<8x64xf32>
    %46 = vector.broadcast %7 : vector<1x64xf32> to vector<8x64xf32>
    %47 = arith.addf %45, %46 : vector<8x64xf32>
    %48 = arith.truncf %47 : vector<8x64xf32> to vector<8x64xbf16>
    %cst_39 = arith.constant dense<0.000000e+00> : vector<8x192xf32>
    %49 = tpu.matmul %48, %9, %cst_39 {dimension_numbers = #tpu.dot_dimension_numbers<[1], [0], [0], [1], [0, 0, 1, 1], [], []>} : vector<8x64xbf16>, vector<64x192xbf16>, vector<8x192xf32> -> vector<8x192xf32>
    %50 = arith.truncf %49 : vector<8x192xf32> to vector<8x192xbf16>
    %51 = vector.extract_strided_slice %50 {offsets = [0, 0], sizes = [8, 16], strides = [1, 1]} : vector<8x192xbf16> to vector<8x16xbf16>
    %52 = vector.extract_strided_slice %50 {offsets = [0, 64], sizes = [8, 16], strides = [1, 1]} : vector<8x192xbf16> to vector<8x16xbf16>
    %53 = vector.extract_strided_slice %50 {offsets = [0, 128], sizes = [8, 16], strides = [1, 1]} : vector<8x192xbf16> to vector<8x16xbf16>
    %cst_40 = arith.constant dense<0.000000e+00> : vector<8x8xf32>
    %54 = tpu.matmul %51, %52, %cst_40 {dimension_numbers = #tpu.dot_dimension_numbers<[1], [1], [0], [0], [0, 0, 1, 0], [], []>} : vector<8x16xbf16>, vector<8x16xbf16>, vector<8x8xf32> -> vector<8x8xf32>
    %cst_41 = arith.constant dense<0xFF800000> : vector<8xf32>
    %55 = vector.multi_reduction <maximumf>, %54, %cst_41 [1] : vector<8x8xf32> to vector<8xf32>
    %56 = vector.shape_cast %55 : vector<8xf32> to vector<8x1xf32>
    %57 = vector.broadcast %56 : vector<8x1xf32> to vector<8x8xf32>
    %58 = arith.subf %54, %57 : vector<8x8xf32>
    %59 = math.exp %58 : vector<8x8xf32>
    %cst_42 = arith.constant dense<0.000000e+00> : vector<8xf32>
    %60 = vector.multi_reduction <add>, %59, %cst_42 [1] : vector<8x8xf32> to vector<8xf32>
    %61 = vector.shape_cast %60 : vector<8xf32> to vector<8x1xf32>
    %62 = tpu.reciprocal %61 {approx = true} : vector<8x1xf32> -> vector<8x1xf32>
    %63 = vector.broadcast %62 : vector<8x1xf32> to vector<8x8xf32>
    %64 = arith.mulf %59, %63 : vector<8x8xf32>
    %65 = arith.truncf %64 : vector<8x8xf32> to vector<8x8xbf16>
    %cst_43 = arith.constant dense<0.000000e+00> : vector<8x16xf32>
    %66 = tpu.matmul %65, %53, %cst_43 {dimension_numbers = #tpu.dot_dimension_numbers<[1], [0], [0], [1], [0, 0, 1, 1], [], []>} : vector<8x8xbf16>, vector<8x16xbf16>, vector<8x16xf32> -> vector<8x16xf32>
    %67 = vector.extract_strided_slice %50 {offsets = [0, 16], sizes = [8, 16], strides = [1, 1]} : vector<8x192xbf16> to vector<8x16xbf16>
    %68 = vector.extract_strided_slice %50 {offsets = [0, 80], sizes = [8, 16], strides = [1, 1]} : vector<8x192xbf16> to vector<8x16xbf16>
    %69 = vector.extract_strided_slice %50 {offsets = [0, 144], sizes = [8, 16], strides = [1, 1]} : vector<8x192xbf16> to vector<8x16xbf16>
    %cst_44 = arith.constant dense<0.000000e+00> : vector<8x8xf32>
    %70 = tpu.matmul %67, %68, %cst_44 {dimension_numbers = #tpu.dot_dimension_numbers<[1], [1], [0], [0], [0, 0, 1, 0], [], []>} : vector<8x16xbf16>, vector<8x16xbf16>, vector<8x8xf32> -> vector<8x8xf32>
    %cst_45 = arith.constant dense<0xFF800000> : vector<8xf32>
    %71 = vector.multi_reduction <maximumf>, %70, %cst_45 [1] : vector<8x8xf32> to vector<8xf32>
    %72 = vector.shape_cast %71 : vector<8xf32> to vector<8x1xf32>
    %73 = vector.broadcast %72 : vector<8x1xf32> to vector<8x8xf32>
    %74 = arith.subf %70, %73 : vector<8x8xf32>
    %75 = math.exp %74 : vector<8x8xf32>
    %cst_46 = arith.constant dense<0.000000e+00> : vector<8xf32>
    %76 = vector.multi_reduction <add>, %75, %cst_46 [1] : vector<8x8xf32> to vector<8xf32>
    %77 = vector.shape_cast %76 : vector<8xf32> to vector<8x1xf32>
    %78 = tpu.reciprocal %77 {approx = true} : vector<8x1xf32> -> vector<8x1xf32>
    %79 = vector.broadcast %78 : vector<8x1xf32> to vector<8x8xf32>
    %80 = arith.mulf %75, %79 : vector<8x8xf32>
    %81 = arith.truncf %80 : vector<8x8xf32> to vector<8x8xbf16>
    %cst_47 = arith.constant dense<0.000000e+00> : vector<8x16xf32>
    %82 = tpu.matmul %81, %69, %cst_47 {dimension_numbers = #tpu.dot_dimension_numbers<[1], [0], [0], [1], [0, 0, 1, 1], [], []>} : vector<8x8xbf16>, vector<8x16xbf16>, vector<8x16xf32> -> vector<8x16xf32>
    %83 = vector.extract_strided_slice %50 {offsets = [0, 32], sizes = [8, 16], strides = [1, 1]} : vector<8x192xbf16> to vector<8x16xbf16>
    %84 = vector.extract_strided_slice %50 {offsets = [0, 96], sizes = [8, 16], strides = [1, 1]} : vector<8x192xbf16> to vector<8x16xbf16>
    %85 = vector.extract_strided_slice %50 {offsets = [0, 160], sizes = [8, 16], strides = [1, 1]} : vector<8x192xbf16> to vector<8x16xbf16>
    %cst_48 = arith.constant dense<0.000000e+00> : vector<8x8xf32>
    %86 = tpu.matmul %83, %84, %cst_48 {dimension_numbers = #tpu.dot_dimension_numbers<[1], [1], [0], [0], [0, 0, 1, 0], [], []>} : vector<8x16xbf16>, vector<8x16xbf16>, vector<8x8xf32> -> vector<8x8xf32>
    %cst_49 = arith.constant dense<0xFF800000> : vector<8xf32>
    %87 = vector.multi_reduction <maximumf>, %86, %cst_49 [1] : vector<8x8xf32> to vector<8xf32>
    %88 = vector.shape_cast %87 : vector<8xf32> to vector<8x1xf32>
    %89 = vector.broadcast %88 : vector<8x1xf32> to vector<8x8xf32>
    %90 = arith.subf %86, %89 : vector<8x8xf32>
    %91 = math.exp %90 : vector<8x8xf32>
    %cst_50 = arith.constant dense<0.000000e+00> : vector<8xf32>
    %92 = vector.multi_reduction <add>, %91, %cst_50 [1] : vector<8x8xf32> to vector<8xf32>
    %93 = vector.shape_cast %92 : vector<8xf32> to vector<8x1xf32>
    %94 = tpu.reciprocal %93 {approx = true} : vector<8x1xf32> -> vector<8x1xf32>
    %95 = vector.broadcast %94 : vector<8x1xf32> to vector<8x8xf32>
    %96 = arith.mulf %91, %95 : vector<8x8xf32>
    %97 = arith.truncf %96 : vector<8x8xf32> to vector<8x8xbf16>
    %cst_51 = arith.constant dense<0.000000e+00> : vector<8x16xf32>
    %98 = tpu.matmul %97, %85, %cst_51 {dimension_numbers = #tpu.dot_dimension_numbers<[1], [0], [0], [1], [0, 0, 1, 1], [], []>} : vector<8x8xbf16>, vector<8x16xbf16>, vector<8x16xf32> -> vector<8x16xf32>
    %99 = vector.extract_strided_slice %50 {offsets = [0, 48], sizes = [8, 16], strides = [1, 1]} : vector<8x192xbf16> to vector<8x16xbf16>
    %100 = vector.extract_strided_slice %50 {offsets = [0, 112], sizes = [8, 16], strides = [1, 1]} : vector<8x192xbf16> to vector<8x16xbf16>
    %101 = vector.extract_strided_slice %50 {offsets = [0, 176], sizes = [8, 16], strides = [1, 1]} : vector<8x192xbf16> to vector<8x16xbf16>
    %cst_52 = arith.constant dense<0.000000e+00> : vector<8x8xf32>
    %102 = tpu.matmul %99, %100, %cst_52 {dimension_numbers = #tpu.dot_dimension_numbers<[1], [1], [0], [0], [0, 0, 1, 0], [], []>} : vector<8x16xbf16>, vector<8x16xbf16>, vector<8x8xf32> -> vector<8x8xf32>
    %cst_53 = arith.constant dense<0xFF800000> : vector<8xf32>
    %103 = vector.multi_reduction <maximumf>, %102, %cst_53 [1] : vector<8x8xf32> to vector<8xf32>
    %104 = vector.shape_cast %103 : vector<8xf32> to vector<8x1xf32>
    %105 = vector.broadcast %104 : vector<8x1xf32> to vector<8x8xf32>
    %106 = arith.subf %102, %105 : vector<8x8xf32>
    %107 = math.exp %106 : vector<8x8xf32>
    %cst_54 = arith.constant dense<0.000000e+00> : vector<8xf32>
    %108 = vector.multi_reduction <add>, %107, %cst_54 [1] : vector<8x8xf32> to vector<8xf32>
    %109 = vector.shape_cast %108 : vector<8xf32> to vector<8x1xf32>
    %110 = tpu.reciprocal %109 {approx = true} : vector<8x1xf32> -> vector<8x1xf32>
    %111 = vector.broadcast %110 : vector<8x1xf32> to vector<8x8xf32>
    %112 = arith.mulf %107, %111 : vector<8x8xf32>
    %113 = arith.truncf %112 : vector<8x8xf32> to vector<8x8xbf16>
    %cst_55 = arith.constant dense<0.000000e+00> : vector<8x16xf32>
    %114 = tpu.matmul %113, %101, %cst_55 {dimension_numbers = #tpu.dot_dimension_numbers<[1], [0], [0], [1], [0, 0, 1, 1], [], []>} : vector<8x8xbf16>, vector<8x16xbf16>, vector<8x16xf32> -> vector<8x16xf32>
    %115 = tpu.concatenate %66, %82, %98, %114 in 1 : vector<8x16xf32>, vector<8x16xf32>, vector<8x16xf32>, vector<8x16xf32> -> vector<8x64xf32>
    %116 = arith.truncf %115 : vector<8x64xf32> to vector<8x64xbf16>
    %cst_56 = arith.constant dense<0.000000e+00> : vector<8x64xf32>
    %117 = tpu.matmul %116, %11, %cst_56 {dimension_numbers = #tpu.dot_dimension_numbers<[1], [0], [0], [1], [0, 0, 1, 1], [], []>} : vector<8x64xbf16>, vector<64x64xbf16>, vector<8x64xf32> -> vector<8x64xf32>
    %118 = arith.addf %3, %117 : vector<8x64xf32>
    %119 = vector.broadcast %13 : vector<1x64xf32> to vector<8x64xf32>
    %120 = arith.addf %118, %119 : vector<8x64xf32>
    %cst_57 = arith.constant dense<0.000000e+00> : vector<8xf32>
    %121 = vector.multi_reduction <add>, %120, %cst_57 [1] : vector<8x64xf32> to vector<8xf32>
    %122 = vector.shape_cast %121 : vector<8xf32> to vector<8x1xf32>
    %cst_58 = arith.constant 6.400000e+01 : f32
    %123 = vector.broadcast %cst_58 : f32 to vector<8x1xf32>
    %124 = arith.divf %122, %123 : vector<8x1xf32>
    %125 = vector.broadcast %124 : vector<8x1xf32> to vector<8x64xf32>
    %126 = arith.subf %120, %125 : vector<8x64xf32>
    %127 = arith.mulf %126, %126 : vector<8x64xf32>
    %cst_59 = arith.constant dense<0.000000e+00> : vector<8xf32>
    %128 = vector.multi_reduction <add>, %127, %cst_59 [1] : vector<8x64xf32> to vector<8xf32>
    %129 = vector.shape_cast %128 : vector<8xf32> to vector<8x1xf32>
    %cst_60 = arith.constant 6.400000e+01 : f32
    %130 = vector.broadcast %cst_60 : f32 to vector<8x1xf32>
    %131 = arith.divf %129, %130 : vector<8x1xf32>
    %132 = vector.broadcast %124 : vector<8x1xf32> to vector<8x64xf32>
    %133 = arith.subf %120, %132 : vector<8x64xf32>
    %cst_61 = arith.constant 9.99999974E-6 : f32
    %134 = vector.broadcast %cst_61 : f32 to vector<8x1xf32>
    %135 = arith.addf %131, %134 : vector<8x1xf32>
    %136 = math.rsqrt %135 : vector<8x1xf32>
    %137 = vector.broadcast %136 : vector<8x1xf32> to vector<8x64xf32>
    %138 = arith.mulf %133, %137 : vector<8x64xf32>
    %139 = vector.broadcast %15 : vector<1x64xf32> to vector<8x64xf32>
    %140 = arith.mulf %138, %139 : vector<8x64xf32>
    %141 = vector.broadcast %17 : vector<1x64xf32> to vector<8x64xf32>
    %142 = arith.addf %140, %141 : vector<8x64xf32>
    %143 = arith.truncf %142 : vector<8x64xf32> to vector<8x64xbf16>
    %cst_62 = arith.constant dense<0.000000e+00> : vector<8x256xf32>
    %144 = tpu.matmul %143, %19, %cst_62 {dimension_numbers = #tpu.dot_dimension_numbers<[1], [0], [0], [1], [0, 0, 1, 1], [], []>} : vector<8x64xbf16>, vector<64x256xbf16>, vector<8x256xf32> -> vector<8x256xf32>
    %145 = vector.broadcast %21 : vector<1x256xf32> to vector<8x256xf32>
    %146 = arith.addf %144, %145 : vector<8x256xf32>
    %147 = arith.mulf %146, %146 : vector<8x256xf32>
    %148 = arith.mulf %146, %147 : vector<8x256xf32>
    %cst_63 = arith.constant 4.471500e-02 : f32
    %149 = vector.broadcast %cst_63 : f32 to vector<8x256xf32>
    %150 = arith.mulf %149, %148 : vector<8x256xf32>
    %151 = arith.addf %146, %150 : vector<8x256xf32>
    %cst_64 = arith.constant 0.797884583 : f32
    %152 = vector.broadcast %cst_64 : f32 to vector<8x256xf32>
    %153 = arith.mulf %152, %151 : vector<8x256xf32>
    %154 = math.tanh %153 : vector<8x256xf32>
    %cst_65 = arith.constant 1.000000e+00 : f32
    %155 = vector.broadcast %cst_65 : f32 to vector<8x256xf32>
    %156 = arith.addf %155, %154 : vector<8x256xf32>
    %cst_66 = arith.constant 5.000000e-01 : f32
    %157 = vector.broadcast %cst_66 : f32 to vector<8x256xf32>
    %158 = arith.mulf %157, %156 : vector<8x256xf32>
    %159 = arith.mulf %146, %158 : vector<8x256xf32>
    %160 = arith.truncf %159 : vector<8x256xf32> to vector<8x256xbf16>
    %cst_67 = arith.constant dense<0.000000e+00> : vector<8x64xf32>
    %161 = tpu.matmul %160, %23, %cst_67 {dimension_numbers = #tpu.dot_dimension_numbers<[1], [0], [0], [1], [0, 0, 1, 1], [], []>} : vector<8x256xbf16>, vector<256x64xbf16>, vector<8x64xf32> -> vector<8x64xf32>
    %162 = vector.broadcast %25 : vector<1x64xf32> to vector<8x64xf32>
    %163 = arith.addf %161, %162 : vector<8x64xf32>
    %164 = arith.addf %120, %163 : vector<8x64xf32>
    %c0_68 = arith.constant 0 : index
    %c0_69 = arith.constant 0 : index
    %165 = vector.load %arg22[%c0_68, %c0_69] : memref<8x64xf32, #tpu.memory_space<vmem>>, vector<8x64xf32>
    tpu.vector_store %arg22[%c0_68, %c0_69], %164 {strides = array<i32>} : memref<8x64xf32, #tpu.memory_space<vmem>>, vector<8x64xf32>,
    %c2_i32 = arith.constant 2 : i32
    %166 = arith.cmpi eq, %arg1, %c2_i32 : i32
    %167 = arith.extui %166 : i1 to i32
    %c0_i32_70 = arith.constant 0 : i32
    %168 = arith.cmpi ne, %167, %c0_i32_70 : i32
    scf.if %168 {
      %c0_71 = arith.constant 0 : index
      %c0_72 = arith.constant 0 : index
      %169 = vector.load %arg22[%c0_71, %c0_72] : memref<8x64xf32, #tpu.memory_space<vmem>>, vector<8x64xf32>
      %c0_73 = arith.constant 0 : index
      %c0_74 = arith.constant 0 : index
      %170 = vector.load %arg17[%c0_73, %c0_74] : memref<1x64xf32, #tpu.memory_space<vmem>>, vector<1x64xf32>
      %c0_75 = arith.constant 0 : index
      %c0_76 = arith.constant 0 : index
      %171 = vector.load %arg18[%c0_75, %c0_76] : memref<1x64xf32, #tpu.memory_space<vmem>>, vector<1x64xf32>
      %cst_77 = arith.constant dense<0.000000e+00> : vector<8xf32>
      %172 = vector.multi_reduction <add>, %169, %cst_77 [1] : vector<8x64xf32> to vector<8xf32>
      %173 = vector.shape_cast %172 : vector<8xf32> to vector<8x1xf32>
      %cst_78 = arith.constant 6.400000e+01 : f32
      %174 = vector.broadcast %cst_78 : f32 to vector<8x1xf32>
      %175 = arith.divf %173, %174 : vector<8x1xf32>
      %176 = vector.broadcast %175 : vector<8x1xf32> to vector<8x64xf32>
      %177 = arith.subf %169, %176 : vector<8x64xf32>
      %178 = arith.mulf %177, %177 : vector<8x64xf32>
      %cst_79 = arith.constant dense<0.000000e+00> : vector<8xf32>
      %179 = vector.multi_reduction <add>, %178, %cst_79 [1] : vector<8x64xf32> to vector<8xf32>
      %180 = vector.shape_cast %179 : vector<8xf32> to vector<8x1xf32>
      %cst_80 = arith.constant 6.400000e+01 : f32
      %181 = vector.broadcast %cst_80 : f32 to vector<8x1xf32>
      %182 = arith.divf %180, %181 : vector<8x1xf32>
      %183 = vector.broadcast %175 : vector<8x1xf32> to vector<8x64xf32>
      %184 = arith.subf %169, %183 : vector<8x64xf32>
      %cst_81 = arith.constant 9.99999974E-6 : f32
      %185 = vector.broadcast %cst_81 : f32 to vector<8x1xf32>
      %186 = arith.addf %182, %185 : vector<8x1xf32>
      %187 = math.rsqrt %186 : vector<8x1xf32>
      %188 = vector.broadcast %187 : vector<8x1xf32> to vector<8x64xf32>
      %189 = arith.mulf %184, %188 : vector<8x64xf32>
      %190 = vector.broadcast %170 : vector<1x64xf32> to vector<8x64xf32>
      %191 = arith.mulf %189, %190 : vector<8x64xf32>
      %192 = vector.broadcast %171 : vector<1x64xf32> to vector<8x64xf32>
      %193 = arith.addf %191, %192 : vector<8x64xf32>
      %194 = arith.truncf %193 : vector<8x64xf32> to vector<8x64xbf16>
      %c0_82 = arith.constant 0 : index
      %c0_83 = arith.constant 0 : index
      %195 = vector.load %arg19[%c0_82, %c0_83] : memref<64x32xbf16, #tpu.memory_space<vmem>>, vector<64x32xbf16>
      %cst_84 = arith.constant dense<0.000000e+00> : vector<8x32xf32>
      %196 = tpu.matmul %194, %195, %cst_84 {dimension_numbers = #tpu.dot_dimension_numbers<[1], [0], [0], [1], [0, 0, 1, 1], [], []>} : vector<8x64xbf16>, vector<64x32xbf16>, vector<8x32xf32> -> vector<8x32xf32>
      %c0_85 = arith.constant 0 : index
      %c0_86 = arith.constant 0 : index
      %c0_87 = arith.constant 0 : index
      %197 = vector.load %arg20[%c0_85, %c0_86, %c0_87] : memref<1x8x32xf32, #tpu.memory_space<vmem>>, vector<1x8x32xf32>
      %198 = vector.shape_cast %197 : vector<1x8x32xf32> to vector<8x32xf32>
      %199 = arith.addf %196, %198 : vector<8x32xf32>
      %c0_88 = arith.constant 0 : index
      %c0_89 = arith.constant 0 : index
      %c0_90 = arith.constant 0 : index
      %200 = vector.load %arg21[%c0_88, %c0_89, %c0_90] : memref<1x8x32xf32, #tpu.memory_space<vmem>>, vector<1x8x32xf32>
      %201 = vector.shape_cast %200 : vector<1x8x32xf32> to vector<8x32xf32>
      %202 = vector.shape_cast %199 : vector<8x32xf32> to vector<1x8x32xf32>
      tpu.vector_store %arg21[%c0_88, %c0_89, %c0_90], %202 {strides = array<i32>} : memref<1x8x32xf32, #tpu.memory_space<vmem>>, vector<1x8x32xf32>,
    } else {
    }
    return
  }
  func.func @transform_0(%arg0: i32, %arg1: i32) -> (i32, i32, i32) {
    %c0_i32 = arith.constant 0 : i32
    %c0_i32_0 = arith.constant 0 : i32
    %c0_i32_1 = arith.constant 0 : i32
    return %arg0, %c0_i32, %c0_i32_0 : i32, i32, i32
  }
  func.func @transform_1(%arg0: i32, %arg1: i32) -> (i32, i32) {
    %c0_i32 = arith.constant 0 : i32
    %c0_i32_0 = arith.constant 0 : i32
    %c0_i32_1 = arith.constant 0 : i32
    return %c0_i32, %c0_i32_0 : i32, i32
  }
  func.func @transform_2(%arg0: i32, %arg1: i32) -> (i32, i32) {
    %c0_i32 = arith.constant 0 : i32
    %c0_i32_0 = arith.constant 0 : i32
    %c0_i32_1 = arith.constant 0 : i32
    return %c0_i32, %c0_i32_0 : i32, i32
  }
  func.func @transform_3(%arg0: i32, %arg1: i32) -> (i32, i32, i32) {
    %c0_i32 = arith.constant 0 : i32
    %c0_i32_0 = arith.constant 0 : i32
    %c0_i32_1 = arith.constant 0 : i32
    return %arg0, %c0_i32, %c0_i32_0 : i32, i32, i32
  }
  func.func @transform_4(%arg0: i32, %arg1: i32) -> (i32, i32, i32) {
    %c0_i32 = arith.constant 0 : i32
    %c0_i32_0 = arith.constant 0 : i32
    %c0_i32_1 = arith.constant 0 : i32
    return %arg1, %c0_i32, %c0_i32_0 : i32, i32, i32
  }
  func.func @transform_5(%arg0: i32, %arg1: i32) -> (i32, i32, i32) {
    %c0_i32 = arith.constant 0 : i32
    %c0_i32_0 = arith.constant 0 : i32
    %c0_i32_1 = arith.constant 0 : i32
    return %arg1, %c0_i32, %c0_i32_0 : i32, i32, i32
  }
  func.func @transform_6(%arg0: i32, %arg1: i32) -> (i32, i32, i32) {
    %c0_i32 = arith.constant 0 : i32
    %c0_i32_0 = arith.constant 0 : i32
    %c0_i32_1 = arith.constant 0 : i32
    return %arg1, %c0_i32, %c0_i32_0 : i32, i32, i32
  }
  func.func @transform_7(%arg0: i32, %arg1: i32) -> (i32, i32, i32) {
    %c0_i32 = arith.constant 0 : i32
    %c0_i32_0 = arith.constant 0 : i32
    %c0_i32_1 = arith.constant 0 : i32
    return %arg1, %c0_i32, %c0_i32_0 : i32, i32, i32
  }
  func.func @transform_8(%arg0: i32, %arg1: i32) -> (i32, i32, i32) {
    %c0_i32 = arith.constant 0 : i32
    %c0_i32_0 = arith.constant 0 : i32
    %c0_i32_1 = arith.constant 0 : i32
    return %arg1, %c0_i32, %c0_i32_0 : i32, i32, i32
  }
  func.func @transform_9(%arg0: i32, %arg1: i32) -> (i32, i32, i32) {
    %c0_i32 = arith.constant 0 : i32
    %c0_i32_0 = arith.constant 0 : i32
    %c0_i32_1 = arith.constant 0 : i32
    return %arg1, %c0_i32, %c0_i32_0 : i32, i32, i32
  }
  func.func @transform_10(%arg0: i32, %arg1: i32) -> (i32, i32, i32) {
    %c0_i32 = arith.constant 0 : i32
    %c0_i32_0 = arith.constant 0 : i32
    %c0_i32_1 = arith.constant 0 : i32
    return %arg1, %c0_i32, %c0_i32_0 : i32, i32, i32
  }
  func.func @transform_11(%arg0: i32, %arg1: i32) -> (i32, i32, i32) {
    %c0_i32 = arith.constant 0 : i32
    %c0_i32_0 = arith.constant 0 : i32
    %c0_i32_1 = arith.constant 0 : i32
    return %arg1, %c0_i32, %c0_i32_0 : i32, i32, i32
  }
  func.func @transform_12(%arg0: i32, %arg1: i32) -> (i32, i32, i32) {
    %c0_i32 = arith.constant 0 : i32
    %c0_i32_0 = arith.constant 0 : i32
    %c0_i32_1 = arith.constant 0 : i32
    return %arg1, %c0_i32, %c0_i32_0 : i32, i32, i32
  }
  func.func @transform_13(%arg0: i32, %arg1: i32) -> (i32, i32, i32) {
    %c0_i32 = arith.constant 0 : i32
    %c0_i32_0 = arith.constant 0 : i32
    %c0_i32_1 = arith.constant 0 : i32
    return %arg1, %c0_i32, %c0_i32_0 : i32, i32, i32
  }
  func.func @transform_14(%arg0: i32, %arg1: i32) -> (i32, i32, i32) {
    %c0_i32 = arith.constant 0 : i32
    %c0_i32_0 = arith.constant 0 : i32
    %c0_i32_1 = arith.constant 0 : i32
    return %arg1, %c0_i32, %c0_i32_0 : i32, i32, i32
  }
  func.func @transform_15(%arg0: i32, %arg1: i32) -> (i32, i32) {
    %c0_i32 = arith.constant 0 : i32
    %c0_i32_0 = arith.constant 0 : i32
    %c0_i32_1 = arith.constant 0 : i32
    return %c0_i32, %c0_i32_0 : i32, i32
  }
  func.func @transform_16(%arg0: i32, %arg1: i32) -> (i32, i32) {
    %c0_i32 = arith.constant 0 : i32
    %c0_i32_0 = arith.constant 0 : i32
    %c0_i32_1 = arith.constant 0 : i32
    return %c0_i32, %c0_i32_0 : i32, i32
  }
  func.func @transform_17(%arg0: i32, %arg1: i32) -> (i32, i32) {
    %c0_i32 = arith.constant 0 : i32
    %c0_i32_0 = arith.constant 0 : i32
    %c0_i32_1 = arith.constant 0 : i32
    return %c0_i32, %c0_i32_0 : i32, i32
  }
  func.func @transform_18(%arg0: i32, %arg1: i32) -> (i32, i32, i32) {
    %c0_i32 = arith.constant 0 : i32
    %c0_i32_0 = arith.constant 0 : i32
    %c0_i32_1 = arith.constant 0 : i32
    return %arg0, %c0_i32, %c0_i32_0 : i32, i32, i32
  }
  func.func @transform_19(%arg0: i32, %arg1: i32) -> (i32, i32, i32) {
    %c0_i32 = arith.constant 0 : i32
    %c0_i32_0 = arith.constant 0 : i32
    %c0_i32_1 = arith.constant 0 : i32
    return %arg0, %c0_i32, %c0_i32_0 : i32, i32, i32
  }
}

module attributes {stable_mosaic.version = 11 : i64} {
  func.func @_decoder_kernel(%arg0: i32, %arg1: i32, %arg2: memref<1x8x32xf32, #tpu.memory_space<vmem>>, %arg3: memref<1x32xf32, #tpu.memory_space<vmem>>, %arg4: memref<1x8x32xf32, #tpu.memory_space<vmem>>, %arg5: memref<1x1x32xf32, #tpu.memory_space<vmem>>, %arg6: memref<1x1x32xf32, #tpu.memory_space<vmem>>, %arg7: memref<1x32x96xbf16, #tpu.memory_space<vmem>>, %arg8: memref<1x32x32xbf16, #tpu.memory_space<vmem>>, %arg9: memref<1x1x32xf32, #tpu.memory_space<vmem>>, %arg10: memref<1x1x32xf32, #tpu.memory_space<vmem>>, %arg11: memref<1x1x32xf32, #tpu.memory_space<vmem>>, %arg12: memref<1x32x128xbf16, #tpu.memory_space<vmem>>, %arg13: memref<1x1x128xf32, #tpu.memory_space<vmem>>, %arg14: memref<1x128x32xbf16, #tpu.memory_space<vmem>>, %arg15: memref<1x1x32xf32, #tpu.memory_space<vmem>>, %arg16: memref<1x32xf32, #tpu.memory_space<vmem>>, %arg17: memref<1x32xf32, #tpu.memory_space<vmem>>, %arg18: memref<32x384xbf16, #tpu.memory_space<vmem>>, %arg19: memref<1x384xf32, #tpu.memory_space<vmem>>, %arg20: memref<1x8x384xf32, #tpu.memory_space<vmem>>, %arg21: memref<16x32xf32, #tpu.memory_space<vmem>>) attributes {dimension_semantics = [#tpu.dimension_semantics<parallel>, #tpu.dimension_semantics<arbitrary>], iteration_bounds = array<i64: 2, 2>, scalar_prefetch = 0 : i64, scratch_operands = 1 : i64, tpu.core_type = #tpu.core_type<tc>, window_params = [{transform_indices = @transform_0, window_bounds = array<i64: 1, 8, 32>}, {pipeline_mode = #tpu.pipeline_mode<synchronous>, transform_indices = @transform_1, window_bounds = array<i64: 1, 32>}, {transform_indices = @transform_2, window_bounds = array<i64: 1, 8, 32>}, {transform_indices = @transform_3, window_bounds = array<i64: 1, 1, 32>}, {transform_indices = @transform_4, window_bounds = array<i64: 1, 1, 32>}, {transform_indices = @transform_5, window_bounds = array<i64: 1, 32, 96>}, {transform_indices = @transform_6, window_bounds = array<i64: 1, 32, 32>}, {transform_indices = @transform_7, window_bounds = array<i64: 1, 1, 32>}, {transform_indices = @transform_8, window_bounds = array<i64: 1, 1, 32>}, {transform_indices = @transform_9, window_bounds = array<i64: 1, 1, 32>}, {transform_indices = @transform_10, window_bounds = array<i64: 1, 32, 128>}, {transform_indices = @transform_11, window_bounds = array<i64: 1, 1, 128>}, {transform_indices = @transform_12, window_bounds = array<i64: 1, 128, 32>}, {transform_indices = @transform_13, window_bounds = array<i64: 1, 1, 32>}, {pipeline_mode = #tpu.pipeline_mode<synchronous>, transform_indices = @transform_14, window_bounds = array<i64: 1, 32>}, {pipeline_mode = #tpu.pipeline_mode<synchronous>, transform_indices = @transform_15, window_bounds = array<i64: 1, 32>}, {pipeline_mode = #tpu.pipeline_mode<synchronous>, transform_indices = @transform_16, window_bounds = array<i64: 32, 384>}, {pipeline_mode = #tpu.pipeline_mode<synchronous>, transform_indices = @transform_17, window_bounds = array<i64: 1, 384>}, {transform_indices = @transform_18, window_bounds = array<i64: 1, 8, 384>}]} {
    %c0_i32 = arith.constant 0 : i32
    %0 = arith.cmpi eq, %arg1, %c0_i32 : i32
    %1 = arith.extui %0 : i1 to i32
    %c0_i32_0 = arith.constant 0 : i32
    %2 = arith.cmpi ne, %1, %c0_i32_0 : i32
    scf.if %2 {
      %c0_71 = arith.constant 0 : index
      %c0_72 = arith.constant 0 : index
      %c0_73 = arith.constant 0 : index
      %169 = vector.load %arg2[%c0_71, %c0_72, %c0_73] : memref<1x8x32xf32, #tpu.memory_space<vmem>>, vector<1x8x32xf32>
      %170 = vector.shape_cast %169 : vector<1x8x32xf32> to vector<8x32xf32>
      %c0_74 = arith.constant 0 : index
      %c0_75 = arith.constant 0 : index
      %171 = vector.load %arg21[%c0_74, %c0_75] : memref<16x32xf32, #tpu.memory_space<vmem>>, vector<8x32xf32>
      tpu.vector_store %arg21[%c0_74, %c0_75], %170 {strides = array<i32>} : memref<16x32xf32, #tpu.memory_space<vmem>>, vector<8x32xf32>,
      %c0_76 = arith.constant 0 : index
      %c0_77 = arith.constant 0 : index
      %172 = vector.load %arg3[%c0_76, %c0_77] : memref<1x32xf32, #tpu.memory_space<vmem>>, vector<1x32xf32>
      %c0_78 = arith.constant 0 : index
      %c0_79 = arith.constant 0 : index
      %c0_80 = arith.constant 0 : index
      %173 = vector.load %arg4[%c0_78, %c0_79, %c0_80] : memref<1x8x32xf32, #tpu.memory_space<vmem>>, vector<1x8x32xf32>
      %174 = vector.shape_cast %173 : vector<1x8x32xf32> to vector<8x32xf32>
      %175 = vector.broadcast %172 : vector<1x32xf32> to vector<8x32xf32>
      %176 = arith.addf %175, %174 : vector<8x32xf32>
      %c8 = arith.constant 8 : index
      %c0_81 = arith.constant 0 : index
      %177 = vector.load %arg21[%c8, %c0_81] : memref<16x32xf32, #tpu.memory_space<vmem>>, vector<8x32xf32>
      tpu.vector_store %arg21[%c8, %c0_81], %176 {strides = array<i32>} : memref<16x32xf32, #tpu.memory_space<vmem>>, vector<8x32xf32>,
    } else {
    }
    %c0 = arith.constant 0 : index
    %c0_1 = arith.constant 0 : index
    %3 = vector.load %arg21[%c0, %c0_1] : memref<16x32xf32, #tpu.memory_space<vmem>>, vector<16x32xf32>
    %c0_2 = arith.constant 0 : index
    %c0_3 = arith.constant 0 : index
    %c0_4 = arith.constant 0 : index
    %4 = vector.load %arg5[%c0_2, %c0_3, %c0_4] : memref<1x1x32xf32, #tpu.memory_space<vmem>>, vector<1x1x32xf32>
    %5 = vector.shape_cast %4 : vector<1x1x32xf32> to vector<1x32xf32>
    %c0_5 = arith.constant 0 : index
    %c0_6 = arith.constant 0 : index
    %c0_7 = arith.constant 0 : index
    %6 = vector.load %arg6[%c0_5, %c0_6, %c0_7] : memref<1x1x32xf32, #tpu.memory_space<vmem>>, vector<1x1x32xf32>
    %7 = vector.shape_cast %6 : vector<1x1x32xf32> to vector<1x32xf32>
    %c0_8 = arith.constant 0 : index
    %c0_9 = arith.constant 0 : index
    %c0_10 = arith.constant 0 : index
    %8 = vector.load %arg7[%c0_8, %c0_9, %c0_10] : memref<1x32x96xbf16, #tpu.memory_space<vmem>>, vector<1x32x96xbf16>
    %9 = vector.shape_cast %8 : vector<1x32x96xbf16> to vector<32x96xbf16>
    %c0_11 = arith.constant 0 : index
    %c0_12 = arith.constant 0 : index
    %c0_13 = arith.constant 0 : index
    %10 = vector.load %arg8[%c0_11, %c0_12, %c0_13] : memref<1x32x32xbf16, #tpu.memory_space<vmem>>, vector<1x32x32xbf16>
    %11 = vector.shape_cast %10 : vector<1x32x32xbf16> to vector<32x32xbf16>
    %c0_14 = arith.constant 0 : index
    %c0_15 = arith.constant 0 : index
    %c0_16 = arith.constant 0 : index
    %12 = vector.load %arg9[%c0_14, %c0_15, %c0_16] : memref<1x1x32xf32, #tpu.memory_space<vmem>>, vector<1x1x32xf32>
    %13 = vector.shape_cast %12 : vector<1x1x32xf32> to vector<1x32xf32>
    %c0_17 = arith.constant 0 : index
    %c0_18 = arith.constant 0 : index
    %c0_19 = arith.constant 0 : index
    %14 = vector.load %arg10[%c0_17, %c0_18, %c0_19] : memref<1x1x32xf32, #tpu.memory_space<vmem>>, vector<1x1x32xf32>
    %15 = vector.shape_cast %14 : vector<1x1x32xf32> to vector<1x32xf32>
    %c0_20 = arith.constant 0 : index
    %c0_21 = arith.constant 0 : index
    %c0_22 = arith.constant 0 : index
    %16 = vector.load %arg11[%c0_20, %c0_21, %c0_22] : memref<1x1x32xf32, #tpu.memory_space<vmem>>, vector<1x1x32xf32>
    %17 = vector.shape_cast %16 : vector<1x1x32xf32> to vector<1x32xf32>
    %c0_23 = arith.constant 0 : index
    %c0_24 = arith.constant 0 : index
    %c0_25 = arith.constant 0 : index
    %18 = vector.load %arg12[%c0_23, %c0_24, %c0_25] : memref<1x32x128xbf16, #tpu.memory_space<vmem>>, vector<1x32x128xbf16>
    %19 = vector.shape_cast %18 : vector<1x32x128xbf16> to vector<32x128xbf16>
    %c0_26 = arith.constant 0 : index
    %c0_27 = arith.constant 0 : index
    %c0_28 = arith.constant 0 : index
    %20 = vector.load %arg13[%c0_26, %c0_27, %c0_28] : memref<1x1x128xf32, #tpu.memory_space<vmem>>, vector<1x1x128xf32>
    %21 = vector.shape_cast %20 : vector<1x1x128xf32> to vector<1x128xf32>
    %c0_29 = arith.constant 0 : index
    %c0_30 = arith.constant 0 : index
    %c0_31 = arith.constant 0 : index
    %22 = vector.load %arg14[%c0_29, %c0_30, %c0_31] : memref<1x128x32xbf16, #tpu.memory_space<vmem>>, vector<1x128x32xbf16>
    %23 = vector.shape_cast %22 : vector<1x128x32xbf16> to vector<128x32xbf16>
    %c0_32 = arith.constant 0 : index
    %c0_33 = arith.constant 0 : index
    %c0_34 = arith.constant 0 : index
    %24 = vector.load %arg15[%c0_32, %c0_33, %c0_34] : memref<1x1x32xf32, #tpu.memory_space<vmem>>, vector<1x1x32xf32>
    %25 = vector.shape_cast %24 : vector<1x1x32xf32> to vector<1x32xf32>
    %cst = arith.constant dense<0.000000e+00> : vector<16xf32>
    %26 = vector.multi_reduction <add>, %3, %cst [1] : vector<16x32xf32> to vector<16xf32>
    %27 = vector.shape_cast %26 : vector<16xf32> to vector<16x1xf32>
    %cst_35 = arith.constant 3.200000e+01 : f32
    %28 = vector.broadcast %cst_35 : f32 to vector<16x1xf32>
    %29 = arith.divf %27, %28 : vector<16x1xf32>
    %30 = vector.broadcast %29 : vector<16x1xf32> to vector<16x32xf32>
    %31 = arith.subf %3, %30 : vector<16x32xf32>
    %32 = arith.mulf %31, %31 : vector<16x32xf32>
    %cst_36 = arith.constant dense<0.000000e+00> : vector<16xf32>
    %33 = vector.multi_reduction <add>, %32, %cst_36 [1] : vector<16x32xf32> to vector<16xf32>
    %34 = vector.shape_cast %33 : vector<16xf32> to vector<16x1xf32>
    %cst_37 = arith.constant 3.200000e+01 : f32
    %35 = vector.broadcast %cst_37 : f32 to vector<16x1xf32>
    %36 = arith.divf %34, %35 : vector<16x1xf32>
    %37 = vector.broadcast %29 : vector<16x1xf32> to vector<16x32xf32>
    %38 = arith.subf %3, %37 : vector<16x32xf32>
    %cst_38 = arith.constant 9.99999974E-6 : f32
    %39 = vector.broadcast %cst_38 : f32 to vector<16x1xf32>
    %40 = arith.addf %36, %39 : vector<16x1xf32>
    %41 = math.rsqrt %40 : vector<16x1xf32>
    %42 = vector.broadcast %41 : vector<16x1xf32> to vector<16x32xf32>
    %43 = arith.mulf %38, %42 : vector<16x32xf32>
    %44 = vector.broadcast %5 : vector<1x32xf32> to vector<16x32xf32>
    %45 = arith.mulf %43, %44 : vector<16x32xf32>
    %46 = vector.broadcast %7 : vector<1x32xf32> to vector<16x32xf32>
    %47 = arith.addf %45, %46 : vector<16x32xf32>
    %48 = arith.truncf %47 : vector<16x32xf32> to vector<16x32xbf16>
    %cst_39 = arith.constant dense<0.000000e+00> : vector<16x96xf32>
    %49 = tpu.matmul %48, %9, %cst_39 {dimension_numbers = #tpu.dot_dimension_numbers<[1], [0], [0], [1], [0, 0, 1, 1], [], []>} : vector<16x32xbf16>, vector<32x96xbf16>, vector<16x96xf32> -> vector<16x96xf32>
    %50 = arith.truncf %49 : vector<16x96xf32> to vector<16x96xbf16>
    %51 = vector.extract_strided_slice %50 {offsets = [0, 0], sizes = [16, 8], strides = [1, 1]} : vector<16x96xbf16> to vector<16x8xbf16>
    %52 = vector.extract_strided_slice %50 {offsets = [0, 32], sizes = [16, 8], strides = [1, 1]} : vector<16x96xbf16> to vector<16x8xbf16>
    %53 = vector.extract_strided_slice %50 {offsets = [0, 64], sizes = [16, 8], strides = [1, 1]} : vector<16x96xbf16> to vector<16x8xbf16>
    %cst_40 = arith.constant dense<0.000000e+00> : vector<16x16xf32>
    %54 = tpu.matmul %51, %52, %cst_40 {dimension_numbers = #tpu.dot_dimension_numbers<[1], [1], [0], [0], [0, 0, 1, 0], [], []>} : vector<16x8xbf16>, vector<16x8xbf16>, vector<16x16xf32> -> vector<16x16xf32>
    %cst_41 = arith.constant dense<0xFF800000> : vector<16xf32>
    %55 = vector.multi_reduction <maximumf>, %54, %cst_41 [1] : vector<16x16xf32> to vector<16xf32>
    %56 = vector.shape_cast %55 : vector<16xf32> to vector<16x1xf32>
    %57 = vector.broadcast %56 : vector<16x1xf32> to vector<16x16xf32>
    %58 = arith.subf %54, %57 : vector<16x16xf32>
    %59 = math.exp %58 : vector<16x16xf32>
    %cst_42 = arith.constant dense<0.000000e+00> : vector<16xf32>
    %60 = vector.multi_reduction <add>, %59, %cst_42 [1] : vector<16x16xf32> to vector<16xf32>
    %61 = vector.shape_cast %60 : vector<16xf32> to vector<16x1xf32>
    %62 = tpu.reciprocal %61 {approx = true} : vector<16x1xf32> -> vector<16x1xf32>
    %63 = vector.broadcast %62 : vector<16x1xf32> to vector<16x16xf32>
    %64 = arith.mulf %59, %63 : vector<16x16xf32>
    %65 = arith.truncf %64 : vector<16x16xf32> to vector<16x16xbf16>
    %cst_43 = arith.constant dense<0.000000e+00> : vector<16x8xf32>
    %66 = tpu.matmul %65, %53, %cst_43 {dimension_numbers = #tpu.dot_dimension_numbers<[1], [0], [0], [1], [0, 0, 1, 1], [], []>} : vector<16x16xbf16>, vector<16x8xbf16>, vector<16x8xf32> -> vector<16x8xf32>
    %67 = vector.extract_strided_slice %50 {offsets = [0, 8], sizes = [16, 8], strides = [1, 1]} : vector<16x96xbf16> to vector<16x8xbf16>
    %68 = vector.extract_strided_slice %50 {offsets = [0, 40], sizes = [16, 8], strides = [1, 1]} : vector<16x96xbf16> to vector<16x8xbf16>
    %69 = vector.extract_strided_slice %50 {offsets = [0, 72], sizes = [16, 8], strides = [1, 1]} : vector<16x96xbf16> to vector<16x8xbf16>
    %cst_44 = arith.constant dense<0.000000e+00> : vector<16x16xf32>
    %70 = tpu.matmul %67, %68, %cst_44 {dimension_numbers = #tpu.dot_dimension_numbers<[1], [1], [0], [0], [0, 0, 1, 0], [], []>} : vector<16x8xbf16>, vector<16x8xbf16>, vector<16x16xf32> -> vector<16x16xf32>
    %cst_45 = arith.constant dense<0xFF800000> : vector<16xf32>
    %71 = vector.multi_reduction <maximumf>, %70, %cst_45 [1] : vector<16x16xf32> to vector<16xf32>
    %72 = vector.shape_cast %71 : vector<16xf32> to vector<16x1xf32>
    %73 = vector.broadcast %72 : vector<16x1xf32> to vector<16x16xf32>
    %74 = arith.subf %70, %73 : vector<16x16xf32>
    %75 = math.exp %74 : vector<16x16xf32>
    %cst_46 = arith.constant dense<0.000000e+00> : vector<16xf32>
    %76 = vector.multi_reduction <add>, %75, %cst_46 [1] : vector<16x16xf32> to vector<16xf32>
    %77 = vector.shape_cast %76 : vector<16xf32> to vector<16x1xf32>
    %78 = tpu.reciprocal %77 {approx = true} : vector<16x1xf32> -> vector<16x1xf32>
    %79 = vector.broadcast %78 : vector<16x1xf32> to vector<16x16xf32>
    %80 = arith.mulf %75, %79 : vector<16x16xf32>
    %81 = arith.truncf %80 : vector<16x16xf32> to vector<16x16xbf16>
    %cst_47 = arith.constant dense<0.000000e+00> : vector<16x8xf32>
    %82 = tpu.matmul %81, %69, %cst_47 {dimension_numbers = #tpu.dot_dimension_numbers<[1], [0], [0], [1], [0, 0, 1, 1], [], []>} : vector<16x16xbf16>, vector<16x8xbf16>, vector<16x8xf32> -> vector<16x8xf32>
    %83 = vector.extract_strided_slice %50 {offsets = [0, 16], sizes = [16, 8], strides = [1, 1]} : vector<16x96xbf16> to vector<16x8xbf16>
    %84 = vector.extract_strided_slice %50 {offsets = [0, 48], sizes = [16, 8], strides = [1, 1]} : vector<16x96xbf16> to vector<16x8xbf16>
    %85 = vector.extract_strided_slice %50 {offsets = [0, 80], sizes = [16, 8], strides = [1, 1]} : vector<16x96xbf16> to vector<16x8xbf16>
    %cst_48 = arith.constant dense<0.000000e+00> : vector<16x16xf32>
    %86 = tpu.matmul %83, %84, %cst_48 {dimension_numbers = #tpu.dot_dimension_numbers<[1], [1], [0], [0], [0, 0, 1, 0], [], []>} : vector<16x8xbf16>, vector<16x8xbf16>, vector<16x16xf32> -> vector<16x16xf32>
    %cst_49 = arith.constant dense<0xFF800000> : vector<16xf32>
    %87 = vector.multi_reduction <maximumf>, %86, %cst_49 [1] : vector<16x16xf32> to vector<16xf32>
    %88 = vector.shape_cast %87 : vector<16xf32> to vector<16x1xf32>
    %89 = vector.broadcast %88 : vector<16x1xf32> to vector<16x16xf32>
    %90 = arith.subf %86, %89 : vector<16x16xf32>
    %91 = math.exp %90 : vector<16x16xf32>
    %cst_50 = arith.constant dense<0.000000e+00> : vector<16xf32>
    %92 = vector.multi_reduction <add>, %91, %cst_50 [1] : vector<16x16xf32> to vector<16xf32>
    %93 = vector.shape_cast %92 : vector<16xf32> to vector<16x1xf32>
    %94 = tpu.reciprocal %93 {approx = true} : vector<16x1xf32> -> vector<16x1xf32>
    %95 = vector.broadcast %94 : vector<16x1xf32> to vector<16x16xf32>
    %96 = arith.mulf %91, %95 : vector<16x16xf32>
    %97 = arith.truncf %96 : vector<16x16xf32> to vector<16x16xbf16>
    %cst_51 = arith.constant dense<0.000000e+00> : vector<16x8xf32>
    %98 = tpu.matmul %97, %85, %cst_51 {dimension_numbers = #tpu.dot_dimension_numbers<[1], [0], [0], [1], [0, 0, 1, 1], [], []>} : vector<16x16xbf16>, vector<16x8xbf16>, vector<16x8xf32> -> vector<16x8xf32>
    %99 = vector.extract_strided_slice %50 {offsets = [0, 24], sizes = [16, 8], strides = [1, 1]} : vector<16x96xbf16> to vector<16x8xbf16>
    %100 = vector.extract_strided_slice %50 {offsets = [0, 56], sizes = [16, 8], strides = [1, 1]} : vector<16x96xbf16> to vector<16x8xbf16>
    %101 = vector.extract_strided_slice %50 {offsets = [0, 88], sizes = [16, 8], strides = [1, 1]} : vector<16x96xbf16> to vector<16x8xbf16>
    %cst_52 = arith.constant dense<0.000000e+00> : vector<16x16xf32>
    %102 = tpu.matmul %99, %100, %cst_52 {dimension_numbers = #tpu.dot_dimension_numbers<[1], [1], [0], [0], [0, 0, 1, 0], [], []>} : vector<16x8xbf16>, vector<16x8xbf16>, vector<16x16xf32> -> vector<16x16xf32>
    %cst_53 = arith.constant dense<0xFF800000> : vector<16xf32>
    %103 = vector.multi_reduction <maximumf>, %102, %cst_53 [1] : vector<16x16xf32> to vector<16xf32>
    %104 = vector.shape_cast %103 : vector<16xf32> to vector<16x1xf32>
    %105 = vector.broadcast %104 : vector<16x1xf32> to vector<16x16xf32>
    %106 = arith.subf %102, %105 : vector<16x16xf32>
    %107 = math.exp %106 : vector<16x16xf32>
    %cst_54 = arith.constant dense<0.000000e+00> : vector<16xf32>
    %108 = vector.multi_reduction <add>, %107, %cst_54 [1] : vector<16x16xf32> to vector<16xf32>
    %109 = vector.shape_cast %108 : vector<16xf32> to vector<16x1xf32>
    %110 = tpu.reciprocal %109 {approx = true} : vector<16x1xf32> -> vector<16x1xf32>
    %111 = vector.broadcast %110 : vector<16x1xf32> to vector<16x16xf32>
    %112 = arith.mulf %107, %111 : vector<16x16xf32>
    %113 = arith.truncf %112 : vector<16x16xf32> to vector<16x16xbf16>
    %cst_55 = arith.constant dense<0.000000e+00> : vector<16x8xf32>
    %114 = tpu.matmul %113, %101, %cst_55 {dimension_numbers = #tpu.dot_dimension_numbers<[1], [0], [0], [1], [0, 0, 1, 1], [], []>} : vector<16x16xbf16>, vector<16x8xbf16>, vector<16x8xf32> -> vector<16x8xf32>
    %115 = tpu.concatenate %66, %82, %98, %114 in 1 : vector<16x8xf32>, vector<16x8xf32>, vector<16x8xf32>, vector<16x8xf32> -> vector<16x32xf32>
    %116 = arith.truncf %115 : vector<16x32xf32> to vector<16x32xbf16>
    %cst_56 = arith.constant dense<0.000000e+00> : vector<16x32xf32>
    %117 = tpu.matmul %116, %11, %cst_56 {dimension_numbers = #tpu.dot_dimension_numbers<[1], [0], [0], [1], [0, 0, 1, 1], [], []>} : vector<16x32xbf16>, vector<32x32xbf16>, vector<16x32xf32> -> vector<16x32xf32>
    %118 = arith.addf %3, %117 : vector<16x32xf32>
    %119 = vector.broadcast %13 : vector<1x32xf32> to vector<16x32xf32>
    %120 = arith.addf %118, %119 : vector<16x32xf32>
    %cst_57 = arith.constant dense<0.000000e+00> : vector<16xf32>
    %121 = vector.multi_reduction <add>, %120, %cst_57 [1] : vector<16x32xf32> to vector<16xf32>
    %122 = vector.shape_cast %121 : vector<16xf32> to vector<16x1xf32>
    %cst_58 = arith.constant 3.200000e+01 : f32
    %123 = vector.broadcast %cst_58 : f32 to vector<16x1xf32>
    %124 = arith.divf %122, %123 : vector<16x1xf32>
    %125 = vector.broadcast %124 : vector<16x1xf32> to vector<16x32xf32>
    %126 = arith.subf %120, %125 : vector<16x32xf32>
    %127 = arith.mulf %126, %126 : vector<16x32xf32>
    %cst_59 = arith.constant dense<0.000000e+00> : vector<16xf32>
    %128 = vector.multi_reduction <add>, %127, %cst_59 [1] : vector<16x32xf32> to vector<16xf32>
    %129 = vector.shape_cast %128 : vector<16xf32> to vector<16x1xf32>
    %cst_60 = arith.constant 3.200000e+01 : f32
    %130 = vector.broadcast %cst_60 : f32 to vector<16x1xf32>
    %131 = arith.divf %129, %130 : vector<16x1xf32>
    %132 = vector.broadcast %124 : vector<16x1xf32> to vector<16x32xf32>
    %133 = arith.subf %120, %132 : vector<16x32xf32>
    %cst_61 = arith.constant 9.99999974E-6 : f32
    %134 = vector.broadcast %cst_61 : f32 to vector<16x1xf32>
    %135 = arith.addf %131, %134 : vector<16x1xf32>
    %136 = math.rsqrt %135 : vector<16x1xf32>
    %137 = vector.broadcast %136 : vector<16x1xf32> to vector<16x32xf32>
    %138 = arith.mulf %133, %137 : vector<16x32xf32>
    %139 = vector.broadcast %15 : vector<1x32xf32> to vector<16x32xf32>
    %140 = arith.mulf %138, %139 : vector<16x32xf32>
    %141 = vector.broadcast %17 : vector<1x32xf32> to vector<16x32xf32>
    %142 = arith.addf %140, %141 : vector<16x32xf32>
    %143 = arith.truncf %142 : vector<16x32xf32> to vector<16x32xbf16>
    %cst_62 = arith.constant dense<0.000000e+00> : vector<16x128xf32>
    %144 = tpu.matmul %143, %19, %cst_62 {dimension_numbers = #tpu.dot_dimension_numbers<[1], [0], [0], [1], [0, 0, 1, 1], [], []>} : vector<16x32xbf16>, vector<32x128xbf16>, vector<16x128xf32> -> vector<16x128xf32>
    %145 = vector.broadcast %21 : vector<1x128xf32> to vector<16x128xf32>
    %146 = arith.addf %144, %145 : vector<16x128xf32>
    %147 = arith.mulf %146, %146 : vector<16x128xf32>
    %148 = arith.mulf %146, %147 : vector<16x128xf32>
    %cst_63 = arith.constant 4.471500e-02 : f32
    %149 = vector.broadcast %cst_63 : f32 to vector<16x128xf32>
    %150 = arith.mulf %149, %148 : vector<16x128xf32>
    %151 = arith.addf %146, %150 : vector<16x128xf32>
    %cst_64 = arith.constant 0.797884583 : f32
    %152 = vector.broadcast %cst_64 : f32 to vector<16x128xf32>
    %153 = arith.mulf %152, %151 : vector<16x128xf32>
    %154 = math.tanh %153 : vector<16x128xf32>
    %cst_65 = arith.constant 1.000000e+00 : f32
    %155 = vector.broadcast %cst_65 : f32 to vector<16x128xf32>
    %156 = arith.addf %155, %154 : vector<16x128xf32>
    %cst_66 = arith.constant 5.000000e-01 : f32
    %157 = vector.broadcast %cst_66 : f32 to vector<16x128xf32>
    %158 = arith.mulf %157, %156 : vector<16x128xf32>
    %159 = arith.mulf %146, %158 : vector<16x128xf32>
    %160 = arith.truncf %159 : vector<16x128xf32> to vector<16x128xbf16>
    %cst_67 = arith.constant dense<0.000000e+00> : vector<16x32xf32>
    %161 = tpu.matmul %160, %23, %cst_67 {dimension_numbers = #tpu.dot_dimension_numbers<[1], [0], [0], [1], [0, 0, 1, 1], [], []>} : vector<16x128xbf16>, vector<128x32xbf16>, vector<16x32xf32> -> vector<16x32xf32>
    %162 = vector.broadcast %25 : vector<1x32xf32> to vector<16x32xf32>
    %163 = arith.addf %161, %162 : vector<16x32xf32>
    %164 = arith.addf %120, %163 : vector<16x32xf32>
    %c0_68 = arith.constant 0 : index
    %c0_69 = arith.constant 0 : index
    %165 = vector.load %arg21[%c0_68, %c0_69] : memref<16x32xf32, #tpu.memory_space<vmem>>, vector<16x32xf32>
    tpu.vector_store %arg21[%c0_68, %c0_69], %164 {strides = array<i32>} : memref<16x32xf32, #tpu.memory_space<vmem>>, vector<16x32xf32>,
    %c1_i32 = arith.constant 1 : i32
    %166 = arith.cmpi eq, %arg1, %c1_i32 : i32
    %167 = arith.extui %166 : i1 to i32
    %c0_i32_70 = arith.constant 0 : i32
    %168 = arith.cmpi ne, %167, %c0_i32_70 : i32
    scf.if %168 {
      %c8 = arith.constant 8 : index
      %c0_71 = arith.constant 0 : index
      %169 = vector.load %arg21[%c8, %c0_71] : memref<16x32xf32, #tpu.memory_space<vmem>>, vector<8x32xf32>
      %c0_72 = arith.constant 0 : index
      %c0_73 = arith.constant 0 : index
      %170 = vector.load %arg16[%c0_72, %c0_73] : memref<1x32xf32, #tpu.memory_space<vmem>>, vector<1x32xf32>
      %c0_74 = arith.constant 0 : index
      %c0_75 = arith.constant 0 : index
      %171 = vector.load %arg17[%c0_74, %c0_75] : memref<1x32xf32, #tpu.memory_space<vmem>>, vector<1x32xf32>
      %cst_76 = arith.constant dense<0.000000e+00> : vector<8xf32>
      %172 = vector.multi_reduction <add>, %169, %cst_76 [1] : vector<8x32xf32> to vector<8xf32>
      %173 = vector.shape_cast %172 : vector<8xf32> to vector<8x1xf32>
      %cst_77 = arith.constant 3.200000e+01 : f32
      %174 = vector.broadcast %cst_77 : f32 to vector<8x1xf32>
      %175 = arith.divf %173, %174 : vector<8x1xf32>
      %176 = vector.broadcast %175 : vector<8x1xf32> to vector<8x32xf32>
      %177 = arith.subf %169, %176 : vector<8x32xf32>
      %178 = arith.mulf %177, %177 : vector<8x32xf32>
      %cst_78 = arith.constant dense<0.000000e+00> : vector<8xf32>
      %179 = vector.multi_reduction <add>, %178, %cst_78 [1] : vector<8x32xf32> to vector<8xf32>
      %180 = vector.shape_cast %179 : vector<8xf32> to vector<8x1xf32>
      %cst_79 = arith.constant 3.200000e+01 : f32
      %181 = vector.broadcast %cst_79 : f32 to vector<8x1xf32>
      %182 = arith.divf %180, %181 : vector<8x1xf32>
      %183 = vector.broadcast %175 : vector<8x1xf32> to vector<8x32xf32>
      %184 = arith.subf %169, %183 : vector<8x32xf32>
      %cst_80 = arith.constant 9.99999974E-6 : f32
      %185 = vector.broadcast %cst_80 : f32 to vector<8x1xf32>
      %186 = arith.addf %182, %185 : vector<8x1xf32>
      %187 = math.rsqrt %186 : vector<8x1xf32>
      %188 = vector.broadcast %187 : vector<8x1xf32> to vector<8x32xf32>
      %189 = arith.mulf %184, %188 : vector<8x32xf32>
      %190 = vector.broadcast %170 : vector<1x32xf32> to vector<8x32xf32>
      %191 = arith.mulf %189, %190 : vector<8x32xf32>
      %192 = vector.broadcast %171 : vector<1x32xf32> to vector<8x32xf32>
      %193 = arith.addf %191, %192 : vector<8x32xf32>
      %194 = arith.truncf %193 : vector<8x32xf32> to vector<8x32xbf16>
      %c0_81 = arith.constant 0 : index
      %c0_82 = arith.constant 0 : index
      %195 = vector.load %arg18[%c0_81, %c0_82] : memref<32x384xbf16, #tpu.memory_space<vmem>>, vector<32x384xbf16>
      %cst_83 = arith.constant dense<0.000000e+00> : vector<8x384xf32>
      %196 = tpu.matmul %194, %195, %cst_83 {dimension_numbers = #tpu.dot_dimension_numbers<[1], [0], [0], [1], [0, 0, 1, 1], [], []>} : vector<8x32xbf16>, vector<32x384xbf16>, vector<8x384xf32> -> vector<8x384xf32>
      %c0_84 = arith.constant 0 : index
      %c0_85 = arith.constant 0 : index
      %197 = vector.load %arg19[%c0_84, %c0_85] : memref<1x384xf32, #tpu.memory_space<vmem>>, vector<1x384xf32>
      %198 = vector.broadcast %197 : vector<1x384xf32> to vector<8x384xf32>
      %199 = arith.addf %196, %198 : vector<8x384xf32>
      %c0_86 = arith.constant 0 : index
      %c0_87 = arith.constant 0 : index
      %c0_88 = arith.constant 0 : index
      %200 = vector.load %arg20[%c0_86, %c0_87, %c0_88] : memref<1x8x384xf32, #tpu.memory_space<vmem>>, vector<1x8x384xf32>
      %201 = vector.shape_cast %200 : vector<1x8x384xf32> to vector<8x384xf32>
      %202 = vector.shape_cast %199 : vector<8x384xf32> to vector<1x8x384xf32>
      tpu.vector_store %arg20[%c0_86, %c0_87, %c0_88], %202 {strides = array<i32>} : memref<1x8x384xf32, #tpu.memory_space<vmem>>, vector<1x8x384xf32>,
    } else {
    }
    return
  }
  func.func @transform_0(%arg0: i32, %arg1: i32) -> (i32, i32, i32) {
    %c0_i32 = arith.constant 0 : i32
    %c0_i32_0 = arith.constant 0 : i32
    %c0_i32_1 = arith.constant 0 : i32
    return %arg0, %c0_i32, %c0_i32_0 : i32, i32, i32
  }
  func.func @transform_1(%arg0: i32, %arg1: i32) -> (i32, i32) {
    %c0_i32 = arith.constant 0 : i32
    %c0_i32_0 = arith.constant 0 : i32
    %c0_i32_1 = arith.constant 0 : i32
    return %c0_i32, %c0_i32_0 : i32, i32
  }
  func.func @transform_2(%arg0: i32, %arg1: i32) -> (i32, i32, i32) {
    %c0_i32 = arith.constant 0 : i32
    %c0_i32_0 = arith.constant 0 : i32
    %c0_i32_1 = arith.constant 0 : i32
    return %arg0, %c0_i32, %c0_i32_0 : i32, i32, i32
  }
  func.func @transform_3(%arg0: i32, %arg1: i32) -> (i32, i32, i32) {
    %c0_i32 = arith.constant 0 : i32
    %c0_i32_0 = arith.constant 0 : i32
    %c0_i32_1 = arith.constant 0 : i32
    return %arg1, %c0_i32, %c0_i32_0 : i32, i32, i32
  }
  func.func @transform_4(%arg0: i32, %arg1: i32) -> (i32, i32, i32) {
    %c0_i32 = arith.constant 0 : i32
    %c0_i32_0 = arith.constant 0 : i32
    %c0_i32_1 = arith.constant 0 : i32
    return %arg1, %c0_i32, %c0_i32_0 : i32, i32, i32
  }
  func.func @transform_5(%arg0: i32, %arg1: i32) -> (i32, i32, i32) {
    %c0_i32 = arith.constant 0 : i32
    %c0_i32_0 = arith.constant 0 : i32
    %c0_i32_1 = arith.constant 0 : i32
    return %arg1, %c0_i32, %c0_i32_0 : i32, i32, i32
  }
  func.func @transform_6(%arg0: i32, %arg1: i32) -> (i32, i32, i32) {
    %c0_i32 = arith.constant 0 : i32
    %c0_i32_0 = arith.constant 0 : i32
    %c0_i32_1 = arith.constant 0 : i32
    return %arg1, %c0_i32, %c0_i32_0 : i32, i32, i32
  }
  func.func @transform_7(%arg0: i32, %arg1: i32) -> (i32, i32, i32) {
    %c0_i32 = arith.constant 0 : i32
    %c0_i32_0 = arith.constant 0 : i32
    %c0_i32_1 = arith.constant 0 : i32
    return %arg1, %c0_i32, %c0_i32_0 : i32, i32, i32
  }
  func.func @transform_8(%arg0: i32, %arg1: i32) -> (i32, i32, i32) {
    %c0_i32 = arith.constant 0 : i32
    %c0_i32_0 = arith.constant 0 : i32
    %c0_i32_1 = arith.constant 0 : i32
    return %arg1, %c0_i32, %c0_i32_0 : i32, i32, i32
  }
  func.func @transform_9(%arg0: i32, %arg1: i32) -> (i32, i32, i32) {
    %c0_i32 = arith.constant 0 : i32
    %c0_i32_0 = arith.constant 0 : i32
    %c0_i32_1 = arith.constant 0 : i32
    return %arg1, %c0_i32, %c0_i32_0 : i32, i32, i32
  }
  func.func @transform_10(%arg0: i32, %arg1: i32) -> (i32, i32, i32) {
    %c0_i32 = arith.constant 0 : i32
    %c0_i32_0 = arith.constant 0 : i32
    %c0_i32_1 = arith.constant 0 : i32
    return %arg1, %c0_i32, %c0_i32_0 : i32, i32, i32
  }
  func.func @transform_11(%arg0: i32, %arg1: i32) -> (i32, i32, i32) {
    %c0_i32 = arith.constant 0 : i32
    %c0_i32_0 = arith.constant 0 : i32
    %c0_i32_1 = arith.constant 0 : i32
    return %arg1, %c0_i32, %c0_i32_0 : i32, i32, i32
  }
  func.func @transform_12(%arg0: i32, %arg1: i32) -> (i32, i32, i32) {
    %c0_i32 = arith.constant 0 : i32
    %c0_i32_0 = arith.constant 0 : i32
    %c0_i32_1 = arith.constant 0 : i32
    return %arg1, %c0_i32, %c0_i32_0 : i32, i32, i32
  }
  func.func @transform_13(%arg0: i32, %arg1: i32) -> (i32, i32, i32) {
    %c0_i32 = arith.constant 0 : i32
    %c0_i32_0 = arith.constant 0 : i32
    %c0_i32_1 = arith.constant 0 : i32
    return %arg1, %c0_i32, %c0_i32_0 : i32, i32, i32
  }
  func.func @transform_14(%arg0: i32, %arg1: i32) -> (i32, i32) {
    %c0_i32 = arith.constant 0 : i32
    %c0_i32_0 = arith.constant 0 : i32
    %c0_i32_1 = arith.constant 0 : i32
    return %c0_i32, %c0_i32_0 : i32, i32
  }
  func.func @transform_15(%arg0: i32, %arg1: i32) -> (i32, i32) {
    %c0_i32 = arith.constant 0 : i32
    %c0_i32_0 = arith.constant 0 : i32
    %c0_i32_1 = arith.constant 0 : i32
    return %c0_i32, %c0_i32_0 : i32, i32
  }
  func.func @transform_16(%arg0: i32, %arg1: i32) -> (i32, i32) {
    %c0_i32 = arith.constant 0 : i32
    %c0_i32_0 = arith.constant 0 : i32
    %c0_i32_1 = arith.constant 0 : i32
    return %c0_i32, %c0_i32_0 : i32, i32
  }
  func.func @transform_17(%arg0: i32, %arg1: i32) -> (i32, i32) {
    %c0_i32 = arith.constant 0 : i32
    %c0_i32_0 = arith.constant 0 : i32
    %c0_i32_1 = arith.constant 0 : i32
    return %c0_i32, %c0_i32_0 : i32, i32
  }
  func.func @transform_18(%arg0: i32, %arg1: i32) -> (i32, i32, i32) {
    %c0_i32 = arith.constant 0 : i32
    %c0_i32_0 = arith.constant 0 : i32
    %c0_i32_1 = arith.constant 0 : i32
    return %arg0, %c0_i32, %c0_i32_0 : i32, i32, i32
  }
}

</mosaic_0001>

<llo_original>
// kernel: forward.3
$region0: #{forward.3}
  #allocation0 [shape = 'u32[]', space=smem, size = 0x4, offset = 0x4, fixed_abs, tag = 'smem constant byte address 0x4 - core index']
  #allocation1 [shape = 'u32[144,128]{1,0:T(1,128)}', space=vmem, size = 0x12000, scoped, tag = 'internal scratch']
  #allocation2 [shape = 'f32[16,32]{1,0:T(8,128)}', space=vmem, size = 0x2000, scoped, tag = 'scratch operand']
  %s0 = inlined_call_operand.vmem [shape: f32[2,8,32], index: 0, kind: input, shape index: {}]
  %s1 = inlined_call_operand.vmem [shape: f32[1,32], index: 1, kind: input, shape index: {}]
  %s2 = inlined_call_operand.vmem [shape: f32[2,8,32], index: 2, kind: input, shape index: {}]
  %s3 = inlined_call_operand.vmem [shape: f32[2,1,32], index: 3, kind: input, shape index: {}]
  %s4 = inlined_call_operand.vmem [shape: f32[2,1,32], index: 4, kind: input, shape index: {}]
  %s5 = inlined_call_operand.vmem [shape: bf16[2,32,96], index: 5, kind: input, shape index: {}]
  %s6 = inlined_call_operand.vmem [shape: bf16[2,32,32], index: 6, kind: input, shape index: {}]
  %s7 = inlined_call_operand.vmem [shape: f32[2,1,32], index: 7, kind: input, shape index: {}]
  %s8 = inlined_call_operand.vmem [shape: f32[2,1,32], index: 8, kind: input, shape index: {}]
  %s9 = inlined_call_operand.vmem [shape: f32[2,1,32], index: 9, kind: input, shape index: {}]
  %s10 = inlined_call_operand.vmem [shape: bf16[2,32,128], index: 10, kind: input, shape index: {}]
  %s11 = inlined_call_operand.vmem [shape: f32[2,1,128], index: 11, kind: input, shape index: {}]
  %s12 = inlined_call_operand.vmem [shape: bf16[2,128,32], index: 12, kind: input, shape index: {}]
  %s13 = inlined_call_operand.vmem [shape: f32[2,1,32], index: 13, kind: input, shape index: {}]
  %s14 = inlined_call_operand.vmem [shape: f32[1,32], index: 14, kind: input, shape index: {}]
  %s15 = inlined_call_operand.vmem [shape: f32[1,32], index: 15, kind: input, shape index: {}]
  %s16 = inlined_call_operand.vmem [shape: bf16[32,384], index: 16, kind: input, shape index: {}]
  %s17 = inlined_call_operand.vmem [shape: f32[1,384], index: 17, kind: input, shape index: {}]
  %s18 = inlined_call_operand.hbm [shape: f32[2,8,384], index: 18, kind: output, shape index: {}]
  %s19 = sld [smem:[#allocation0]]
  $region113: #{forward.3} parent=0
    _
  %s21 = ssub.s32 1, %s19
  %s22 = scalar_select 0, %s21, %s19
  $region1: #{forward.3} parent=0
    #allocation3 [shape = 'u8[24576]{0}', space=vmem, size = 0x6000, scoped, tag = 'output window, operand 0']
    #allocation4 [shape = 's32[2]{0}', space=sflag, size = 0x8, scoped, tag = 'scoped memory for forward.3']
    %23 = vsyncpa [#allocation4], 0
    %s24 = scalar_lea.sflag [#allocation4], 1
    %25 = vsyncpa %s24, 0
    loop: start=0, step=1, limit=6
    $region2: #{forward.3} parent=1 // loop_pre_header
      _
    $region3: #{forward.3} parent=1 // loop_header
      %s27 = sphi 0, %s31
      %p28 = scmp.ge.s32.totalorder %s27, 6
      %s34 = sphi 0, %s46
      %s35 = sphi 0, %s42
      %s36 = sphi 0, %s34
      %s37 = sphi 0, %s35
      %s38 = sphi 0, %s36
      %s39 = sphi 0, %s37
      %s49 = sphi 0, %s51
      %s52 = sphi 0, %s49
      %s53 = sphi 0, %s52
      %s69 = sphi 0, %s53
      %s73 = sphi 0, %s73
      %s75 = sphi 0, %s73
      %s76 = sphi 0, %s75
      %s90 = sphi 0, %s76
      %s96 = sphi 0, %s98
      %s99 = sphi 0, %s96
      %s100 = sphi 0, %s99
      %s116 = sphi 0, %s100
      %s122 = sphi 0, %s124
      %s125 = sphi 0, %s122
      %s126 = sphi 0, %s125
      %s142 = sphi 0, %s126
      %s148 = sphi 0, %s150
      %s151 = sphi 0, %s148
      %s152 = sphi 0, %s151
      %s168 = sphi 0, %s152
      %s174 = sphi 0, %s176
      %s177 = sphi 0, %s174
      %s178 = sphi 0, %s177
      %s194 = sphi 0, %s178
      %s200 = sphi 0, %s202
      %s203 = sphi 0, %s200
      %s204 = sphi 0, %s203
      %s220 = sphi 0, %s204
      %s226 = sphi 0, %s228
      %s229 = sphi 0, %s226
      %s230 = sphi 0, %s229
      %s246 = sphi 0, %s230
      %s252 = sphi 0, %s254
      %s255 = sphi 0, %s252
      %s256 = sphi 0, %s255
      %s272 = sphi 0, %s256
      %s278 = sphi 0, %s280
      %s281 = sphi 0, %s278
      %s282 = sphi 0, %s281
      %s298 = sphi 0, %s282
      %s304 = sphi 0, %s306
      %s307 = sphi 0, %s304
      %s308 = sphi 0, %s307
      %s324 = sphi 0, %s308
      %s330 = sphi 0, %s332
      %s333 = sphi 0, %s330
      %s334 = sphi 0, %s333
      %s350 = sphi 0, %s334
      %s356 = sphi 0, %s358
      %s359 = sphi 0, %s356
      %s360 = sphi 0, %s359
      %s376 = sphi 0, %s360
      %s382 = sphi 0, %s384
      %s385 = sphi 0, %s382
      %s386 = sphi 0, %s385
      %s402 = sphi 0, %s386
      %s406 = sphi 0, %s406
      %s408 = sphi 0, %s406
      %s409 = sphi 0, %s408
      %s423 = sphi 0, %s409
      %s427 = sphi 0, %s427
      %s429 = sphi 0, %s427
      %s430 = sphi 0, %s429
      %s444 = sphi 0, %s430
      %s448 = sphi 0, %s448
      %s450 = sphi 0, %s448
      %s451 = sphi 0, %s450
      %s465 = sphi 0, %s451
      %s469 = sphi 0, %s469
      %s471 = sphi 0, %s469
      %s472 = sphi 0, %s471
      %s486 = sphi 0, %s472
      %s492 = sphi 0, %s494
      %s495 = sphi 0, %s492
      %s496 = sphi 0, %s495
      %s512 = sphi 0, %s496
    $region4: #{forward.3} parent=1 // loop_header_branch
      %30 = sbr.rel (%p28) target = $region8
    $region5: #{forward.3} parent=1 // loop_body
      %s32 = ssub.s32 %s27, 1
      %s33 = ssub.s32 %s27, 2
      %s40 = sadd.s32 1, %s35
      %p41 = scmp.ge.s32.totalorder %s40, 2
      %s42 = scalar_select %p41, 0, %s40
      %s43 = sadd.s32 1, %s34
      %s44 = scalar_select %p41, %s43, %s34
      %p45 = scmp.ge.s32.totalorder %s44, 2
      %s46 = scalar_select %p45, 0, %s44
      %s47 = ssub.s32 %s34, %s46
      %p48 = scmp.eq.s32.totalorder %s47, 0
      %s50 = sadd.s32 %s49, 1
      %s51 = scalar_select %p48, %s49, %s50
      %p54 = pneg %p48
      %p55 = scmp.eq.s32.totalorder %s27, 3
      %p56 = por %p54, %p55
      %p57 = scmp.ne.s32.totalorder %s49, %s52
      %p58 = scmp.eq.s32.totalorder %s27, 0
      %p59 = por %p57, %p58
      %p60 = scmp.ne.s32.totalorder %s49, %s52
      %p61 = scmp.eq.s32.totalorder %s32, 3
      %p62 = por %p60, %p61
      %p63 = scmp.ne.s32.totalorder %s52, %s53
      %p64 = scmp.eq.s32.totalorder %s32, 0
      %p65 = por %p63, %p64
      %p66 = scmp.ne.s32.totalorder %s52, %s53
      %p67 = scmp.eq.s32.totalorder %s33, 3
      %p68 = por %p66, %p67
      %p70 = scmp.ne.s32.totalorder %s53, %s69
      %p71 = scmp.eq.s32.totalorder %s33, 0
      %p72 = por %p70, %p71
      %s74 = sadd.s32 %s73, 1
      %p77 = scmp.eq.s32.totalorder %s27, 3
      %p78 = scmp.ne.s32.totalorder %s73, %s75
      %p79 = scmp.eq.s32.totalorder %s27, 0
      %p80 = por %p78, %p79
      %p81 = scmp.ne.s32.totalorder %s73, %s75
      %p82 = scmp.eq.s32.totalorder %s32, 3
      %p83 = por %p81, %p82
      %p84 = scmp.ne.s32.totalorder %s75, %s76
      %p85 = scmp.eq.s32.totalorder %s32, 0
      %p86 = por %p84, %p85
      %p87 = scmp.ne.s32.totalorder %s75, %s76
      %p88 = scmp.eq.s32.totalorder %s33, 3
      %p89 = por %p87, %p88
      %p91 = scmp.ne.s32.totalorder %s76, %s90
      %p92 = scmp.eq.s32.totalorder %s33, 0
      %p93 = por %p91, %p92
      %s94 = ssub.s32 %s34, %s46
      %p95 = scmp.eq.s32.totalorder %s94, 0
      %s97 = sadd.s32 %s96, 1
      %s98 = scalar_select %p95, %s96, %s97
      %p101 = pneg %p95
      %p102 = scmp.eq.s32.totalorder %s27, 3
      %p103 = por %p101, %p102
      %p104 = scmp.ne.s32.totalorder %s96, %s99
      %p105 = scmp.eq.s32.totalorder %s27, 0
      %p106 = por %p104, %p105
      %p107 = scmp.ne.s32.totalorder %s96, %s99
      %p108 = scmp.eq.s32.totalorder %s32, 3
      %p109 = por %p107, %p108
      %p110 = scmp.ne.s32.totalorder %s99, %s100
      %p111 = scmp.eq.s32.totalorder %s32, 0
      %p112 = por %p110, %p111
      %p113 = scmp.ne.s32.totalorder %s99, %s100
      %p114 = scmp.eq.s32.totalorder %s33, 3
      %p115 = por %p113, %p114
      %p117 = scmp.ne.s32.totalorder %s100, %s116
      %p118 = scmp.eq.s32.totalorder %s33, 0
      %p119 = por %p117, %p118
      %s120 = ssub.s32 %s35, %s42
      %p121 = scmp.eq.s32.totalorder %s120, 0
      %s123 = sadd.s32 %s122, 1
      %s124 = scalar_select %p121, %s122, %s123
      %p127 = pneg %p121
      %p128 = scmp.eq.s32.totalorder %s27, 3
      %p129 = por %p127, %p128
      %p130 = scmp.ne.s32.totalorder %s122, %s125
      %p131 = scmp.eq.s32.totalorder %s27, 0
      %p132 = por %p130, %p131
      %p133 = scmp.ne.s32.totalorder %s122, %s125
      %p134 = scmp.eq.s32.totalorder %s32, 3
      %p135 = por %p133, %p134
      %p136 = scmp.ne.s32.totalorder %s125, %s126
      %p137 = scmp.eq.s32.totalorder %s32, 0
      %p138 = por %p136, %p137
      %p139 = scmp.ne.s32.totalorder %s125, %s126
      %p140 = scmp.eq.s32.totalorder %s33, 3
      %p141 = por %p139, %p140
      %p143 = scmp.ne.s32.totalorder %s126, %s142
      %p144 = scmp.eq.s32.totalorder %s33, 0
      %p145 = por %p143, %p144
      %s146 = ssub.s32 %s35, %s42
      %p147 = scmp.eq.s32.totalorder %s146, 0
      %s149 = sadd.s32 %s148, 1
      %s150 = scalar_select %p147, %s148, %s149
      %p153 = pneg %p147
      %p154 = scmp.eq.s32.totalorder %s27, 3
      %p155 = por %p153, %p154
      %p156 = scmp.ne.s32.totalorder %s148, %s151
      %p157 = scmp.eq.s32.totalorder %s27, 0
      %p158 = por %p156, %p157
      %p159 = scmp.ne.s32.totalorder %s148, %s151
      %p160 = scmp.eq.s32.totalorder %s32, 3
      %p161 = por %p159, %p160
      %p162 = scmp.ne.s32.totalorder %s151, %s152
      %p163 = scmp.eq.s32.totalorder %s32, 0
      %p164 = por %p162, %p163
      %p165 = scmp.ne.s32.totalorder %s151, %s152
      %p166 = scmp.eq.s32.totalorder %s33, 3
      %p167 = por %p165, %p166
      %p169 = scmp.ne.s32.totalorder %s152, %s168
      %p170 = scmp.eq.s32.totalorder %s33, 0
      %p171 = por %p169, %p170
      %s172 = ssub.s32 %s35, %s42
      %p173 = scmp.eq.s32.totalorder %s172, 0
      %s175 = sadd.s32 %s174, 1
      %s176 = scalar_select %p173, %s174, %s175
      %p179 = pneg %p173
      %p180 = scmp.eq.s32.totalorder %s27, 3
      %p181 = por %p179, %p180
      %p182 = scmp.ne.s32.totalorder %s174, %s177
      %p183 = scmp.eq.s32.totalorder %s27, 0
      %p184 = por %p182, %p183
      %p185 = scmp.ne.s32.totalorder %s174, %s177
      %p186 = scmp.eq.s32.totalorder %s32, 3
      %p187 = por %p185, %p186
      %p188 = scmp.ne.s32.totalorder %s177, %s178
      %p189 = scmp.eq.s32.totalorder %s32, 0
      %p190 = por %p188, %p189
      %p191 = scmp.ne.s32.totalorder %s177, %s178
      %p192 = scmp.eq.s32.totalorder %s33, 3
      %p193 = por %p191, %p192
      %p195 = scmp.ne.s32.totalorder %s178, %s194
      %p196 = scmp.eq.s32.totalorder %s33, 0
      %p197 = por %p195, %p196
      %s198 = ssub.s32 %s35, %s42
      %p199 = scmp.eq.s32.totalorder %s198, 0
      %s201 = sadd.s32 %s200, 1
      %s202 = scalar_select %p199, %s200, %s201
      %p205 = pneg %p199
      %p206 = scmp.eq.s32.totalorder %s27, 3
      %p207 = por %p205, %p206
      %p208 = scmp.ne.s32.totalorder %s200, %s203
      %p209 = scmp.eq.s32.totalorder %s27, 0
      %p210 = por %p208, %p209
      %p211 = scmp.ne.s32.totalorder %s200, %s203
      %p212 = scmp.eq.s32.totalorder %s32, 3
      %p213 = por %p211, %p212
      %p214 = scmp.ne.s32.totalorder %s203, %s204
      %p215 = scmp.eq.s32.totalorder %s32, 0
      %p216 = por %p214, %p215
      %p217 = scmp.ne.s32.totalorder %s203, %s204
      %p218 = scmp.eq.s32.totalorder %s33, 3
      %p219 = por %p217, %p218
      %p221 = scmp.ne.s32.totalorder %s204, %s220
      %p222 = scmp.eq.s32.totalorder %s33, 0
      %p223 = por %p221, %p222
      %s224 = ssub.s32 %s35, %s42
      %p225 = scmp.eq.s32.totalorder %s224, 0
      %s227 = sadd.s32 %s226, 1
      %s228 = scalar_select %p225, %s226, %s227
      %p231 = pneg %p225
      %p232 = scmp.eq.s32.totalorder %s27, 3
      %p233 = por %p231, %p232
      %p234 = scmp.ne.s32.totalorder %s226, %s229
      %p235 = scmp.eq.s32.totalorder %s27, 0
      %p236 = por %p234, %p235
      %p237 = scmp.ne.s32.totalorder %s226, %s229
      %p238 = scmp.eq.s32.totalorder %s32, 3
      %p239 = por %p237, %p238
      %p240 = scmp.ne.s32.totalorder %s229, %s230
      %p241 = scmp.eq.s32.totalorder %s32, 0
      %p242 = por %p240, %p241
      %p243 = scmp.ne.s32.totalorder %s229, %s230
      %p244 = scmp.eq.s32.totalorder %s33, 3
      %p245 = por %p243, %p244
      %p247 = scmp.ne.s32.totalorder %s230, %s246
      %p248 = scmp.eq.s32.totalorder %s33, 0
      %p249 = por %p247, %p248
      %s250 = ssub.s32 %s35, %s42
      %p251 = scmp.eq.s32.totalorder %s250, 0
      %s253 = sadd.s32 %s252, 1
      %s254 = scalar_select %p251, %s252, %s253
      %p257 = pneg %p251
      %p258 = scmp.eq.s32.totalorder %s27, 3
      %p259 = por %p257, %p258
      %p260 = scmp.ne.s32.totalorder %s252, %s255
      %p261 = scmp.eq.s32.totalorder %s27, 0
      %p262 = por %p260, %p261
      %p263 = scmp.ne.s32.totalorder %s252, %s255
      %p264 = scmp.eq.s32.totalorder %s32, 3
      %p265 = por %p263, %p264
      %p266 = scmp.ne.s32.totalorder %s255, %s256
      %p267 = scmp.eq.s32.totalorder %s32, 0
      %p268 = por %p266, %p267
      %p269 = scmp.ne.s32.totalorder %s255, %s256
      %p270 = scmp.eq.s32.totalorder %s33, 3
      %p271 = por %p269, %p270
      %p273 = scmp.ne.s32.totalorder %s256, %s272
      %p274 = scmp.eq.s32.totalorder %s33, 0
      %p275 = por %p273, %p274
      %s276 = ssub.s32 %s35, %s42
      %p277 = scmp.eq.s32.totalorder %s276, 0
      %s279 = sadd.s32 %s278, 1
      %s280 = scalar_select %p277, %s278, %s279
      %p283 = pneg %p277
      %p284 = scmp.eq.s32.totalorder %s27, 3
      %p285 = por %p283, %p284
      %p286 = scmp.ne.s32.totalorder %s278, %s281
      %p287 = scmp.eq.s32.totalorder %s27, 0
      %p288 = por %p286, %p287
      %p289 = scmp.ne.s32.totalorder %s278, %s281
      %p290 = scmp.eq.s32.totalorder %s32, 3
      %p291 = por %p289, %p290
      %p292 = scmp.ne.s32.totalorder %s281, %s282
      %p293 = scmp.eq.s32.totalorder %s32, 0
      %p294 = por %p292, %p293
      %p295 = scmp.ne.s32.totalorder %s281, %s282
      %p296 = scmp.eq.s32.totalorder %s33, 3
      %p297 = por %p295, %p296
      %p299 = scmp.ne.s32.totalorder %s282, %s298
      %p300 = scmp.eq.s32.totalorder %s33, 0
      %p301 = por %p299, %p300
      %s302 = ssub.s32 %s35, %s42
      %p303 = scmp.eq.s32.totalorder %s302, 0
      %s305 = sadd.s32 %s304, 1
      %s306 = scalar_select %p303, %s304, %s305
      %p309 = pneg %p303
      %p310 = scmp.eq.s32.totalorder %s27, 3
      %p311 = por %p309, %p310
      %p312 = scmp.ne.s32.totalorder %s304, %s307
      %p313 = scmp.eq.s32.totalorder %s27, 0
      %p314 = por %p312, %p313
      %p315 = scmp.ne.s32.totalorder %s304, %s307
      %p316 = scmp.eq.s32.totalorder %s32, 3
      %p317 = por %p315, %p316
      %p318 = scmp.ne.s32.totalorder %s307, %s308
      %p319 = scmp.eq.s32.totalorder %s32, 0
      %p320 = por %p318, %p319
      %p321 = scmp.ne.s32.totalorder %s307, %s308
      %p322 = scmp.eq.s32.totalorder %s33, 3
      %p323 = por %p321, %p322
      %p325 = scmp.ne.s32.totalorder %s308, %s324
      %p326 = scmp.eq.s32.totalorder %s33, 0
      %p327 = por %p325, %p326
      %s328 = ssub.s32 %s35, %s42
      %p329 = scmp.eq.s32.totalorder %s328, 0
      %s331 = sadd.s32 %s330, 1
      %s332 = scalar_select %p329, %s330, %s331
      %p335 = pneg %p329
      %p336 = scmp.eq.s32.totalorder %s27, 3
      %p337 = por %p335, %p336
      %p338 = scmp.ne.s32.totalorder %s330, %s333
      %p339 = scmp.eq.s32.totalorder %s27, 0
      %p340 = por %p338, %p339
      %p341 = scmp.ne.s32.totalorder %s330, %s333
      %p342 = scmp.eq.s32.totalorder %s32, 3
      %p343 = por %p341, %p342
      %p344 = scmp.ne.s32.totalorder %s333, %s334
      %p345 = scmp.eq.s32.totalorder %s32, 0
      %p346 = por %p344, %p345
      %p347 = scmp.ne.s32.totalorder %s333, %s334
      %p348 = scmp.eq.s32.totalorder %s33, 3
      %p349 = por %p347, %p348
      %p351 = scmp.ne.s32.totalorder %s334, %s350
      %p352 = scmp.eq.s32.totalorder %s33, 0
      %p353 = por %p351, %p352
      %s354 = ssub.s32 %s35, %s42
      %p355 = scmp.eq.s32.totalorder %s354, 0
      %s357 = sadd.s32 %s356, 1
      %s358 = scalar_select %p355, %s356, %s357
      %p361 = pneg %p355
      %p362 = scmp.eq.s32.totalorder %s27, 3
      %p363 = por %p361, %p362
      %p364 = scmp.ne.s32.totalorder %s356, %s359
      %p365 = scmp.eq.s32.totalorder %s27, 0
      %p366 = por %p364, %p365
      %p367 = scmp.ne.s32.totalorder %s356, %s359
      %p368 = scmp.eq.s32.totalorder %s32, 3
      %p369 = por %p367, %p368
      %p370 = scmp.ne.s32.totalorder %s359, %s360
      %p371 = scmp.eq.s32.totalorder %s32, 0
      %p372 = por %p370, %p371
      %p373 = scmp.ne.s32.totalorder %s359, %s360
      %p374 = scmp.eq.s32.totalorder %s33, 3
      %p375 = por %p373, %p374
      %p377 = scmp.ne.s32.totalorder %s360, %s376
      %p378 = scmp.eq.s32.totalorder %s33, 0
      %p379 = por %p377, %p378
      %s380 = ssub.s32 %s35, %s42
      %p381 = scmp.eq.s32.totalorder %s380, 0
      %s383 = sadd.s32 %s382, 1
      %s384 = scalar_select %p381, %s382, %s383
      %p387 = pneg %p381
      %p388 = scmp.eq.s32.totalorder %s27, 3
      %p389 = por %p387, %p388
      %p390 = scmp.ne.s32.totalorder %s382, %s385
      %p391 = scmp.eq.s32.totalorder %s27, 0
      %p392 = por %p390, %p391
      %p393 = scmp.ne.s32.totalorder %s382, %s385
      %p394 = scmp.eq.s32.totalorder %s32, 3
      %p395 = por %p393, %p394
      %p396 = scmp.ne.s32.totalorder %s385, %s386
      %p397 = scmp.eq.s32.totalorder %s32, 0
      %p398 = por %p396, %p397
      %p399 = scmp.ne.s32.totalorder %s385, %s386
      %p400 = scmp.eq.s32.totalorder %s33, 3
      %p401 = por %p399, %p400
      %p403 = scmp.ne.s32.totalorder %s386, %s402
      %p404 = scmp.eq.s32.totalorder %s33, 0
      %p405 = por %p403, %p404
      %s407 = sadd.s32 %s406, 1
      %p410 = scmp.eq.s32.totalorder %s27, 3
      %p411 = scmp.ne.s32.totalorder %s406, %s408
      %p412 = scmp.eq.s32.totalorder %s27, 0
      %p413 = por %p411, %p412
      %p414 = scmp.ne.s32.totalorder %s406, %s408
      %p415 = scmp.eq.s32.totalorder %s32, 3
      %p416 = por %p414, %p415
      %p417 = scmp.ne.s32.totalorder %s408, %s409
      %p418 = scmp.eq.s32.totalorder %s32, 0
      %p419 = por %p417, %p418
      %p420 = scmp.ne.s32.totalorder %s408, %s409
      %p421 = scmp.eq.s32.totalorder %s33, 3
      %p422 = por %p420, %p421
      %p424 = scmp.ne.s32.totalorder %s409, %s423
      %p425 = scmp.eq.s32.totalorder %s33, 0
      %p426 = por %p424, %p425
      %s428 = sadd.s32 %s427, 1
      %p431 = scmp.eq.s32.totalorder %s27, 3
      %p432 = scmp.ne.s32.totalorder %s427, %s429
      %p433 = scmp.eq.s32.totalorder %s27, 0
      %p434 = por %p432, %p433
      %p435 = scmp.ne.s32.totalorder %s427, %s429
      %p436 = scmp.eq.s32.totalorder %s32, 3
      %p437 = por %p435, %p436
      %p438 = scmp.ne.s32.totalorder %s429, %s430
      %p439 = scmp.eq.s32.totalorder %s32, 0
      %p440 = por %p438, %p439
      %p441 = scmp.ne.s32.totalorder %s429, %s430
      %p442 = scmp.eq.s32.totalorder %s33, 3
      %p443 = por %p441, %p442
      %p445 = scmp.ne.s32.totalorder %s430, %s444
      %p446 = scmp.eq.s32.totalorder %s33, 0
      %p447 = por %p445, %p446
      %s449 = sadd.s32 %s448, 1
      %p452 = scmp.eq.s32.totalorder %s27, 3
      %p453 = scmp.ne.s32.totalorder %s448, %s450
      %p454 = scmp.eq.s32.totalorder %s27, 0
      %p455 = por %p453, %p454
      %p456 = scmp.ne.s32.totalorder %s448, %s450
      %p457 = scmp.eq.s32.totalorder %s32, 3
      %p458 = por %p456, %p457
      %p459 = scmp.ne.s32.totalorder %s450, %s451
      %p460 = scmp.eq.s32.totalorder %s32, 0
      %p461 = por %p459, %p460
      %p462 = scmp.ne.s32.totalorder %s450, %s451
      %p463 = scmp.eq.s32.totalorder %s33, 3
      %p464 = por %p462, %p463
      %p466 = scmp.ne.s32.totalorder %s451, %s465
      %p467 = scmp.eq.s32.totalorder %s33, 0
      %p468 = por %p466, %p467
      %s470 = sadd.s32 %s469, 1
      %p473 = scmp.eq.s32.totalorder %s27, 3
      %p474 = scmp.ne.s32.totalorder %s469, %s471
      %p475 = scmp.eq.s32.totalorder %s27, 0
      %p476 = por %p474, %p475
      %p477 = scmp.ne.s32.totalorder %s469, %s471
      %p478 = scmp.eq.s32.totalorder %s32, 3
      %p479 = por %p477, %p478
      %p480 = scmp.ne.s32.totalorder %s471, %s472
      %p481 = scmp.eq.s32.totalorder %s32, 0
      %p482 = por %p480, %p481
      %p483 = scmp.ne.s32.totalorder %s471, %s472
      %p484 = scmp.eq.s32.totalorder %s33, 3
      %p485 = por %p483, %p484
      %p487 = scmp.ne.s32.totalorder %s472, %s486
      %p488 = scmp.eq.s32.totalorder %s33, 0
      %p489 = por %p487, %p488
      %s490 = ssub.s32 %s34, %s46
      %p491 = scmp.eq.s32.totalorder %s490, 0
      %s493 = sadd.s32 %s492, 1
      %s494 = scalar_select %p491, %s492, %s493
      %p497 = pneg %p491
      %p498 = scmp.eq.s32.totalorder %s27, 3
      %p499 = por %p497, %p498
      %p500 = scmp.ne.s32.totalorder %s492, %s495
      %p501 = scmp.eq.s32.totalorder %s27, 0
      %p502 = por %p500, %p501
      %p503 = scmp.ne.s32.totalorder %s492, %s495
      %p504 = scmp.eq.s32.totalorder %s32, 3
      %p505 = por %p503, %p504
      %p506 = scmp.ne.s32.totalorder %s495, %s496
      %p507 = scmp.eq.s32.totalorder %s32, 0
      %p508 = por %p506, %p507
      %p509 = scmp.ne.s32.totalorder %s495, %s496
      %p510 = scmp.eq.s32.totalorder %s33, 3
      %p511 = por %p509, %p510
      %p513 = scmp.ne.s32.totalorder %s496, %s512
      %p514 = scmp.eq.s32.totalorder %s33, 0
      %p515 = por %p513, %p514
      %p516 = scmp.le.s32.totalorder 1, %s27
      %p517 = scmp.lt.s32.totalorder %s27, 5
      %p518 = pnand %p516, %p517
      %p519 = pneg %p518
      // Predicated region
      $region9: #{forward.3} parent=5 // pred_check
        _
      $region10: #{forward.3} parent=5 // pred_check_branch
        %521 = sbr.rel (%p518) target = $region12
      $region11: #{forward.3} parent=5 // pred_region
        %s522 = ssub.s32 %s27, 1
        // Predicated region
        $region13: #{forward.3} parent=11 // pred_check
          %p523 = pneg %p86
        $region14: #{forward.3} parent=11 // pred_check_branch
          %525 = sbr.rel (%p523) target = $region16
        $region15: #{forward.3} parent=11 // pred_region
          _
        $region16: #{forward.3} parent=11 // pred_fallthru
          _
        // Predicated region
        $region17: #{forward.3} parent=11 // pred_check
          %p526 = pneg %p419
        $region18: #{forward.3} parent=11 // pred_check_branch
          %528 = sbr.rel (%p526) target = $region20
        $region19: #{forward.3} parent=11 // pred_region
          _
        $region20: #{forward.3} parent=11 // pred_fallthru
          _
        // Predicated region
        $region21: #{forward.3} parent=11 // pred_check
          %p529 = pneg %p440
        $region22: #{forward.3} parent=11 // pred_check_branch
          %531 = sbr.rel (%p529) target = $region24
        $region23: #{forward.3} parent=11 // pred_region
          _
        $region24: #{forward.3} parent=11 // pred_fallthru
          _
        // Predicated region
        $region25: #{forward.3} parent=11 // pred_check
          %p532 = pneg %p461
        $region26: #{forward.3} parent=11 // pred_check_branch
          %534 = sbr.rel (%p532) target = $region28
        $region27: #{forward.3} parent=11 // pred_region
          _
        $region28: #{forward.3} parent=11 // pred_fallthru
          _
        // Predicated region
        $region29: #{forward.3} parent=11 // pred_check
          %p535 = pneg %p482
        $region30: #{forward.3} parent=11 // pred_check_branch
          %537 = sbr.rel (%p535) target = $region32
        $region31: #{forward.3} parent=11 // pred_region
          _
        $region32: #{forward.3} parent=11 // pred_fallthru
          _
      $region12: #{forward.3} parent=5 // pred_fallthru
        _
      %p538 = scmp.lt.s32.totalorder %s27, 4
      // Predicated region
      $region33: #{forward.3} parent=5 // pred_check
        %p539 = pneg %p538
      $region34: #{forward.3} parent=5 // pred_check_branch
        %541 = sbr.rel (%p539) target = $region36
      $region35: #{forward.3} parent=5 // pred_region
        // Predicated region
        $region37: #{forward.3} parent=35 // pred_check
          %p542 = pneg %p59
        $region38: #{forward.3} parent=35 // pred_check_branch
          %544 = sbr.rel (%p542) target = $region40
        $region39: #{forward.3} parent=35 // pred_region
          %p545 = scmp.lt.s32.totalorder %s34, 1
          %s546 = scalar_select %p545, %s34, 1
          %s547 = smul.addr %s546, 8
          %s548 = scalar_lea.vmem %s0, %s547
        $region40: #{forward.3} parent=35 // pred_fallthru
          _
        // Predicated region
        $region41: #{forward.3} parent=35 // pred_check
          %p549 = pneg %p106
        $region42: #{forward.3} parent=35 // pred_check_branch
          %551 = sbr.rel (%p549) target = $region44
        $region43: #{forward.3} parent=35 // pred_region
          %p552 = scmp.lt.s32.totalorder %s34, 1
          %s553 = scalar_select %p552, %s34, 1
          %s554 = smul.addr %s553, 8
          %s555 = scalar_lea.vmem %s2, %s554
        $region44: #{forward.3} parent=35 // pred_fallthru
          _
        // Predicated region
        $region45: #{forward.3} parent=35 // pred_check
          %p556 = pneg %p132
        $region46: #{forward.3} parent=35 // pred_check_branch
          %558 = sbr.rel (%p556) target = $region48
        $region47: #{forward.3} parent=35 // pred_region
          %p559 = scmp.lt.s32.totalorder %s35, 1
          %s560 = scalar_select %p559, %s35, 1
          %s561 = scalar_lea.vmem %s3, %s560
        $region48: #{forward.3} parent=35 // pred_fallthru
          _
        // Predicated region
        $region49: #{forward.3} parent=35 // pred_check
          %p562 = pneg %p158
        $region50: #{forward.3} parent=35 // pred_check_branch
          %564 = sbr.rel (%p562) target = $region52
        $region51: #{forward.3} parent=35 // pred_region
          %p565 = scmp.lt.s32.totalorder %s35, 1
          %s566 = scalar_select %p565, %s35, 1
          %s567 = scalar_lea.vmem %s4, %s566
        $region52: #{forward.3} parent=35 // pred_fallthru
          _
        // Predicated region
        $region53: #{forward.3} parent=35 // pred_check
          %p568 = pneg %p184
        $region54: #{forward.3} parent=35 // pred_check_branch
          %570 = sbr.rel (%p568) target = $region56
        $region55: #{forward.3} parent=35 // pred_region
          %p571 = scmp.lt.s32.totalorder %s35, 1
          %s572 = scalar_select %p571, %s35, 1
          %s573 = smul.addr %s572, 4
          %s574 = smul.addr %s573, 4
          %s575 = scalar_lea.vmem %s5, %s574
        $region56: #{forward.3} parent=35 // pred_fallthru
          _
        // Predicated region
        $region57: #{forward.3} parent=35 // pred_check
          %p576 = pneg %p210
        $region58: #{forward.3} parent=35 // pred_check_branch
          %578 = sbr.rel (%p576) target = $region60
        $region59: #{forward.3} parent=35 // pred_region
          %p579 = scmp.lt.s32.totalorder %s35, 1
          %s580 = scalar_select %p579, %s35, 1
          %s581 = smul.addr %s580, 4
          %s582 = smul.addr %s581, 4
          %s583 = scalar_lea.vmem %s6, %s582
        $region60: #{forward.3} parent=35 // pred_fallthru
          _
        // Predicated region
        $region61: #{forward.3} parent=35 // pred_check
          %p584 = pneg %p236
        $region62: #{forward.3} parent=35 // pred_check_branch
          %586 = sbr.rel (%p584) target = $region64
        $region63: #{forward.3} parent=35 // pred_region
          %p587 = scmp.lt.s32.totalorder %s35, 1
          %s588 = scalar_select %p587, %s35, 1
          %s589 = scalar_lea.vmem %s7, %s588
        $region64: #{forward.3} parent=35 // pred_fallthru
          _
        // Predicated region
        $region65: #{forward.3} parent=35 // pred_check
          %p590 = pneg %p262
        $region66: #{forward.3} parent=35 // pred_check_branch
          %592 = sbr.rel (%p590) target = $region68
        $region67: #{forward.3} parent=35 // pred_region
          %p593 = scmp.lt.s32.totalorder %s35, 1
          %s594 = scalar_select %p593, %s35, 1
          %s595 = scalar_lea.vmem %s8, %s594
        $region68: #{forward.3} parent=35 // pred_fallthru
          _
        // Predicated region
        $region69: #{forward.3} parent=35 // pred_check
          %p596 = pneg %p288
        $region70: #{forward.3} parent=35 // pred_check_branch
          %598 = sbr.rel (%p596) target = $region72
        $region71: #{forward.3} parent=35 // pred_region
          %p599 = scmp.lt.s32.totalorder %s35, 1
          %s600 = scalar_select %p599, %s35, 1
          %s601 = scalar_lea.vmem %s9, %s600
        $region72: #{forward.3} parent=35 // pred_fallthru
          _
        // Predicated region
        $region73: #{forward.3} parent=35 // pred_check
          %p602 = pneg %p314
        $region74: #{forward.3} parent=35 // pred_check_branch
          %604 = sbr.rel (%p602) target = $region76
        $region75: #{forward.3} parent=35 // pred_region
          %p605 = scmp.lt.s32.totalorder %s35, 1
          %s606 = scalar_select %p605, %s35, 1
          %s607 = smul.addr %s606, 4
          %s608 = smul.addr %s607, 4
          %s609 = scalar_lea.vmem %s10, %s608
        $region76: #{forward.3} parent=35 // pred_fallthru
          _
        // Predicated region
        $region77: #{forward.3} parent=35 // pred_check
          %p610 = pneg %p340
        $region78: #{forward.3} parent=35 // pred_check_branch
          %612 = sbr.rel (%p610) target = $region80
        $region79: #{forward.3} parent=35 // pred_region
          %p613 = scmp.lt.s32.totalorder %s35, 1
          %s614 = scalar_select %p613, %s35, 1
          %s615 = scalar_lea.vmem %s11, %s614
        $region80: #{forward.3} parent=35 // pred_fallthru
          _
        // Predicated region
        $region81: #{forward.3} parent=35 // pred_check
          %p616 = pneg %p366
        $region82: #{forward.3} parent=35 // pred_check_branch
          %618 = sbr.rel (%p616) target = $region84
        $region83: #{forward.3} parent=35 // pred_region
          %p619 = scmp.lt.s32.totalorder %s35, 1
          %s620 = scalar_select %p619, %s35, 1
          %s621 = smul.addr %s620, 16
          %s622 = smul.addr %s621, 4
          %s623 = scalar_lea.vmem %s12, %s622
        $region84: #{forward.3} parent=35 // pred_fallthru
          _
        // Predicated region
        $region85: #{forward.3} parent=35 // pred_check
          %p624 = pneg %p392
        $region86: #{forward.3} parent=35 // pred_check_branch
          %626 = sbr.rel (%p624) target = $region88
        $region87: #{forward.3} parent=35 // pred_region
          %p627 = scmp.lt.s32.totalorder %s35, 1
          %s628 = scalar_select %p627, %s35, 1
          %s629 = scalar_lea.vmem %s13, %s628
        $region88: #{forward.3} parent=35 // pred_fallthru
          _
      $region36: #{forward.3} parent=5 // pred_fallthru
        _
      %p630 = scmp.le.s32.totalorder 1, %s27
      %p631 = scmp.lt.s32.totalorder %s27, 5
      %p632 = pnand %p630, %p631
      %p633 = pneg %p632
      // Predicated region
      $region89: #{forward.3} parent=5 // pred_check
        _
      $region90: #{forward.3} parent=5 // pred_check_branch
        %635 = sbr.rel (%p632) target = $region92
      $region91: #{forward.3} parent=5 // pred_region
        %s636 = ssub.s32 %s27, 1
        %p637 = scmp.lt.s32.totalorder %s36, 1
        %s638 = scalar_select %p637, %s36, 1
        %s639 = smul.addr %s638, 8
        %s640 = scalar_lea.vmem %s0, %s639
        %p641 = pneg %p65
        %p642 = pneg %p62
        %p643 = pneg %p86
        %p644 = pneg %p83
        %p645 = scmp.lt.s32.totalorder %s36, 1
        %s646 = scalar_select %p645, %s36, 1
        %s647 = smul.addr %s646, 8
        %s648 = scalar_lea.vmem %s2, %s647
        %p649 = pneg %p112
        %p650 = pneg %p109
        %p651 = scmp.lt.s32.totalorder %s37, 1
        %s652 = scalar_select %p651, %s37, 1
        %s653 = scalar_lea.vmem %s3, %s652
        %p654 = pneg %p138
        %p655 = pneg %p135
        %p656 = scmp.lt.s32.totalorder %s37, 1
        %s657 = scalar_select %p656, %s37, 1
        %s658 = scalar_lea.vmem %s4, %s657
        %p659 = pneg %p164
        %p660 = pneg %p161
        %p661 = scmp.lt.s32.totalorder %s37, 1
        %s662 = scalar_select %p661, %s37, 1
        %s663 = smul.addr %s662, 4
        %s664 = smul.addr %s663, 4
        %s665 = scalar_lea.vmem %s5, %s664
        %p666 = pneg %p190
        %p667 = pneg %p187
        %p668 = scmp.lt.s32.totalorder %s37, 1
        %s669 = scalar_select %p668, %s37, 1
        %s670 = smul.addr %s669, 4
        %s671 = smul.addr %s670, 4
        %s672 = scalar_lea.vmem %s6, %s671
        %p673 = pneg %p216
        %p674 = pneg %p213
        %p675 = scmp.lt.s32.totalorder %s37, 1
        %s676 = scalar_select %p675, %s37, 1
        %s677 = scalar_lea.vmem %s7, %s676
        %p678 = pneg %p242
        %p679 = pneg %p239
        %p680 = scmp.lt.s32.totalorder %s37, 1
        %s681 = scalar_select %p680, %s37, 1
        %s682 = scalar_lea.vmem %s8, %s681
        %p683 = pneg %p268
        %p684 = pneg %p265
        %p685 = scmp.lt.s32.totalorder %s37, 1
        %s686 = scalar_select %p685, %s37, 1
        %s687 = scalar_lea.vmem %s9, %s686
        %p688 = pneg %p294
        %p689 = pneg %p291
        %p690 = scmp.lt.s32.totalorder %s37, 1
        %s691 = scalar_select %p690, %s37, 1
        %s692 = smul.addr %s691, 4
        %s693 = smul.addr %s692, 4
        %s694 = scalar_lea.vmem %s10, %s693
        %p695 = pneg %p320
        %p696 = pneg %p317
        %p697 = scmp.lt.s32.totalorder %s37, 1
        %s698 = scalar_select %p697, %s37, 1
        %s699 = scalar_lea.vmem %s11, %s698
        %p700 = pneg %p346
        %p701 = pneg %p343
        %p702 = scmp.lt.s32.totalorder %s37, 1
        %s703 = scalar_select %p702, %s37, 1
        %s704 = smul.addr %s703, 16
        %s705 = smul.addr %s704, 4
        %s706 = scalar_lea.vmem %s12, %s705
        %p707 = pneg %p372
        %p708 = pneg %p369
        %p709 = scmp.lt.s32.totalorder %s37, 1
        %s710 = scalar_select %p709, %s37, 1
        %s711 = scalar_lea.vmem %s13, %s710
        %p712 = pneg %p398
        %p713 = pneg %p395
        %p714 = pneg %p419
        %p715 = pneg %p416
        %p716 = pneg %p440
        %p717 = pneg %p437
        %p718 = pneg %p461
        %p719 = pneg %p458
        %p720 = pneg %p482
        %p721 = pneg %p479
        %p722 = pneg %p508
        %p723 = pneg %p505
        %s724 = sand.u32 %s495, 1
        %s725 = scalar_lea.sflag [#allocation4], %s724
        %s726 = sand.u32 %s495, 1
        %s727 = smul.addr %s726, 24
        %s728 = scalar_lea.vmem [#allocation3], %s727
        %p729 = scmp.lt.s32.totalorder %s36, 1
        %s730 = scalar_select %p729, %s36, 1
        %s731 = smul.addr %s730, 8
        %s732 = scalar_lea.vmem %s0, %s731
        %p733 = scmp.lt.s32.totalorder %s36, 1
        %s734 = scalar_select %p733, %s36, 1
        %s735 = smul.addr %s734, 8
        %s736 = scalar_lea.vmem %s2, %s735
        %p737 = scmp.lt.s32.totalorder %s37, 1
        %s738 = scalar_select %p737, %s37, 1
        %s739 = scalar_lea.vmem %s3, %s738
        %p740 = scmp.lt.s32.totalorder %s37, 1
        %s741 = scalar_select %p740, %s37, 1
        %s742 = scalar_lea.vmem %s4, %s741
        %p743 = scmp.lt.s32.totalorder %s37, 1
        %s744 = scalar_select %p743, %s37, 1
        %s745 = smul.addr %s744, 4
        %s746 = smul.addr %s745, 4
        %s747 = scalar_lea.vmem %s5, %s746
        %p748 = scmp.lt.s32.totalorder %s37, 1
        %s749 = scalar_select %p748, %s37, 1
        %s750 = smul.addr %s749, 4
        %s751 = smul.addr %s750, 4
        %s752 = scalar_lea.vmem %s6, %s751
        %p753 = scmp.lt.s32.totalorder %s37, 1
        %s754 = scalar_select %p753, %s37, 1
        %s755 = scalar_lea.vmem %s7, %s754
        %p756 = scmp.lt.s32.totalorder %s37, 1
        %s757 = scalar_select %p756, %s37, 1
        %s758 = scalar_lea.vmem %s8, %s757
        %p759 = scmp.lt.s32.totalorder %s37, 1
        %s760 = scalar_select %p759, %s37, 1
        %s761 = scalar_lea.vmem %s9, %s760
        %p762 = scmp.lt.s32.totalorder %s37, 1
        %s763 = scalar_select %p762, %s37, 1
        %s764 = smul.addr %s763, 4
        %s765 = smul.addr %s764, 4
        %s766 = scalar_lea.vmem %s10, %s765
        %p767 = scmp.lt.s32.totalorder %s37, 1
        %s768 = scalar_select %p767, %s37, 1
        %s769 = scalar_lea.vmem %s11, %s768
        %p770 = scmp.lt.s32.totalorder %s37, 1
        %s771 = scalar_select %p770, %s37, 1
        %s772 = smul.addr %s771, 16
        %s773 = smul.addr %s772, 4
        %s774 = scalar_lea.vmem %s12, %s773
        %p775 = scmp.lt.s32.totalorder %s37, 1
        %s776 = scalar_select %p775, %s37, 1
        %s777 = scalar_lea.vmem %s13, %s776
        %p779 = scmp.eq.s32.totalorder %s37, 0
        // Predicated region
        $region93: #{forward.3} parent=91 // pred_check
          %p780 = pneg %p779
        $region94: #{forward.3} parent=91 // pred_check_branch
          %782 = sbr.rel (%p780) target = $region96
        $region95: #{forward.3} parent=91 // pred_region
          %v783 = vld [vmem:[%s732] sm:$0xff]
          %vm784 = vcmask 261120
          %785 = vst.msk [vmem:[#allocation2] sm:$0xff] %vm784, %v783
          %v786 = vld [vmem:[%s1] sm:$0x1]
          %v787 = vld [vmem:[%s736] sm:$0xff]
          %v789 = vlaneseq
          %v790 = vshrl.u32 %v789, 7
          %v791 = vsub.s32 0, %v790
          %v792 = vrot.slane %v786, %v791
          %v794 = vadd.f32 %v792, %v787
          %795 = vst.msk [vmem:[#allocation2 + $0x8] sm:$0xff] %vm784, %v794
        $region96: #{forward.3} parent=91 // pred_fallthru
          _
        %v796 = vld [vmem:[#allocation2] sm:$0xff]
        %v797 = vld [vmem:[#allocation2 + $0x8] sm:$0xff]
        %v798 = vld [vmem:[%s739] sm:$0x1]
        %v799 = vld [vmem:[%s742] sm:$0x1]
        %v800 = vld [vmem:[%s747] sm:$0xf]
        %v801 = vld [vmem:[%s747 + $0x4] sm:$0xf]
        %v802 = vld [vmem:[%s747 + $0x8] sm:$0xf]
        %v803 = vld [vmem:[%s747 + $0xc] sm:$0xf]
        %v804 = vld [vmem:[%s752] sm:$0xf]
        %v805 = vld [vmem:[%s752 + $0x4] sm:$0xf]
        %v806 = vld [vmem:[%s752 + $0x8] sm:$0xf]
        %v807 = vld [vmem:[%s752 + $0xc] sm:$0xf]
        %v808 = vld [vmem:[%s755] sm:$0x1]
        %v809 = vld [vmem:[%s758] sm:$0x1]
        %v810 = vld [vmem:[%s761] sm:$0x1]
        %v811 = vld [vmem:[%s766] sm:$0xf]
        %v812 = vld [vmem:[%s766 + $0x4] sm:$0xf]
        %v813 = vld [vmem:[%s766 + $0x8] sm:$0xf]
        %v814 = vld [vmem:[%s766 + $0xc] sm:$0xf]
        %v815 = vld [vmem:[%s769] sm:$0x1]
        %v816 = vld [vmem:[%s774] sm:$0xf]
        %v817 = vld [vmem:[%s774 + $0x4] sm:$0xf]
        %v818 = vld [vmem:[%s774 + $0x8] sm:$0xf]
        %v819 = vld [vmem:[%s774 + $0xc] sm:$0xf]
        %v820 = vld [vmem:[%s774 + $0x10] sm:$0xf]
        %v821 = vld [vmem:[%s774 + $0x14] sm:$0xf]
        %v822 = vld [vmem:[%s774 + $0x18] sm:$0xf]
        %v823 = vld [vmem:[%s774 + $0x1c] sm:$0xf]
        %v824 = vld [vmem:[%s774 + $0x20] sm:$0xf]
        %v825 = vld [vmem:[%s774 + $0x24] sm:$0xf]
        %v826 = vld [vmem:[%s774 + $0x28] sm:$0xf]
        %v827 = vld [vmem:[%s774 + $0x2c] sm:$0xf]
        %v828 = vld [vmem:[%s774 + $0x30] sm:$0xf]
        %v829 = vld [vmem:[%s774 + $0x34] sm:$0xf]
        %v830 = vld [vmem:[%s774 + $0x38] sm:$0xf]
        %v831 = vld [vmem:[%s774 + $0x3c] sm:$0xf]
        %v832 = vld [vmem:[%s777] sm:$0x1]
        %vm833 = vcmask 261120
        %v834 = vsel %vm833, %v796, 0.0
        %835 = vadd.xlane.f32.xlu0 %v834
        %v836 = vpop.xlane.xlu0 %835
        %v837 = vsel %vm833, %v797, 0.0
        %838 = vadd.xlane.f32.xlu0 %v837
        %v839 = vpop.xlane.xlu0 %838
        %v840 = vrcp.pop 32.0
        %v841 = vmul.f32 %v836, %v840
        %v842 = vmul.f32 %v839, %v840
        %v843 = vsub.f32 %v796, %v841
        %v844 = vsub.f32 %v797, %v842
        %v845 = vmul.f32 %v843, %v843
        %v846 = vmul.f32 %v844, %v844
        %v847 = vsel %vm833, %v845, 0.0
        %848 = vadd.xlane.f32.xlu0 %v847
        %v849 = vpop.xlane.xlu0 %848
        %v850 = vsel %vm833, %v846, 0.0
        %851 = vadd.xlane.f32.xlu0 %v850
        %v852 = vpop.xlane.xlu0 %851
        %v853 = vmul.f32 %v849, %v840
        %v854 = vmul.f32 %v852, %v840
        %v855 = vadd.f32 %v853, 1e-05
        %v856 = vadd.f32 %v854, 1e-05
        %v857 = vrsqrt.pop %v855
        %v858 = vrsqrt.pop %v856
        %v859 = vmul.f32 %v843, %v857
        %v860 = vmul.f32 %v844, %v858
        %v862 = vlaneseq
        %v863 = vshrl.u32 %v862, 7
        %v864 = vsub.s32 0, %v863
        %v865 = vrot.slane %v798, %v864
        %v867 = vmul.f32 %v859, %v865
        %v868 = vmul.f32 %v860, %v865
        %v870 = vlaneseq
        %v871 = vshrl.u32 %v870, 7
        %v872 = vsub.s32 0, %v871
        %v873 = vrot.slane %v799, %v872
        %v875 = vadd.f32 %v867, %v873
        %v876 = vadd.f32 %v868, %v873
        %v877 = vpack.c.bf16 %v876, %v875
        %v882 = vunpack.c.l.b16 %v800
        %v883 = vunpack.c.l.b16 %v801
        %v884 = vunpack.c.l.b16 %v802
        %v885 = vunpack.c.l.b16 %v803
        %v886 = vpack.c.b16 %v883, %v882
        %v887 = vpack.c.b16 %v885, %v884
        %v891 = vsel %vm833, %v877, 0
        %893 = vmatprep.subr.bf16.mxu0 0
        %894 = vmatpush1.bf16.msra.mxu0 0
        %895 = vmatprep.subr.bf16.mxu0 0
        %896 = vmatpush1.bf16.msra.mxu0 0
        %897 = vmatprep.subr.bf16.mxu0 0
        %898 = vmatpush1.bf16.msra.mxu0 0
        %899 = vmatprep.subr.bf16.mxu0 0
        %900 = vmatpush1.bf16.msra.mxu0 0
        %901 = vmatprep.subr.bf16.mxu0 0
        %902 = vmatpush1.bf16.msra.mxu0 0
        %903 = vmatprep.subr.bf16.mxu0 0
        %904 = vmatpush1.bf16.msra.mxu0 0
        %905 = vmatprep.subr.bf16.mxu0 0
        %906 = vmatpush1.bf16.msra.mxu0 %v887
        %907 = vmatprep.subr.bf16.mxu0 0
        %908 = vmatpush1.bf16.msra.mxu0 %v886
        %909 = vmatprep.subr.bf16.mxu0 0
        %910 = vmatpush2.bf16.msra.mxu0 0
        %911 = vmatprep.subr.bf16.mxu0 0
        %912 = vmatpush2.bf16.msra.mxu0 0
        %913 = vmatprep.subr.bf16.mxu0 0
        %914 = vmatpush2.bf16.msra.mxu0 0
        %915 = vmatprep.subr.bf16.mxu0 0
        %916 = vmatpush2.bf16.msra.mxu0 0
        %917 = vmatprep.subr.bf16.mxu0 0
        %918 = vmatpush2.bf16.msra.mxu0 0
        %919 = vmatprep.subr.bf16.mxu0 0
        %920 = vmatpush2.bf16.msra.mxu0 0
        %921 = vmatprep.subr.bf16.mxu0 0
        %922 = vmatpush2.bf16.msra.mxu0 0
        %923 = vmatprep.subr.bf16.mxu0 0
        %924 = vmatpush2.bf16.msra.mxu0 0
        %925 = vmatprep.mubr.bf16.mxu0 0
        %926 = vmatmul.mubr.bf16.gmra.mxu0 %v891
        %v927 = vpop.f32.mrf.mxu0
        %v928 = vadd.f32 0.0, %v927
        %v929 = vpop.f32.mrf.mxu0
        %v930 = vpop.f32.mrf.mxu0
        %v931 = vadd.f32 0.0, %v930
        %v932 = vpop.f32.mrf.mxu0
        %933 = vdwg.mxu0
        %v934 = vpack.c.bf16 %v931, %v928
        %936 = vrot.lane.b32.xlu0 %v934, 96
        %v937 = vpop.permute.xlu0 %936
        %vm938 = vcmask 64512
        %v940 = vsel %vm938, %v934, 0
        %v943 = vsel %vm938, %v937, 0
        %945 = vmatprep.subr.bf16.mxu0 0
        %946 = vmatpush1.bf16.xpose.msra.mxu0 0
        %947 = vmatprep.subr.bf16.mxu0 0
        %948 = vmatpush1.bf16.xpose.msra.mxu0 0
        %949 = vmatprep.subr.bf16.mxu0 0
        %950 = vmatpush1.bf16.xpose.msra.mxu0 0
        %951 = vmatprep.subr.bf16.mxu0 0
        %952 = vmatpush1.bf16.xpose.msra.mxu0 0
        %953 = vmatprep.subr.bf16.mxu0 0
        %954 = vmatpush1.bf16.xpose.msra.mxu0 0
        %955 = vmatprep.subr.bf16.mxu0 0
        %956 = vmatpush1.bf16.xpose.msra.mxu0 0
        %957 = vmatprep.subr.bf16.mxu0 0
        %958 = vmatpush1.bf16.xpose.msra.mxu0 0
        %959 = vmatprep.subr.bf16.mxu0 0
        %960 = vmatpush1.bf16.xpose.msra.mxu0 %v943
        %961 = vmatprep.subr.bf16.mxu0 0
        %962 = vmatpush2.bf16.xpose.msra.mxu0 0
        %963 = vmatprep.subr.bf16.mxu0 0
        %964 = vmatpush2.bf16.xpose.msra.mxu0 0
        %965 = vmatprep.subr.bf16.mxu0 0
        %966 = vmatpush2.bf16.xpose.msra.mxu0 0
        %967 = vmatprep.subr.bf16.mxu0 0
        %968 = vmatpush2.bf16.xpose.msra.mxu0 0
        %969 = vmatprep.subr.bf16.mxu0 0
        %970 = vmatpush2.bf16.xpose.msra.mxu0 0
        %971 = vmatprep.subr.bf16.mxu0 0
        %972 = vmatpush2.bf16.xpose.msra.mxu0 0
        %973 = vmatprep.subr.bf16.mxu0 0
        %974 = vmatpush2.bf16.xpose.msra.mxu0 0
        %975 = vmatprep.subr.bf16.mxu0 0
        %976 = vmatpush2.bf16.xpose.msra.mxu0 0
        %977 = vmatprep.mubr.bf16.mxu0 0
        %978 = vmatmul.mubr.bf16.gmra.mxu0 %v940
        %v979 = vpop.f32.mrf.mxu0
        %v980 = vadd.f32 0.0, %v979
        %v981 = vpop.f32.mrf.mxu0
        %v982 = vpop.f32.mrf.mxu0
        %v983 = vadd.f32 0.0, %v982
        %v984 = vpop.f32.mrf.mxu0
        %985 = vdwg.mxu0
        %vm986 = vcmask 130048
        %v987 = vsel %vm986, %v980, -inf
        %988 = vmax.xlane.f32.xlu0 %v987
        %v989 = vpop.xlane.xlu0 %988
        %v990 = vsel %vm986, %v983, -inf
        %991 = vmax.xlane.f32.xlu0 %v990
        %v992 = vpop.xlane.xlu0 %991
        %v993 = vsub.f32 %v980, %v989
        %v994 = vsub.f32 %v983, %v992
        %v995 = vmul.f32 %v993, 1.442695
        %v996 = vpow.pop %v995
        %v997 = vmul.f32 %v994, 1.442695
        %v998 = vpow.pop %v997
        %v999 = vsel %vm986, %v996, 0.0
        %1000 = vadd.xlane.f32.xlu0 %v999
        %v1001 = vpop.xlane.xlu0 %1000
        %v1002 = vsel %vm986, %v998, 0.0
        %1003 = vadd.xlane.f32.xlu0 %v1002
        %v1004 = vpop.xlane.xlu0 %1003
        %v1005 = vrcp.pop %v1001
        %v1006 = vrcp.pop %v1004
        %v1007 = vmul.f32 %v996, %v1005
        %v1008 = vmul.f32 %v998, %v1006
        %v1009 = vpack.c.bf16 %v1008, %v1007
        %1010 = vrot.lane.b32.xlu0 %v934, 64
        %v1011 = vpop.permute.xlu0 %1010
        %v1014 = vsel %vm986, %v1009, 0
        %1016 = vmatprep.subr.bf16.mxu0 0
        %1017 = vmatpush1.bf16.msra.mxu0 0
        %1018 = vmatprep.subr.bf16.mxu0 0
        %1019 = vmatpush1.bf16.msra.mxu0 0
        %1020 = vmatprep.subr.bf16.mxu0 0
        %1021 = vmatpush1.bf16.msra.mxu0 0
        %1022 = vmatprep.subr.bf16.mxu0 0
        %1023 = vmatpush1.bf16.msra.mxu0 0
        %1024 = vmatprep.subr.bf16.mxu0 0
        %1025 = vmatpush1.bf16.msra.mxu0 0
        %1026 = vmatprep.subr.bf16.mxu0 0
        %1027 = vmatpush1.bf16.msra.mxu0 0
        %1028 = vmatprep.subr.bf16.mxu0 0
        %1029 = vmatpush1.bf16.msra.mxu0 0
        %1030 = vmatprep.subr.bf16.mxu0 0
        %1031 = vmatpush1.bf16.msra.mxu0 %v1011
        %1032 = vmatprep.subr.bf16.mxu0 0
        %1033 = vmatpush2.bf16.msra.mxu0 0
        %1034 = vmatprep.subr.bf16.mxu0 0
        %1035 = vmatpush2.bf16.msra.mxu0 0
        %1036 = vmatprep.subr.bf16.mxu0 0
        %1037 = vmatpush2.bf16.msra.mxu0 0
        %1038 = vmatprep.subr.bf16.mxu0 0
        %1039 = vmatpush2.bf16.msra.mxu0 0
        %1040 = vmatprep.subr.bf16.mxu0 0
        %1041 = vmatpush2.bf16.msra.mxu0 0
        %1042 = vmatprep.subr.bf16.mxu0 0
        %1043 = vmatpush2.bf16.msra.mxu0 0
        %1044 = vmatprep.subr.bf16.mxu0 0
        %1045 = vmatpush2.bf16.msra.mxu0 0
        %1046 = vmatprep.subr.bf16.mxu0 0
        %1047 = vmatpush2.bf16.msra.mxu0 0
        %1048 = vmatprep.mubr.bf16.mxu0 0
        %1049 = vmatmul.mubr.bf16.gmra.mxu0 %v1014
        %v1050 = vpop.f32.mrf.mxu0
        %v1051 = vadd.f32 0.0, %v1050
        %v1052 = vpop.f32.mrf.mxu0
        %v1053 = vpop.f32.mrf.mxu0
        %v1054 = vadd.f32 0.0, %v1053
        %v1055 = vpop.f32.mrf.mxu0
        %1056 = vdwg.mxu0
        %1057 = vrot.lane.b32.xlu0 %v934, 120
        %v1058 = vpop.permute.xlu0 %1057
        %1059 = vrot.lane.b32.xlu0 %v934, 88
        %v1060 = vpop.permute.xlu0 %1059
        %v1062 = vsel %vm938, %v1058, 0
        %v1065 = vsel %vm938, %v1060, 0
        %1067 = vmatprep.subr.bf16.mxu0 0
        %1068 = vmatpush1.bf16.xpose.msra.mxu0 0
        %1069 = vmatprep.subr.bf16.mxu0 0
        %1070 = vmatpush1.bf16.xpose.msra.mxu0 0
        %1071 = vmatprep.subr.bf16.mxu0 0
        %1072 = vmatpush1.bf16.xpose.msra.mxu0 0
        %1073 = vmatprep.subr.bf16.mxu0 0
        %1074 = vmatpush1.bf16.xpose.msra.mxu0 0
        %1075 = vmatprep.subr.bf16.mxu0 0
        %1076 = vmatpush1.bf16.xpose.msra.mxu0 0
        %1077 = vmatprep.subr.bf16.mxu0 0
        %1078 = vmatpush1.bf16.xpose.msra.mxu0 0
        %1079 = vmatprep.subr.bf16.mxu0 0
        %1080 = vmatpush1.bf16.xpose.msra.mxu0 0
        %1081 = vmatprep.subr.bf16.mxu0 0
        %1082 = vmatpush1.bf16.xpose.msra.mxu0 %v1065
        %1083 = vmatprep.subr.bf16.mxu0 0
        %1084 = vmatpush2.bf16.xpose.msra.mxu0 0
        %1085 = vmatprep.subr.bf16.mxu0 0
        %1086 = vmatpush2.bf16.xpose.msra.mxu0 0
        %1087 = vmatprep.subr.bf16.mxu0 0
        %1088 = vmatpush2.bf16.xpose.msra.mxu0 0
        %1089 = vmatprep.subr.bf16.mxu0 0
        %1090 = vmatpush2.bf16.xpose.msra.mxu0 0
        %1091 = vmatprep.subr.bf16.mxu0 0
        %1092 = vmatpush2.bf16.xpose.msra.mxu0 0
        %1093 = vmatprep.subr.bf16.mxu0 0
        %1094 = vmatpush2.bf16.xpose.msra.mxu0 0
        %1095 = vmatprep.subr.bf16.mxu0 0
        %1096 = vmatpush2.bf16.xpose.msra.mxu0 0
        %1097 = vmatprep.subr.bf16.mxu0 0
        %1098 = vmatpush2.bf16.xpose.msra.mxu0 0
        %1099 = vmatprep.mubr.bf16.mxu0 0
        %1100 = vmatmul.mubr.bf16.gmra.mxu0 %v1062
        %v1101 = vpop.f32.mrf.mxu0
        %v1102 = vadd.f32 0.0, %v1101
        %v1103 = vpop.f32.mrf.mxu0
        %v1104 = vpop.f32.mrf.mxu0
        %v1105 = vadd.f32 0.0, %v1104
        %v1106 = vpop.f32.mrf.mxu0
        %1107 = vdwg.mxu0
        %v1108 = vsel %vm986, %v1102, -inf
        %1109 = vmax.xlane.f32.xlu0 %v1108
        %v1110 = vpop.xlane.xlu0 %1109
        %v1111 = vsel %vm986, %v1105, -inf
        %1112 = vmax.xlane.f32.xlu0 %v1111
        %v1113 = vpop.xlane.xlu0 %1112
        %v1114 = vsub.f32 %v1102, %v1110
        %v1115 = vsub.f32 %v1105, %v1113
        %v1116 = vmul.f32 %v1114, 1.442695
        %v1117 = vpow.pop %v1116
        %v1118 = vmul.f32 %v1115, 1.442695
        %v1119 = vpow.pop %v1118
        %v1120 = vsel %vm986, %v1117, 0.0
        %1121 = vadd.xlane.f32.xlu0 %v1120
        %v1122 = vpop.xlane.xlu0 %1121
        %v1123 = vsel %vm986, %v1119, 0.0
        %1124 = vadd.xlane.f32.xlu0 %v1123
        %v1125 = vpop.xlane.xlu0 %1124
        %v1126 = vrcp.pop %v1122
        %v1127 = vrcp.pop %v1125
        %v1128 = vmul.f32 %v1117, %v1126
        %v1129 = vmul.f32 %v1119, %v1127
        %v1130 = vpack.c.bf16 %v1129, %v1128
        %1131 = vrot.lane.b32.xlu0 %v934, 56
        %v1132 = vpop.permute.xlu0 %1131
        %v1135 = vsel %vm986, %v1130, 0
        %1137 = vmatprep.subr.bf16.mxu0 0
        %1138 = vmatpush1.bf16.msra.mxu0 0
        %1139 = vmatprep.subr.bf16.mxu0 0
        %1140 = vmatpush1.bf16.msra.mxu0 0
        %1141 = vmatprep.subr.bf16.mxu0 0
        %1142 = vmatpush1.bf16.msra.mxu0 0
        %1143 = vmatprep.subr.bf16.mxu0 0
        %1144 = vmatpush1.bf16.msra.mxu0 0
        %1145 = vmatprep.subr.bf16.mxu0 0
        %1146 = vmatpush1.bf16.msra.mxu0 0
        %1147 = vmatprep.subr.bf16.mxu0 0
        %1148 = vmatpush1.bf16.msra.mxu0 0
        %1149 = vmatprep.subr.bf16.mxu0 0
        %1150 = vmatpush1.bf16.msra.mxu0 0
        %1151 = vmatprep.subr.bf16.mxu0 0
        %1152 = vmatpush1.bf16.msra.mxu0 %v1132
        %1153 = vmatprep.subr.bf16.mxu0 0
        %1154 = vmatpush2.bf16.msra.mxu0 0
        %1155 = vmatprep.subr.bf16.mxu0 0
        %1156 = vmatpush2.bf16.msra.mxu0 0
        %1157 = vmatprep.subr.bf16.mxu0 0
        %1158 = vmatpush2.bf16.msra.mxu0 0
        %1159 = vmatprep.subr.bf16.mxu0 0
        %1160 = vmatpush2.bf16.msra.mxu0 0
        %1161 = vmatprep.subr.bf16.mxu0 0
        %1162 = vmatpush2.bf16.msra.mxu0 0
        %1163 = vmatprep.subr.bf16.mxu0 0
        %1164 = vmatpush2.bf16.msra.mxu0 0
        %1165 = vmatprep.subr.bf16.mxu0 0
        %1166 = vmatpush2.bf16.msra.mxu0 0
        %1167 = vmatprep.subr.bf16.mxu0 0
        %1168 = vmatpush2.bf16.msra.mxu0 0
        %1169 = vmatprep.mubr.bf16.mxu0 0
        %1170 = vmatmul.mubr.bf16.gmra.mxu0 %v1135
        %v1171 = vpop.f32.mrf.mxu0
        %v1172 = vadd.f32 0.0, %v1171
        %v1173 = vpop.f32.mrf.mxu0
        %v1174 = vpop.f32.mrf.mxu0
        %v1175 = vadd.f32 0.0, %v1174
        %v1176 = vpop.f32.mrf.mxu0
        %1177 = vdwg.mxu0
        %1178 = vrot.lane.b32.xlu0 %v934, 112
        %v1179 = vpop.permute.xlu0 %1178
        %1180 = vrot.lane.b32.xlu0 %v934, 80
        %v1181 = vpop.permute.xlu0 %1180
        %v1183 = vsel %vm938, %v1179, 0
        %v1186 = vsel %vm938, %v1181, 0
        %1188 = vmatprep.subr.bf16.mxu0 0
        %1189 = vmatpush1.bf16.xpose.msra.mxu0 0
        %1190 = vmatprep.subr.bf16.mxu0 0
        %1191 = vmatpush1.bf16.xpose.msra.mxu0 0
        %1192 = vmatprep.subr.bf16.mxu0 0
        %1193 = vmatpush1.bf16.xpose.msra.mxu0 0
        %1194 = vmatprep.subr.bf16.mxu0 0
        %1195 = vmatpush1.bf16.xpose.msra.mxu0 0
        %1196 = vmatprep.subr.bf16.mxu0 0
        %1197 = vmatpush1.bf16.xpose.msra.mxu0 0
        %1198 = vmatprep.subr.bf16.mxu0 0
        %1199 = vmatpush1.bf16.xpose.msra.mxu0 0
        %1200 = vmatprep.subr.bf16.mxu0 0
        %1201 = vmatpush1.bf16.xpose.msra.mxu0 0
        %1202 = vmatprep.subr.bf16.mxu0 0
        %1203 = vmatpush1.bf16.xpose.msra.mxu0 %v1186
        %1204 = vmatprep.subr.bf16.mxu0 0
        %1205 = vmatpush2.bf16.xpose.msra.mxu0 0
        %1206 = vmatprep.subr.bf16.mxu0 0
        %1207 = vmatpush2.bf16.xpose.msra.mxu0 0
        %1208 = vmatprep.subr.bf16.mxu0 0
        %1209 = vmatpush2.bf16.xpose.msra.mxu0 0
        %1210 = vmatprep.subr.bf16.mxu0 0
        %1211 = vmatpush2.bf16.xpose.msra.mxu0 0
        %1212 = vmatprep.subr.bf16.mxu0 0
        %1213 = vmatpush2.bf16.xpose.msra.mxu0 0
        %1214 = vmatprep.subr.bf16.mxu0 0
        %1215 = vmatpush2.bf16.xpose.msra.mxu0 0
        %1216 = vmatprep.subr.bf16.mxu0 0
        %1217 = vmatpush2.bf16.xpose.msra.mxu0 0
        %1218 = vmatprep.subr.bf16.mxu0 0
        %1219 = vmatpush2.bf16.xpose.msra.mxu0 0
        %1220 = vmatprep.mubr.bf16.mxu0 0
        %1221 = vmatmul.mubr.bf16.gmra.mxu0 %v1183
        %v1222 = vpop.f32.mrf.mxu0
        %v1223 = vadd.f32 0.0, %v1222
        %v1224 = vpop.f32.mrf.mxu0
        %v1225 = vpop.f32.mrf.mxu0
        %v1226 = vadd.f32 0.0, %v1225
        %v1227 = vpop.f32.mrf.mxu0
        %1228 = vdwg.mxu0
        %v1229 = vsel %vm986, %v1223, -inf
        %1230 = vmax.xlane.f32.xlu0 %v1229
        %v1231 = vpop.xlane.xlu0 %1230
        %v1232 = vsel %vm986, %v1226, -inf
        %1233 = vmax.xlane.f32.xlu0 %v1232
        %v1234 = vpop.xlane.xlu0 %1233
        %v1235 = vsub.f32 %v1223, %v1231
        %v1236 = vsub.f32 %v1226, %v1234
        %v1237 = vmul.f32 %v1235, 1.442695
        %v1238 = vpow.pop %v1237
        %v1239 = vmul.f32 %v1236, 1.442695
        %v1240 = vpow.pop %v1239
        %v1241 = vsel %vm986, %v1238, 0.0
        %1242 = vadd.xlane.f32.xlu0 %v1241
        %v1243 = vpop.xlane.xlu0 %1242
        %v1244 = vsel %vm986, %v1240, 0.0
        %1245 = vadd.xlane.f32.xlu0 %v1244
        %v1246 = vpop.xlane.xlu0 %1245
        %v1247 = vrcp.pop %v1243
        %v1248 = vrcp.pop %v1246
        %v1249 = vmul.f32 %v1238, %v1247
        %v1250 = vmul.f32 %v1240, %v1248
        %v1251 = vpack.c.bf16 %v1250, %v1249
        %1252 = vrot.lane.b32.xlu0 %v934, 48
        %v1253 = vpop.permute.xlu0 %1252
        %v1256 = vsel %vm986, %v1251, 0
        %1258 = vmatprep.subr.bf16.mxu0 0
        %1259 = vmatpush1.bf16.msra.mxu0 0
        %1260 = vmatprep.subr.bf16.mxu0 0
        %1261 = vmatpush1.bf16.msra.mxu0 0
        %1262 = vmatprep.subr.bf16.mxu0 0
        %1263 = vmatpush1.bf16.msra.mxu0 0
        %1264 = vmatprep.subr.bf16.mxu0 0
        %1265 = vmatpush1.bf16.msra.mxu0 0
        %1266 = vmatprep.subr.bf16.mxu0 0
        %1267 = vmatpush1.bf16.msra.mxu0 0
        %1268 = vmatprep.subr.bf16.mxu0 0
        %1269 = vmatpush1.bf16.msra.mxu0 0
        %1270 = vmatprep.subr.bf16.mxu0 0
        %1271 = vmatpush1.bf16.msra.mxu0 0
        %1272 = vmatprep.subr.bf16.mxu0 0
        %1273 = vmatpush1.bf16.msra.mxu0 %v1253
        %1274 = vmatprep.subr.bf16.mxu0 0
        %1275 = vmatpush2.bf16.msra.mxu0 0
        %1276 = vmatprep.subr.bf16.mxu0 0
        %1277 = vmatpush2.bf16.msra.mxu0 0
        %1278 = vmatprep.subr.bf16.mxu0 0
        %1279 = vmatpush2.bf16.msra.mxu0 0
        %1280 = vmatprep.subr.bf16.mxu0 0
        %1281 = vmatpush2.bf16.msra.mxu0 0
        %1282 = vmatprep.subr.bf16.mxu0 0
        %1283 = vmatpush2.bf16.msra.mxu0 0
        %1284 = vmatprep.subr.bf16.mxu0 0
        %1285 = vmatpush2.bf16.msra.mxu0 0
        %1286 = vmatprep.subr.bf16.mxu0 0
        %1287 = vmatpush2.bf16.msra.mxu0 0
        %1288 = vmatprep.subr.bf16.mxu0 0
        %1289 = vmatpush2.bf16.msra.mxu0 0
        %1290 = vmatprep.mubr.bf16.mxu0 0
        %1291 = vmatmul.mubr.bf16.gmra.mxu0 %v1256
        %v1292 = vpop.f32.mrf.mxu0
        %v1293 = vadd.f32 0.0, %v1292
        %v1294 = vpop.f32.mrf.mxu0
        %v1295 = vpop.f32.mrf.mxu0
        %v1296 = vadd.f32 0.0, %v1295
        %v1297 = vpop.f32.mrf.mxu0
        %1298 = vdwg.mxu0
        %1299 = vrot.lane.b32.xlu0 %v934, 104
        %v1300 = vpop.permute.xlu0 %1299
        %1301 = vrot.lane.b32.xlu0 %v934, 72
        %v1302 = vpop.permute.xlu0 %1301
        %v1304 = vsel %vm938, %v1300, 0
        %v1307 = vsel %vm938, %v1302, 0
        %1309 = vmatprep.subr.bf16.mxu0 0
        %1310 = vmatpush1.bf16.xpose.msra.mxu0 0
        %1311 = vmatprep.subr.bf16.mxu0 0
        %1312 = vmatpush1.bf16.xpose.msra.mxu0 0
        %1313 = vmatprep.subr.bf16.mxu0 0
        %1314 = vmatpush1.bf16.xpose.msra.mxu0 0
        %1315 = vmatprep.subr.bf16.mxu0 0
        %1316 = vmatpush1.bf16.xpose.msra.mxu0 0
        %1317 = vmatprep.subr.bf16.mxu0 0
        %1318 = vmatpush1.bf16.xpose.msra.mxu0 0
        %1319 = vmatprep.subr.bf16.mxu0 0
        %1320 = vmatpush1.bf16.xpose.msra.mxu0 0
        %1321 = vmatprep.subr.bf16.mxu0 0
        %1322 = vmatpush1.bf16.xpose.msra.mxu0 0
        %1323 = vmatprep.subr.bf16.mxu0 0
        %1324 = vmatpush1.bf16.xpose.msra.mxu0 %v1307
        %1325 = vmatprep.subr.bf16.mxu0 0
        %1326 = vmatpush2.bf16.xpose.msra.mxu0 0
        %1327 = vmatprep.subr.bf16.mxu0 0
        %1328 = vmatpush2.bf16.xpose.msra.mxu0 0
        %1329 = vmatprep.subr.bf16.mxu0 0
        %1330 = vmatpush2.bf16.xpose.msra.mxu0 0
        %1331 = vmatprep.subr.bf16.mxu0 0
        %1332 = vmatpush2.bf16.xpose.msra.mxu0 0
        %1333 = vmatprep.subr.bf16.mxu0 0
        %1334 = vmatpush2.bf16.xpose.msra.mxu0 0
        %1335 = vmatprep.subr.bf16.mxu0 0
        %1336 = vmatpush2.bf16.xpose.msra.mxu0 0
        %1337 = vmatprep.subr.bf16.mxu0 0
        %1338 = vmatpush2.bf16.xpose.msra.mxu0 0
        %1339 = vmatprep.subr.bf16.mxu0 0
        %1340 = vmatpush2.bf16.xpose.msra.mxu0 0
        %1341 = vmatprep.mubr.bf16.mxu0 0
        %1342 = vmatmul.mubr.bf16.gmra.mxu0 %v1304
        %v1343 = vpop.f32.mrf.mxu0
        %v1344 = vadd.f32 0.0, %v1343
        %v1345 = vpop.f32.mrf.mxu0
        %v1346 = vpop.f32.mrf.mxu0
        %v1347 = vadd.f32 0.0, %v1346
        %v1348 = vpop.f32.mrf.mxu0
        %1349 = vdwg.mxu0
        %v1350 = vsel %vm986, %v1344, -inf
        %1351 = vmax.xlane.f32.xlu0 %v1350
        %v1352 = vpop.xlane.xlu0 %1351
        %v1353 = vsel %vm986, %v1347, -inf
        %1354 = vmax.xlane.f32.xlu0 %v1353
        %v1355 = vpop.xlane.xlu0 %1354
        %v1356 = vsub.f32 %v1344, %v1352
        %v1357 = vsub.f32 %v1347, %v1355
        %v1358 = vmul.f32 %v1356, 1.442695
        %v1359 = vpow.pop %v1358
        %v1360 = vmul.f32 %v1357, 1.442695
        %v1361 = vpow.pop %v1360
        %v1362 = vsel %vm986, %v1359, 0.0
        %1363 = vadd.xlane.f32.xlu0 %v1362
        %v1364 = vpop.xlane.xlu0 %1363
        %v1365 = vsel %vm986, %v1361, 0.0
        %1366 = vadd.xlane.f32.xlu0 %v1365
        %v1367 = vpop.xlane.xlu0 %1366
        %v1368 = vrcp.pop %v1364
        %v1369 = vrcp.pop %v1367
        %v1370 = vmul.f32 %v1359, %v1368
        %v1371 = vmul.f32 %v1361, %v1369
        %v1372 = vpack.c.bf16 %v1371, %v1370
        %1373 = vrot.lane.b32.xlu0 %v934, 40
        %v1374 = vpop.permute.xlu0 %1373
        %v1377 = vsel %vm986, %v1372, 0
        %1379 = vmatprep.subr.bf16.mxu0 0
        %1380 = vmatpush1.bf16.msra.mxu0 0
        %1381 = vmatprep.subr.bf16.mxu0 0
        %1382 = vmatpush1.bf16.msra.mxu0 0
        %1383 = vmatprep.subr.bf16.mxu0 0
        %1384 = vmatpush1.bf16.msra.mxu0 0
        %1385 = vmatprep.subr.bf16.mxu0 0
        %1386 = vmatpush1.bf16.msra.mxu0 0
        %1387 = vmatprep.subr.bf16.mxu0 0
        %1388 = vmatpush1.bf16.msra.mxu0 0
        %1389 = vmatprep.subr.bf16.mxu0 0
        %1390 = vmatpush1.bf16.msra.mxu0 0
        %1391 = vmatprep.subr.bf16.mxu0 0
        %1392 = vmatpush1.bf16.msra.mxu0 0
        %1393 = vmatprep.subr.bf16.mxu0 0
        %1394 = vmatpush1.bf16.msra.mxu0 %v1374
        %1395 = vmatprep.subr.bf16.mxu0 0
        %1396 = vmatpush2.bf16.msra.mxu0 0
        %1397 = vmatprep.subr.bf16.mxu0 0
        %1398 = vmatpush2.bf16.msra.mxu0 0
        %1399 = vmatprep.subr.bf16.mxu0 0
        %1400 = vmatpush2.bf16.msra.mxu0 0
        %1401 = vmatprep.subr.bf16.mxu0 0
        %1402 = vmatpush2.bf16.msra.mxu0 0
        %1403 = vmatprep.subr.bf16.mxu0 0
        %1404 = vmatpush2.bf16.msra.mxu0 0
        %1405 = vmatprep.subr.bf16.mxu0 0
        %1406 = vmatpush2.bf16.msra.mxu0 0
        %1407 = vmatprep.subr.bf16.mxu0 0
        %1408 = vmatpush2.bf16.msra.mxu0 0
        %1409 = vmatprep.subr.bf16.mxu0 0
        %1410 = vmatpush2.bf16.msra.mxu0 0
        %1411 = vmatprep.mubr.bf16.mxu0 0
        %1412 = vmatmul.mubr.bf16.gmra.mxu0 %v1377
        %v1413 = vpop.f32.mrf.mxu0
        %v1414 = vadd.f32 0.0, %v1413
        %v1415 = vpop.f32.mrf.mxu0
        %v1416 = vpop.f32.mrf.mxu0
        %v1417 = vadd.f32 0.0, %v1416
        %v1418 = vpop.f32.mrf.mxu0
        %1419 = vdwg.mxu0
        %1422 = vrot.lane.b32.xlu0 %v1172, 8
        %v1423 = vpop.permute.xlu0 %1422
        %1424 = vrot.lane.b32.xlu0 %v1175, 8
        %v1425 = vpop.permute.xlu0 %1424
        %1430 = vrot.lane.b32.xlu0 %v1293, 16
        %v1431 = vpop.permute.xlu0 %1430
        %1432 = vrot.lane.b32.xlu0 %v1296, 16
        %v1433 = vpop.permute.xlu0 %1432
        %1438 = vrot.lane.b32.xlu0 %v1414, 24
        %v1439 = vpop.permute.xlu0 %1438
        %1440 = vrot.lane.b32.xlu0 %v1417, 24
        %v1441 = vpop.permute.xlu0 %1440
        %v1444 = vsel %vm938, %v1051, %v1423
        %v1445 = vsel %vm938, %v1054, %v1425
        %v1446 = vsel %vm986, %v1444, %v1431
        %v1447 = vsel %vm986, %v1445, %v1433
        %vm1448 = vcmask 195584
        %v1449 = vsel %vm1448, %v1446, %v1439
        %v1450 = vsel %vm1448, %v1447, %v1441
        %v1451 = vpack.c.bf16 %v1450, %v1449
        %v1456 = vunpack.c.l.b16 %v804
        %v1457 = vunpack.c.l.b16 %v805
        %v1458 = vunpack.c.l.b16 %v806
        %v1459 = vunpack.c.l.b16 %v807
        %v1460 = vpack.c.b16 %v1457, %v1456
        %v1461 = vpack.c.b16 %v1459, %v1458
        %v1465 = vsel %vm833, %v1451, 0
        %1467 = vmatprep.subr.bf16.mxu0 0
        %1468 = vmatpush1.bf16.msra.mxu0 0
        %1469 = vmatprep.subr.bf16.mxu0 0
        %1470 = vmatpush1.bf16.msra.mxu0 0
        %1471 = vmatprep.subr.bf16.mxu0 0
        %1472 = vmatpush1.bf16.msra.mxu0 0
        %1473 = vmatprep.subr.bf16.mxu0 0
        %1474 = vmatpush1.bf16.msra.mxu0 0
        %1475 = vmatprep.subr.bf16.mxu0 0
        %1476 = vmatpush1.bf16.msra.mxu0 0
        %1477 = vmatprep.subr.bf16.mxu0 0
        %1478 = vmatpush1.bf16.msra.mxu0 0
        %1479 = vmatprep.subr.bf16.mxu0 0
        %1480 = vmatpush1.bf16.msra.mxu0 %v1461
        %1481 = vmatprep.subr.bf16.mxu0 0
        %1482 = vmatpush1.bf16.msra.mxu0 %v1460
        %1483 = vmatprep.subr.bf16.mxu0 0
        %1484 = vmatpush2.bf16.msra.mxu0 0
        %1485 = vmatprep.subr.bf16.mxu0 0
        %1486 = vmatpush2.bf16.msra.mxu0 0
        %1487 = vmatprep.subr.bf16.mxu0 0
        %1488 = vmatpush2.bf16.msra.mxu0 0
        %1489 = vmatprep.subr.bf16.mxu0 0
        %1490 = vmatpush2.bf16.msra.mxu0 0
        %1491 = vmatprep.subr.bf16.mxu0 0
        %1492 = vmatpush2.bf16.msra.mxu0 0
        %1493 = vmatprep.subr.bf16.mxu0 0
        %1494 = vmatpush2.bf16.msra.mxu0 0
        %1495 = vmatprep.subr.bf16.mxu0 0
        %1496 = vmatpush2.bf16.msra.mxu0 0
        %1497 = vmatprep.subr.bf16.mxu0 0
        %1498 = vmatpush2.bf16.msra.mxu0 0
        %1499 = vmatprep.mubr.bf16.mxu0 0
        %1500 = vmatmul.mubr.bf16.gmra.mxu0 %v1465
        %v1501 = vpop.f32.mrf.mxu0
        %v1502 = vadd.f32 0.0, %v1501
        %v1503 = vpop.f32.mrf.mxu0
        %v1504 = vpop.f32.mrf.mxu0
        %v1505 = vadd.f32 0.0, %v1504
        %v1506 = vpop.f32.mrf.mxu0
        %1507 = vdwg.mxu0
        %v1508 = vadd.f32 %v796, %v1502
        %v1509 = vadd.f32 %v797, %v1505
        %v1511 = vlaneseq
        %v1512 = vshrl.u32 %v1511, 7
        %v1513 = vsub.s32 0, %v1512
        %v1514 = vrot.slane %v808, %v1513
        %v1516 = vadd.f32 %v1508, %v1514
        %v1517 = vadd.f32 %v1509, %v1514
        %v1518 = vsel %vm833, %v1516, 0.0
        %1519 = vadd.xlane.f32.xlu0 %v1518
        %v1520 = vpop.xlane.xlu0 %1519
        %v1521 = vsel %vm833, %v1517, 0.0
        %1522 = vadd.xlane.f32.xlu0 %v1521
        %v1523 = vpop.xlane.xlu0 %1522
        %v1524 = vmul.f32 %v1520, %v840
        %v1525 = vmul.f32 %v1523, %v840
        %v1526 = vsub.f32 %v1516, %v1524
        %v1527 = vsub.f32 %v1517, %v1525
        %v1528 = vmul.f32 %v1526, %v1526
        %v1529 = vmul.f32 %v1527, %v1527
        %v1530 = vsel %vm833, %v1528, 0.0
        %1531 = vadd.xlane.f32.xlu0 %v1530
        %v1532 = vpop.xlane.xlu0 %1531
        %v1533 = vsel %vm833, %v1529, 0.0
        %1534 = vadd.xlane.f32.xlu0 %v1533
        %v1535 = vpop.xlane.xlu0 %1534
        %v1536 = vmul.f32 %v1532, %v840
        %v1537 = vmul.f32 %v1535, %v840
        %v1538 = vadd.f32 %v1536, 1e-05
        %v1539 = vadd.f32 %v1537, 1e-05
        %v1540 = vrsqrt.pop %v1538
        %v1541 = vrsqrt.pop %v1539
        %v1542 = vmul.f32 %v1526, %v1540
        %v1543 = vmul.f32 %v1527, %v1541
        %v1545 = vlaneseq
        %v1546 = vshrl.u32 %v1545, 7
        %v1547 = vsub.s32 0, %v1546
        %v1548 = vrot.slane %v809, %v1547
        %v1550 = vmul.f32 %v1542, %v1548
        %v1551 = vmul.f32 %v1543, %v1548
        %v1553 = vlaneseq
        %v1554 = vshrl.u32 %v1553, 7
        %v1555 = vsub.s32 0, %v1554
        %v1556 = vrot.slane %v810, %v1555
        %v1558 = vadd.f32 %v1550, %v1556
        %v1559 = vadd.f32 %v1551, %v1556
        %v1560 = vpack.c.bf16 %v1559, %v1558
        %v1562 = vlaneseq
        %v1563 = vshrl.u32 %v1562, 7
        %v1564 = vsub.s32 0, %v1563
        %v1565 = vrot.slane %v815, %v1564
        %v1571 = vunpack.c.l.b16 %v811
        %v1572 = vunpack.c.l.b16 %v812
        %v1573 = vunpack.c.l.b16 %v813
        %v1574 = vunpack.c.l.b16 %v814
        %v1575 = vpack.c.b16 %v1572, %v1571
        %v1576 = vpack.c.b16 %v1574, %v1573
        %v1580 = vsel %vm833, %v1560, 0
        %1582 = vmatprep.subr.bf16.mxu0 0
        %1583 = vmatpush1.bf16.msra.mxu0 0
        %1584 = vmatprep.subr.bf16.mxu0 0
        %1585 = vmatpush1.bf16.msra.mxu0 0
        %1586 = vmatprep.subr.bf16.mxu0 0
        %1587 = vmatpush1.bf16.msra.mxu0 0
        %1588 = vmatprep.subr.bf16.mxu0 0
        %1589 = vmatpush1.bf16.msra.mxu0 0
        %1590 = vmatprep.subr.bf16.mxu0 0
        %1591 = vmatpush1.bf16.msra.mxu0 0
        %1592 = vmatprep.subr.bf16.mxu0 0
        %1593 = vmatpush1.bf16.msra.mxu0 0
        %1594 = vmatprep.subr.bf16.mxu0 0
        %1595 = vmatpush1.bf16.msra.mxu0 %v1576
        %1596 = vmatprep.subr.bf16.mxu0 0
        %1597 = vmatpush1.bf16.msra.mxu0 %v1575
        %1598 = vmatprep.subr.bf16.mxu0 0
        %1599 = vmatpush2.bf16.msra.mxu0 0
        %1600 = vmatprep.subr.bf16.mxu0 0
        %1601 = vmatpush2.bf16.msra.mxu0 0
        %1602 = vmatprep.subr.bf16.mxu0 0
        %1603 = vmatpush2.bf16.msra.mxu0 0
        %1604 = vmatprep.subr.bf16.mxu0 0
        %1605 = vmatpush2.bf16.msra.mxu0 0
        %1606 = vmatprep.subr.bf16.mxu0 0
        %1607 = vmatpush2.bf16.msra.mxu0 0
        %1608 = vmatprep.subr.bf16.mxu0 0
        %1609 = vmatpush2.bf16.msra.mxu0 0
        %1610 = vmatprep.subr.bf16.mxu0 0
        %1611 = vmatpush2.bf16.msra.mxu0 0
        %1612 = vmatprep.subr.bf16.mxu0 0
        %1613 = vmatpush2.bf16.msra.mxu0 0
        %1614 = vmatprep.mubr.bf16.mxu0 0
        %1615 = vmatmul.mubr.bf16.gmra.mxu0 %v1580
        %v1616 = vpop.f32.mrf.mxu0
        %v1617 = vadd.f32 %v1565, %v1616
        %v1618 = vpop.f32.mrf.mxu0
        %v1619 = vpop.f32.mrf.mxu0
        %v1620 = vadd.f32 %v1565, %v1619
        %v1621 = vpop.f32.mrf.mxu0
        %1622 = vdwg.mxu0
        %v1623 = vmul.f32 %v1617, %v1617
        %v1624 = vmul.f32 %v1620, %v1620
        %v1625 = vmul.f32 %v1617, %v1623
        %v1626 = vmul.f32 %v1620, %v1624
        %v1627 = vmul.f32 %v1625, 0.044715
        %v1628 = vmul.f32 %v1626, 0.044715
        %v1629 = vadd.f32 %v1617, %v1627
        %v1630 = vadd.f32 %v1620, %v1628
        %v1631 = vmul.f32 %v1629, 0.7978846
        %v1632 = vmul.f32 %v1630, 0.7978846
        %v1633 = vtanh.pop %v1631
        %v1634 = vtanh.pop %v1632
        %v1635 = vadd.f32 %v1633, 1.0
        %v1636 = vadd.f32 %v1634, 1.0
        %v1637 = vmul.f32 %v1635, 0.5
        %v1638 = vmul.f32 %v1636, 0.5
        %v1639 = vmul.f32 %v1617, %v1637
        %v1640 = vmul.f32 %v1620, %v1638
        %v1641 = vpack.c.bf16 %v1640, %v1639
        %v1643 = vlaneseq
        %v1644 = vshrl.u32 %v1643, 7
        %v1645 = vsub.s32 0, %v1644
        %v1646 = vrot.slane %v832, %v1645
        %v1664 = vunpack.c.l.b16 %v816
        %v1665 = vunpack.c.l.b16 %v817
        %v1666 = vunpack.c.l.b16 %v818
        %v1667 = vunpack.c.l.b16 %v819
        %v1668 = vunpack.c.l.b16 %v820
        %v1669 = vunpack.c.l.b16 %v821
        %v1670 = vunpack.c.l.b16 %v822
        %v1671 = vunpack.c.l.b16 %v823
        %v1672 = vunpack.c.l.b16 %v824
        %v1673 = vunpack.c.l.b16 %v825
        %v1674 = vunpack.c.l.b16 %v826
        %v1675 = vunpack.c.l.b16 %v827
        %v1676 = vunpack.c.l.b16 %v828
        %v1677 = vunpack.c.l.b16 %v829
        %v1678 = vunpack.c.l.b16 %v830
        %v1679 = vunpack.c.l.b16 %v831
        %v1680 = vpack.c.b16 %v1665, %v1664
        %v1681 = vpack.c.b16 %v1667, %v1666
        %v1682 = vpack.c.b16 %v1669, %v1668
        %v1683 = vpack.c.b16 %v1671, %v1670
        %v1684 = vpack.c.b16 %v1673, %v1672
        %v1685 = vpack.c.b16 %v1675, %v1674
        %v1686 = vpack.c.b16 %v1677, %v1676
        %v1687 = vpack.c.b16 %v1679, %v1678
        %1696 = vmatprep.subr.bf16.mxu0 0
        %1697 = vmatpush1.bf16.msra.mxu0 %v1687
        %1698 = vmatprep.subr.bf16.mxu0 0
        %1699 = vmatpush1.bf16.msra.mxu0 %v1686
        %1700 = vmatprep.subr.bf16.mxu0 0
        %1701 = vmatpush1.bf16.msra.mxu0 %v1685
        %1702 = vmatprep.subr.bf16.mxu0 0
        %1703 = vmatpush1.bf16.msra.mxu0 %v1684
        %1704 = vmatprep.subr.bf16.mxu0 0
        %1705 = vmatpush1.bf16.msra.mxu0 %v1683
        %1706 = vmatprep.subr.bf16.mxu0 0
        %1707 = vmatpush1.bf16.msra.mxu0 %v1682
        %1708 = vmatprep.subr.bf16.mxu0 0
        %1709 = vmatpush1.bf16.msra.mxu0 %v1681
        %1710 = vmatprep.subr.bf16.mxu0 0
        %1711 = vmatpush1.bf16.msra.mxu0 %v1680
        %1712 = vmatprep.subr.bf16.mxu0 0
        %1713 = vmatpush2.bf16.msra.mxu0 0
        %1714 = vmatprep.subr.bf16.mxu0 0
        %1715 = vmatpush2.bf16.msra.mxu0 0
        %1716 = vmatprep.subr.bf16.mxu0 0
        %1717 = vmatpush2.bf16.msra.mxu0 0
        %1718 = vmatprep.subr.bf16.mxu0 0
        %1719 = vmatpush2.bf16.msra.mxu0 0
        %1720 = vmatprep.subr.bf16.mxu0 0
        %1721 = vmatpush2.bf16.msra.mxu0 0
        %1722 = vmatprep.subr.bf16.mxu0 0
        %1723 = vmatpush2.bf16.msra.mxu0 0
        %1724 = vmatprep.subr.bf16.mxu0 0
        %1725 = vmatpush2.bf16.msra.mxu0 0
        %1726 = vmatprep.subr.bf16.mxu0 0
        %1727 = vmatpush2.bf16.msra.mxu0 0
        %1728 = vmatprep.mubr.bf16.mxu0 0
        %1729 = vmatmul.mubr.bf16.gmra.mxu0 %v1641
        %v1730 = vpop.f32.mrf.mxu0
        %v1731 = vadd.f32 %v1646, %v1730
        %v1732 = vpop.f32.mrf.mxu0
        %v1733 = vpop.f32.mrf.mxu0
        %v1734 = vadd.f32 %v1646, %v1733
        %v1735 = vpop.f32.mrf.mxu0
        %1736 = vdwg.mxu0
        %v1737 = vadd.f32 %v1516, %v1731
        %v1738 = vadd.f32 %v1517, %v1734
        %1739 = vst.msk [vmem:[#allocation2] sm:$0xff] %vm833, %v1737
        %1740 = vst.msk [vmem:[#allocation2 + $0x8] sm:$0xff] %vm833, %v1738
        %p1741 = scmp.eq.s32.totalorder %s37, 1
        // Predicated region
        $region97: #{forward.3} parent=91 // pred_check
          %p1742 = pneg %p1741
        $region98: #{forward.3} parent=91 // pred_check_branch
          %1744 = sbr.rel (%p1742) target = $region100
        $region99: #{forward.3} parent=91 // pred_region
          %v1745 = vld [vmem:[#allocation2 + $0x8] sm:$0xff]
          %v1746 = vld [vmem:[%s14] sm:$0x1]
          %v1747 = vld [vmem:[%s15] sm:$0x1]
          %v1748 = vsel %vm833, %v1745, 0.0
          %1749 = vadd.xlane.f32.xlu0 %v1748
          %v1750 = vpop.xlane.xlu0 %1749
          %v1751 = vmul.f32 %v1750, %v840
          %v1752 = vsub.f32 %v1745, %v1751
          %v1753 = vmul.f32 %v1752, %v1752
          %v1754 = vsel %vm833, %v1753, 0.0
          %1755 = vadd.xlane.f32.xlu0 %v1754
          %v1756 = vpop.xlane.xlu0 %1755
          %v1757 = vmul.f32 %v1756, %v840
          %v1758 = vadd.f32 %v1757, 1e-05
          %v1759 = vrsqrt.pop %v1758
          %v1760 = vmul.f32 %v1752, %v1759
          %v1762 = vlaneseq
          %v1763 = vshrl.u32 %v1762, 7
          %v1764 = vsub.s32 0, %v1763
          %v1765 = vrot.slane %v1746, %v1764
          %v1767 = vmul.f32 %v1760, %v1765
          %v1769 = vlaneseq
          %v1770 = vshrl.u32 %v1769, 7
          %v1771 = vsub.s32 0, %v1770
          %v1772 = vrot.slane %v1747, %v1771
          %v1774 = vadd.f32 %v1767, %v1772
          %v1775 = vpack.c.bf16 %v1774, %v1774
          %v1776 = vld [vmem:[%s16] sm:$0xff]
          %v1777 = vld [vmem:[%s16 + $0x8] sm:$0xf]
          %v1778 = vld [vmem:[%s16 + $0xc] sm:$0xff]
          %v1779 = vld [vmem:[%s16 + $0x14] sm:$0xf]
          %v1780 = vld [vmem:[%s16 + $0x18] sm:$0xff]
          %v1781 = vld [vmem:[%s16 + $0x20] sm:$0xf]
          %v1782 = vld [vmem:[%s16 + $0x24] sm:$0xff]
          %v1783 = vld [vmem:[%s16 + $0x2c] sm:$0xf]
          %v1784 = vld [vmem:[%s17] sm:$0x7]
          %v1786 = vlaneseq
          %v1787 = vshrl.u32 %v1786, 7
          %v1788 = vsub.s32 0, %v1787
          %v1789 = vrot.slane %v1784, %v1788
          %v1790 = vlaneseq
          %v1791 = vshrl.u32 %v1790, 7
          %v1792 = vsub.s32 1, %v1791
          %v1793 = vrot.slane %v1784, %v1792
          %v1794 = vlaneseq
          %v1795 = vshrl.u32 %v1794, 7
          %v1796 = vsub.s32 2, %v1795
          %v1797 = vrot.slane %v1784, %v1796
          %v1809 = vunpack.c.l.b16 %v1776
          %v1810 = vunpack.c.h.b16 %v1776
          %v1811 = vunpack.c.l.b16 %v1777
          %v1812 = vunpack.c.l.b16 %v1778
          %v1813 = vunpack.c.h.b16 %v1778
          %v1814 = vunpack.c.l.b16 %v1779
          %v1815 = vunpack.c.l.b16 %v1780
          %v1816 = vunpack.c.h.b16 %v1780
          %v1817 = vunpack.c.l.b16 %v1781
          %v1818 = vunpack.c.l.b16 %v1782
          %v1819 = vunpack.c.h.b16 %v1782
          %v1820 = vunpack.c.l.b16 %v1783
          %v1821 = vpack.c.b16 %v1812, %v1809
          %v1822 = vpack.c.b16 %v1813, %v1810
          %v1823 = vpack.c.b16 %v1814, %v1811
          %v1824 = vpack.c.b16 %v1818, %v1815
          %v1825 = vpack.c.b16 %v1819, %v1816
          %v1826 = vpack.c.b16 %v1820, %v1817
          %v1834 = vsel %vm833, %v1775, 0
          %1836 = vmatprep.subr.bf16.mxu0 0
          %1837 = vmatpush1.bf16.msra.mxu0 0
          %1838 = vmatprep.subr.bf16.mxu0 0
          %1839 = vmatpush1.bf16.msra.mxu0 0
          %1840 = vmatprep.subr.bf16.mxu0 0
          %1841 = vmatpush1.bf16.msra.mxu0 0
          %1842 = vmatprep.subr.bf16.mxu0 0
          %1843 = vmatpush1.bf16.msra.mxu0 0
          %1844 = vmatprep.subr.bf16.mxu0 0
          %1845 = vmatpush1.bf16.msra.mxu0 0
          %1846 = vmatprep.subr.bf16.mxu0 0
          %1847 = vmatpush1.bf16.msra.mxu0 0
          %1848 = vmatprep.subr.bf16.mxu0 %v1825
          %1849 = vmatpush1.bf16.msra.mxu0 %v1824
          %1850 = vmatprep.subr.bf16.mxu0 %v1822
          %1851 = vmatpush1.bf16.msra.mxu0 %v1821
          %1852 = vmatprep.subr.bf16.mxu0 0
          %1853 = vmatpush2.bf16.msra.mxu0 0
          %1854 = vmatprep.subr.bf16.mxu0 0
          %1855 = vmatpush2.bf16.msra.mxu0 0
          %1856 = vmatprep.subr.bf16.mxu0 0
          %1857 = vmatpush2.bf16.msra.mxu0 0
          %1858 = vmatprep.subr.bf16.mxu0 0
          %1859 = vmatpush2.bf16.msra.mxu0 0
          %1860 = vmatprep.subr.bf16.mxu0 0
          %1861 = vmatpush2.bf16.msra.mxu0 0
          %1862 = vmatprep.subr.bf16.mxu0 0
          %1863 = vmatpush2.bf16.msra.mxu0 0
          %1864 = vmatprep.subr.bf16.mxu0 0
          %1865 = vmatpush2.bf16.msra.mxu0 0
          %1866 = vmatprep.subr.bf16.mxu0 0
          %1867 = vmatpush2.bf16.msra.mxu0 0
          %1868 = vmatprep.mubr.bf16.mxu0 0
          %1869 = vmatmul.mubr.bf16.gmra.mxu0 %v1834
          %v1870 = vpop.f32.mrf.mxu0
          %v1871 = vadd.f32 %v1789, %v1870
          %v1872 = vpop.f32.mrf.mxu0
          %v1873 = vadd.f32 %v1793, %v1872
          %v1874 = vpop.f32.mrf.mxu0
          %v1875 = vpop.f32.mrf.mxu0
          %1876 = vdwg.mxu0
          %1877 = vmatprep.subr.bf16.mxu0 0
          %1878 = vmatpush1.bf16.msra.mxu0 0
          %1879 = vmatprep.subr.bf16.mxu0 0
          %1880 = vmatpush1.bf16.msra.mxu0 0
          %1881 = vmatprep.subr.bf16.mxu0 0
          %1882 = vmatpush1.bf16.msra.mxu0 0
          %1883 = vmatprep.subr.bf16.mxu0 0
          %1884 = vmatpush1.bf16.msra.mxu0 0
          %1885 = vmatprep.subr.bf16.mxu0 0
          %1886 = vmatpush1.bf16.msra.mxu0 0
          %1887 = vmatprep.subr.bf16.mxu0 0
          %1888 = vmatpush1.bf16.msra.mxu0 0
          %1889 = vmatprep.subr.bf16.mxu0 0
          %1890 = vmatpush1.bf16.msra.mxu0 %v1826
          %1891 = vmatprep.subr.bf16.mxu0 0
          %1892 = vmatpush1.bf16.msra.mxu0 %v1823
          %1893 = vmatprep.subr.bf16.mxu0 0
          %1894 = vmatpush2.bf16.msra.mxu0 0
          %1895 = vmatprep.subr.bf16.mxu0 0
          %1896 = vmatpush2.bf16.msra.mxu0 0
          %1897 = vmatprep.subr.bf16.mxu0 0
          %1898 = vmatpush2.bf16.msra.mxu0 0
          %1899 = vmatprep.subr.bf16.mxu0 0
          %1900 = vmatpush2.bf16.msra.mxu0 0
          %1901 = vmatprep.subr.bf16.mxu0 0
          %1902 = vmatpush2.bf16.msra.mxu0 0
          %1903 = vmatprep.subr.bf16.mxu0 0
          %1904 = vmatpush2.bf16.msra.mxu0 0
          %1905 = vmatprep.subr.bf16.mxu0 0
          %1906 = vmatpush2.bf16.msra.mxu0 0
          %1907 = vmatprep.subr.bf16.mxu0 0
          %1908 = vmatpush2.bf16.msra.mxu0 0
          %1909 = vmatprep.mubr.bf16.mxu0 0
          %1910 = vmatmul.mubr.bf16.gmra.mxu0 %v1834
          %v1911 = vpop.f32.mrf.mxu0
          %v1912 = vadd.f32 %v1797, %v1911
          %v1913 = vpop.f32.mrf.mxu0
          %v1914 = vpop.f32.mrf.mxu0
          %v1915 = vpop.f32.mrf.mxu0
          %1916 = vdwg.mxu0
          %1917 = vst [vmem:[%s728] sm:$0xff] %v1871
          %1918 = vst [vmem:[%s728 + $0x8] sm:$0xff] %v1873
          %1919 = vst [vmem:[%s728 + $0x10] sm:$0xff] %v1912
        $region100: #{forward.3} parent=91 // pred_fallthru
          _
        %s1920 = sand.u32 %s495, 1
        %s1921 = scalar_lea.sflag [#allocation4], %s1920
        %s1922 = sand.u32 %s495, 1
        %s1923 = smul.addr %s1922, 24
        %s1924 = scalar_lea.vmem [#allocation3], %s1923
        // Predicated region
        $region101: #{forward.3} parent=91 // pred_check
          %p1925 = pneg %p505
        $region102: #{forward.3} parent=91 // pred_check_branch
          %1927 = sbr.rel (%p1925) target = $region104
        $region103: #{forward.3} parent=91 // pred_region
          %s1929 = ssub.s32 384, 384
          %1930 = vsyncadd %s1921, %s1929
          %s1931 = smul.addr %s36, 3
          %s1932 = smul.addr %s1931, 128
          %s1933 = scalar_lea.hbm %s18, %s1932
          %s1935 = sshll.u32 %s1924, 4
          %s1936 = int_to_ptr.vmem [resolvable:$true] %s1935
          %1938 = dma.vmem_to_hbm [thread:$0]  %s1936, 384, %s1933, %s1921
        $region104: #{forward.3} parent=91 // pred_fallthru
          _
      $region92: #{forward.3} parent=5 // pred_fallthru
        _
      %p1939 = scmp.le.s32.totalorder 2, %s27
      // Predicated region
      $region105: #{forward.3} parent=5 // pred_check
        %p1940 = pneg %p1939
      $region106: #{forward.3} parent=5 // pred_check_branch
        %1942 = sbr.rel (%p1940) target = $region108
      $region107: #{forward.3} parent=5 // pred_region
        %s1943 = ssub.s32 %s27, 2
        // Predicated region
        $region109: #{forward.3} parent=107 // pred_check
          %p1944 = pneg %p511
        $region110: #{forward.3} parent=107 // pred_check_branch
          %1946 = sbr.rel (%p1944) target = $region112
        $region111: #{forward.3} parent=107 // pred_region
          %s1947 = sand.u32 %s496, 1
          %s1948 = scalar_lea.sflag [#allocation4], %s1947
          %s1949 = sand.u32 %s496, 1
          %s1950 = smul.addr %s1949, 24
          %s1951 = scalar_lea.vmem [#allocation3], %s1950
          %1952 = dma.done %s1948, 384
        $region112: #{forward.3} parent=107 // pred_fallthru
          _
      $region108: #{forward.3} parent=5 // pred_fallthru
        _
    $region6: #{forward.3} parent=1 // loop_footer
      %s31 = sadd.s32 1, %s27
    $region7: #{forward.3} parent=1 // loop_footer_branch
      %26 = sbr.rel target = $region3
    $region8: #{forward.3} parent=1 // loop_exit
      _
    %1953 = vsyncpa [#allocation4], 1
    %s1954 = scalar_lea.sflag [#allocation4], 1
    %1955 = vsyncpa %s1954, 1

// kernel: forward.2
$region0: #{forward.2}
  #allocation0 [shape = 'u32[]', space=smem, size = 0x4, offset = 0x4, fixed_abs, tag = 'smem constant byte address 0x4 - core index']
  #allocation1 [shape = 'u32[144,128]{1,0:T(1,128)}', space=vmem, size = 0x12000, scoped, tag = 'internal scratch']
  #allocation2 [shape = 'f32[8,64]{1,0:T(8,128)}', space=vmem, size = 0x1000, scoped, tag = 'scratch operand']
  %s0 = inlined_call_operand.vmem [shape: bf16[2,8,384], index: 0, kind: input, shape index: {}]
  %s1 = inlined_call_operand.vmem [shape: bf16[384,64], index: 1, kind: input, shape index: {}]
  %s2 = inlined_call_operand.vmem [shape: f32[1,64], index: 2, kind: input, shape index: {}]
  %s3 = inlined_call_operand.vmem [shape: f32[2,8,64], index: 3, kind: input, shape index: {}]
  %s4 = inlined_call_operand.vmem [shape: f32[3,1,64], index: 4, kind: input, shape index: {}]
  %s5 = inlined_call_operand.vmem [shape: f32[3,1,64], index: 5, kind: input, shape index: {}]
  %s6 = inlined_call_operand.vmem [shape: bf16[3,64,192], index: 6, kind: input, shape index: {}]
  %s7 = inlined_call_operand.vmem [shape: bf16[3,64,64], index: 7, kind: input, shape index: {}]
  %s8 = inlined_call_operand.vmem [shape: f32[3,1,64], index: 8, kind: input, shape index: {}]
  %s9 = inlined_call_operand.vmem [shape: f32[3,1,64], index: 9, kind: input, shape index: {}]
  %s10 = inlined_call_operand.vmem [shape: f32[3,1,64], index: 10, kind: input, shape index: {}]
  %s11 = inlined_call_operand.vmem [shape: bf16[3,64,256], index: 11, kind: input, shape index: {}]
  %s12 = inlined_call_operand.vmem [shape: f32[3,1,256], index: 12, kind: input, shape index: {}]
  %s13 = inlined_call_operand.vmem [shape: bf16[3,256,64], index: 13, kind: input, shape index: {}]
  %s14 = inlined_call_operand.vmem [shape: f32[3,1,64], index: 14, kind: input, shape index: {}]
  %s15 = inlined_call_operand.vmem [shape: f32[1,64], index: 15, kind: input, shape index: {}]
  %s16 = inlined_call_operand.vmem [shape: f32[1,64], index: 16, kind: input, shape index: {}]
  %s17 = inlined_call_operand.vmem [shape: bf16[64,32], index: 17, kind: input, shape index: {}]
  %s18 = inlined_call_operand.vmem [shape: f32[2,8,32], index: 18, kind: input, shape index: {}]
  %s19 = inlined_call_operand.vmem [shape: f32[2,8,32], index: 19, kind: output, shape index: {}]
  %s20 = sld [smem:[#allocation0]]
  $region117: #{forward.2} parent=0
    _
  %s22 = ssub.s32 1, %s20
  %s23 = scalar_select 0, %s22, %s20
  loop: start=0, step=1, limit=8
  $region2: #{forward.2} parent=0 // loop_pre_header
    _
  $region3: #{forward.2} parent=0 // loop_header
    %s25 = sphi 0, %s29
    %p26 = scmp.ge.s32.totalorder %s25, 8
    %s32 = sphi 0, %s44
    %s33 = sphi 0, %s40
    %s34 = sphi 0, %s32
    %s35 = sphi 0, %s33
    %s36 = sphi 0, %s34
    %s37 = sphi 0, %s35
    %s47 = sphi 0, %s49
    %s50 = sphi 0, %s47
    %s51 = sphi 0, %s50
    %s67 = sphi 0, %s51
    %s71 = sphi 0, %s71
    %s73 = sphi 0, %s71
    %s74 = sphi 0, %s73
    %s88 = sphi 0, %s74
    %s92 = sphi 0, %s92
    %s94 = sphi 0, %s92
    %s95 = sphi 0, %s94
    %s109 = sphi 0, %s95
    %s115 = sphi 0, %s117
    %s118 = sphi 0, %s115
    %s119 = sphi 0, %s118
    %s135 = sphi 0, %s119
    %s141 = sphi 0, %s143
    %s144 = sphi 0, %s141
    %s145 = sphi 0, %s144
    %s161 = sphi 0, %s145
    %s167 = sphi 0, %s169
    %s170 = sphi 0, %s167
    %s171 = sphi 0, %s170
    %s187 = sphi 0, %s171
    %s193 = sphi 0, %s195
    %s196 = sphi 0, %s193
    %s197 = sphi 0, %s196
    %s213 = sphi 0, %s197
    %s219 = sphi 0, %s221
    %s222 = sphi 0, %s219
    %s223 = sphi 0, %s222
    %s239 = sphi 0, %s223
    %s245 = sphi 0, %s247
    %s248 = sphi 0, %s245
    %s249 = sphi 0, %s248
    %s265 = sphi 0, %s249
    %s271 = sphi 0, %s273
    %s274 = sphi 0, %s271
    %s275 = sphi 0, %s274
    %s291 = sphi 0, %s275
    %s297 = sphi 0, %s299
    %s300 = sphi 0, %s297
    %s301 = sphi 0, %s300
    %s317 = sphi 0, %s301
    %s323 = sphi 0, %s325
    %s326 = sphi 0, %s323
    %s327 = sphi 0, %s326
    %s343 = sphi 0, %s327
    %s349 = sphi 0, %s351
    %s352 = sphi 0, %s349
    %s353 = sphi 0, %s352
    %s369 = sphi 0, %s353
    %s375 = sphi 0, %s377
    %s378 = sphi 0, %s375
    %s379 = sphi 0, %s378
    %s395 = sphi 0, %s379
    %s401 = sphi 0, %s403
    %s404 = sphi 0, %s401
    %s405 = sphi 0, %s404
    %s421 = sphi 0, %s405
    %s425 = sphi 0, %s425
    %s427 = sphi 0, %s425
    %s428 = sphi 0, %s427
    %s442 = sphi 0, %s428
    %s446 = sphi 0, %s446
    %s448 = sphi 0, %s446
    %s449 = sphi 0, %s448
    %s463 = sphi 0, %s449
    %s467 = sphi 0, %s467
    %s469 = sphi 0, %s467
    %s470 = sphi 0, %s469
    %s484 = sphi 0, %s470
    %s490 = sphi 0, %s492
    %s493 = sphi 0, %s490
    %s494 = sphi 0, %s493
    %s510 = sphi 0, %s494
    %s516 = sphi 0, %s518
    %s519 = sphi 0, %s516
    %s520 = sphi 0, %s519
    %s536 = sphi 0, %s520
  $region4: #{forward.2} parent=0 // loop_header_branch
    %28 = sbr.rel (%p26) target = $region8
  $region5: #{forward.2} parent=0 // loop_body
    %s30 = ssub.s32 %s25, 1
    %s31 = ssub.s32 %s25, 2
    %s38 = sadd.s32 1, %s33
    %p39 = scmp.ge.s32.totalorder %s38, 3
    %s40 = scalar_select %p39, 0, %s38
    %s41 = sadd.s32 1, %s32
    %s42 = scalar_select %p39, %s41, %s32
    %p43 = scmp.ge.s32.totalorder %s42, 2
    %s44 = scalar_select %p43, 0, %s42
    %s45 = ssub.s32 %s32, %s44
    %p46 = scmp.eq.s32.totalorder %s45, 0
    %s48 = sadd.s32 %s47, 1
    %s49 = scalar_select %p46, %s47, %s48
    %p52 = pneg %p46
    %p53 = scmp.eq.s32.totalorder %s25, 5
    %p54 = por %p52, %p53
    %p55 = scmp.ne.s32.totalorder %s47, %s50
    %p56 = scmp.eq.s32.totalorder %s25, 0
    %p57 = por %p55, %p56
    %p58 = scmp.ne.s32.totalorder %s47, %s50
    %p59 = scmp.eq.s32.totalorder %s30, 5
    %p60 = por %p58, %p59
    %p61 = scmp.ne.s32.totalorder %s50, %s51
    %p62 = scmp.eq.s32.totalorder %s30, 0
    %p63 = por %p61, %p62
    %p64 = scmp.ne.s32.totalorder %s50, %s51
    %p65 = scmp.eq.s32.totalorder %s31, 5
    %p66 = por %p64, %p65
    %p68 = scmp.ne.s32.totalorder %s51, %s67
    %p69 = scmp.eq.s32.totalorder %s31, 0
    %p70 = por %p68, %p69
    %s72 = sadd.s32 %s71, 1
    %p75 = scmp.eq.s32.totalorder %s25, 5
    %p76 = scmp.ne.s32.totalorder %s71, %s73
    %p77 = scmp.eq.s32.totalorder %s25, 0
    %p78 = por %p76, %p77
    %p79 = scmp.ne.s32.totalorder %s71, %s73
    %p80 = scmp.eq.s32.totalorder %s30, 5
    %p81 = por %p79, %p80
    %p82 = scmp.ne.s32.totalorder %s73, %s74
    %p83 = scmp.eq.s32.totalorder %s30, 0
    %p84 = por %p82, %p83
    %p85 = scmp.ne.s32.totalorder %s73, %s74
    %p86 = scmp.eq.s32.totalorder %s31, 5
    %p87 = por %p85, %p86
    %p89 = scmp.ne.s32.totalorder %s74, %s88
    %p90 = scmp.eq.s32.totalorder %s31, 0
    %p91 = por %p89, %p90
    %s93 = sadd.s32 %s92, 1
    %p96 = scmp.eq.s32.totalorder %s25, 5
    %p97 = scmp.ne.s32.totalorder %s92, %s94
    %p98 = scmp.eq.s32.totalorder %s25, 0
    %p99 = por %p97, %p98
    %p100 = scmp.ne.s32.totalorder %s92, %s94
    %p101 = scmp.eq.s32.totalorder %s30, 5
    %p102 = por %p100, %p101
    %p103 = scmp.ne.s32.totalorder %s94, %s95
    %p104 = scmp.eq.s32.totalorder %s30, 0
    %p105 = por %p103, %p104
    %p106 = scmp.ne.s32.totalorder %s94, %s95
    %p107 = scmp.eq.s32.totalorder %s31, 5
    %p108 = por %p106, %p107
    %p110 = scmp.ne.s32.totalorder %s95, %s109
    %p111 = scmp.eq.s32.totalorder %s31, 0
    %p112 = por %p110, %p111
    %s113 = ssub.s32 %s32, %s44
    %p114 = scmp.eq.s32.totalorder %s113, 0
    %s116 = sadd.s32 %s115, 1
    %s117 = scalar_select %p114, %s115, %s116
    %p120 = pneg %p114
    %p121 = scmp.eq.s32.totalorder %s25, 5
    %p122 = por %p120, %p121
    %p123 = scmp.ne.s32.totalorder %s115, %s118
    %p124 = scmp.eq.s32.totalorder %s25, 0
    %p125 = por %p123, %p124
    %p126 = scmp.ne.s32.totalorder %s115, %s118
    %p127 = scmp.eq.s32.totalorder %s30, 5
    %p128 = por %p126, %p127
    %p129 = scmp.ne.s32.totalorder %s118, %s119
    %p130 = scmp.eq.s32.totalorder %s30, 0
    %p131 = por %p129, %p130
    %p132 = scmp.ne.s32.totalorder %s118, %s119
    %p133 = scmp.eq.s32.totalorder %s31, 5
    %p134 = por %p132, %p133
    %p136 = scmp.ne.s32.totalorder %s119, %s135
    %p137 = scmp.eq.s32.totalorder %s31, 0
    %p138 = por %p136, %p137
    %s139 = ssub.s32 %s33, %s40
    %p140 = scmp.eq.s32.totalorder %s139, 0
    %s142 = sadd.s32 %s141, 1
    %s143 = scalar_select %p140, %s141, %s142
    %p146 = pneg %p140
    %p147 = scmp.eq.s32.totalorder %s25, 5
    %p148 = por %p146, %p147
    %p149 = scmp.ne.s32.totalorder %s141, %s144
    %p150 = scmp.eq.s32.totalorder %s25, 0
    %p151 = por %p149, %p150
    %p152 = scmp.ne.s32.totalorder %s141, %s144
    %p153 = scmp.eq.s32.totalorder %s30, 5
    %p154 = por %p152, %p153
    %p155 = scmp.ne.s32.totalorder %s144, %s145
    %p156 = scmp.eq.s32.totalorder %s30, 0
    %p157 = por %p155, %p156
    %p158 = scmp.ne.s32.totalorder %s144, %s145
    %p159 = scmp.eq.s32.totalorder %s31, 5
    %p160 = por %p158, %p159
    %p162 = scmp.ne.s32.totalorder %s145, %s161
    %p163 = scmp.eq.s32.totalorder %s31, 0
    %p164 = por %p162, %p163
    %s165 = ssub.s32 %s33, %s40
    %p166 = scmp.eq.s32.totalorder %s165, 0
    %s168 = sadd.s32 %s167, 1
    %s169 = scalar_select %p166, %s167, %s168
    %p172 = pneg %p166
    %p173 = scmp.eq.s32.totalorder %s25, 5
    %p174 = por %p172, %p173
    %p175 = scmp.ne.s32.totalorder %s167, %s170
    %p176 = scmp.eq.s32.totalorder %s25, 0
    %p177 = por %p175, %p176
    %p178 = scmp.ne.s32.totalorder %s167, %s170
    %p179 = scmp.eq.s32.totalorder %s30, 5
    %p180 = por %p178, %p179
    %p181 = scmp.ne.s32.totalorder %s170, %s171
    %p182 = scmp.eq.s32.totalorder %s30, 0
    %p183 = por %p181, %p182
    %p184 = scmp.ne.s32.totalorder %s170, %s171
    %p185 = scmp.eq.s32.totalorder %s31, 5
    %p186 = por %p184, %p185
    %p188 = scmp.ne.s32.totalorder %s171, %s187
    %p189 = scmp.eq.s32.totalorder %s31, 0
    %p190 = por %p188, %p189
    %s191 = ssub.s32 %s33, %s40
    %p192 = scmp.eq.s32.totalorder %s191, 0
    %s194 = sadd.s32 %s193, 1
    %s195 = scalar_select %p192, %s193, %s194
    %p198 = pneg %p192
    %p199 = scmp.eq.s32.totalorder %s25, 5
    %p200 = por %p198, %p199
    %p201 = scmp.ne.s32.totalorder %s193, %s196
    %p202 = scmp.eq.s32.totalorder %s25, 0
    %p203 = por %p201, %p202
    %p204 = scmp.ne.s32.totalorder %s193, %s196
    %p205 = scmp.eq.s32.totalorder %s30, 5
    %p206 = por %p204, %p205
    %p207 = scmp.ne.s32.totalorder %s196, %s197
    %p208 = scmp.eq.s32.totalorder %s30, 0
    %p209 = por %p207, %p208
    %p210 = scmp.ne.s32.totalorder %s196, %s197
    %p211 = scmp.eq.s32.totalorder %s31, 5
    %p212 = por %p210, %p211
    %p214 = scmp.ne.s32.totalorder %s197, %s213
    %p215 = scmp.eq.s32.totalorder %s31, 0
    %p216 = por %p214, %p215
    %s217 = ssub.s32 %s33, %s40
    %p218 = scmp.eq.s32.totalorder %s217, 0
    %s220 = sadd.s32 %s219, 1
    %s221 = scalar_select %p218, %s219, %s220
    %p224 = pneg %p218
    %p225 = scmp.eq.s32.totalorder %s25, 5
    %p226 = por %p224, %p225
    %p227 = scmp.ne.s32.totalorder %s219, %s222
    %p228 = scmp.eq.s32.totalorder %s25, 0
    %p229 = por %p227, %p228
    %p230 = scmp.ne.s32.totalorder %s219, %s222
    %p231 = scmp.eq.s32.totalorder %s30, 5
    %p232 = por %p230, %p231
    %p233 = scmp.ne.s32.totalorder %s222, %s223
    %p234 = scmp.eq.s32.totalorder %s30, 0
    %p235 = por %p233, %p234
    %p236 = scmp.ne.s32.totalorder %s222, %s223
    %p237 = scmp.eq.s32.totalorder %s31, 5
    %p238 = por %p236, %p237
    %p240 = scmp.ne.s32.totalorder %s223, %s239
    %p241 = scmp.eq.s32.totalorder %s31, 0
    %p242 = por %p240, %p241
    %s243 = ssub.s32 %s33, %s40
    %p244 = scmp.eq.s32.totalorder %s243, 0
    %s246 = sadd.s32 %s245, 1
    %s247 = scalar_select %p244, %s245, %s246
    %p250 = pneg %p244
    %p251 = scmp.eq.s32.totalorder %s25, 5
    %p252 = por %p250, %p251
    %p253 = scmp.ne.s32.totalorder %s245, %s248
    %p254 = scmp.eq.s32.totalorder %s25, 0
    %p255 = por %p253, %p254
    %p256 = scmp.ne.s32.totalorder %s245, %s248
    %p257 = scmp.eq.s32.totalorder %s30, 5
    %p258 = por %p256, %p257
    %p259 = scmp.ne.s32.totalorder %s248, %s249
    %p260 = scmp.eq.s32.totalorder %s30, 0
    %p261 = por %p259, %p260
    %p262 = scmp.ne.s32.totalorder %s248, %s249
    %p263 = scmp.eq.s32.totalorder %s31, 5
    %p264 = por %p262, %p263
    %p266 = scmp.ne.s32.totalorder %s249, %s265
    %p267 = scmp.eq.s32.totalorder %s31, 0
    %p268 = por %p266, %p267
    %s269 = ssub.s32 %s33, %s40
    %p270 = scmp.eq.s32.totalorder %s269, 0
    %s272 = sadd.s32 %s271, 1
    %s273 = scalar_select %p270, %s271, %s272
    %p276 = pneg %p270
    %p277 = scmp.eq.s32.totalorder %s25, 5
    %p278 = por %p276, %p277
    %p279 = scmp.ne.s32.totalorder %s271, %s274
    %p280 = scmp.eq.s32.totalorder %s25, 0
    %p281 = por %p279, %p280
    %p282 = scmp.ne.s32.totalorder %s271, %s274
    %p283 = scmp.eq.s32.totalorder %s30, 5
    %p284 = por %p282, %p283
    %p285 = scmp.ne.s32.totalorder %s274, %s275
    %p286 = scmp.eq.s32.totalorder %s30, 0
    %p287 = por %p285, %p286
    %p288 = scmp.ne.s32.totalorder %s274, %s275
    %p289 = scmp.eq.s32.totalorder %s31, 5
    %p290 = por %p288, %p289
    %p292 = scmp.ne.s32.totalorder %s275, %s291
    %p293 = scmp.eq.s32.totalorder %s31, 0
    %p294 = por %p292, %p293
    %s295 = ssub.s32 %s33, %s40
    %p296 = scmp.eq.s32.totalorder %s295, 0
    %s298 = sadd.s32 %s297, 1
    %s299 = scalar_select %p296, %s297, %s298
    %p302 = pneg %p296
    %p303 = scmp.eq.s32.totalorder %s25, 5
    %p304 = por %p302, %p303
    %p305 = scmp.ne.s32.totalorder %s297, %s300
    %p306 = scmp.eq.s32.totalorder %s25, 0
    %p307 = por %p305, %p306
    %p308 = scmp.ne.s32.totalorder %s297, %s300
    %p309 = scmp.eq.s32.totalorder %s30, 5
    %p310 = por %p308, %p309
    %p311 = scmp.ne.s32.totalorder %s300, %s301
    %p312 = scmp.eq.s32.totalorder %s30, 0
    %p313 = por %p311, %p312
    %p314 = scmp.ne.s32.totalorder %s300, %s301
    %p315 = scmp.eq.s32.totalorder %s31, 5
    %p316 = por %p314, %p315
    %p318 = scmp.ne.s32.totalorder %s301, %s317
    %p319 = scmp.eq.s32.totalorder %s31, 0
    %p320 = por %p318, %p319
    %s321 = ssub.s32 %s33, %s40
    %p322 = scmp.eq.s32.totalorder %s321, 0
    %s324 = sadd.s32 %s323, 1
    %s325 = scalar_select %p322, %s323, %s324
    %p328 = pneg %p322
    %p329 = scmp.eq.s32.totalorder %s25, 5
    %p330 = por %p328, %p329
    %p331 = scmp.ne.s32.totalorder %s323, %s326
    %p332 = scmp.eq.s32.totalorder %s25, 0
    %p333 = por %p331, %p332
    %p334 = scmp.ne.s32.totalorder %s323, %s326
    %p335 = scmp.eq.s32.totalorder %s30, 5
    %p336 = por %p334, %p335
    %p337 = scmp.ne.s32.totalorder %s326, %s327
    %p338 = scmp.eq.s32.totalorder %s30, 0
    %p339 = por %p337, %p338
    %p340 = scmp.ne.s32.totalorder %s326, %s327
    %p341 = scmp.eq.s32.totalorder %s31, 5
    %p342 = por %p340, %p341
    %p344 = scmp.ne.s32.totalorder %s327, %s343
    %p345 = scmp.eq.s32.totalorder %s31, 0
    %p346 = por %p344, %p345
    %s347 = ssub.s32 %s33, %s40
    %p348 = scmp.eq.s32.totalorder %s347, 0
    %s350 = sadd.s32 %s349, 1
    %s351 = scalar_select %p348, %s349, %s350
    %p354 = pneg %p348
    %p355 = scmp.eq.s32.totalorder %s25, 5
    %p356 = por %p354, %p355
    %p357 = scmp.ne.s32.totalorder %s349, %s352
    %p358 = scmp.eq.s32.totalorder %s25, 0
    %p359 = por %p357, %p358
    %p360 = scmp.ne.s32.totalorder %s349, %s352
    %p361 = scmp.eq.s32.totalorder %s30, 5
    %p362 = por %p360, %p361
    %p363 = scmp.ne.s32.totalorder %s352, %s353
    %p364 = scmp.eq.s32.totalorder %s30, 0
    %p365 = por %p363, %p364
    %p366 = scmp.ne.s32.totalorder %s352, %s353
    %p367 = scmp.eq.s32.totalorder %s31, 5
    %p368 = por %p366, %p367
    %p370 = scmp.ne.s32.totalorder %s353, %s369
    %p371 = scmp.eq.s32.totalorder %s31, 0
    %p372 = por %p370, %p371
    %s373 = ssub.s32 %s33, %s40
    %p374 = scmp.eq.s32.totalorder %s373, 0
    %s376 = sadd.s32 %s375, 1
    %s377 = scalar_select %p374, %s375, %s376
    %p380 = pneg %p374
    %p381 = scmp.eq.s32.totalorder %s25, 5
    %p382 = por %p380, %p381
    %p383 = scmp.ne.s32.totalorder %s375, %s378
    %p384 = scmp.eq.s32.totalorder %s25, 0
    %p385 = por %p383, %p384
    %p386 = scmp.ne.s32.totalorder %s375, %s378
    %p387 = scmp.eq.s32.totalorder %s30, 5
    %p388 = por %p386, %p387
    %p389 = scmp.ne.s32.totalorder %s378, %s379
    %p390 = scmp.eq.s32.totalorder %s30, 0
    %p391 = por %p389, %p390
    %p392 = scmp.ne.s32.totalorder %s378, %s379
    %p393 = scmp.eq.s32.totalorder %s31, 5
    %p394 = por %p392, %p393
    %p396 = scmp.ne.s32.totalorder %s379, %s395
    %p397 = scmp.eq.s32.totalorder %s31, 0
    %p398 = por %p396, %p397
    %s399 = ssub.s32 %s33, %s40
    %p400 = scmp.eq.s32.totalorder %s399, 0
    %s402 = sadd.s32 %s401, 1
    %s403 = scalar_select %p400, %s401, %s402
    %p406 = pneg %p400
    %p407 = scmp.eq.s32.totalorder %s25, 5
    %p408 = por %p406, %p407
    %p409 = scmp.ne.s32.totalorder %s401, %s404
    %p410 = scmp.eq.s32.totalorder %s25, 0
    %p411 = por %p409, %p410
    %p412 = scmp.ne.s32.totalorder %s401, %s404
    %p413 = scmp.eq.s32.totalorder %s30, 5
    %p414 = por %p412, %p413
    %p415 = scmp.ne.s32.totalorder %s404, %s405
    %p416 = scmp.eq.s32.totalorder %s30, 0
    %p417 = por %p415, %p416
    %p418 = scmp.ne.s32.totalorder %s404, %s405
    %p419 = scmp.eq.s32.totalorder %s31, 5
    %p420 = por %p418, %p419
    %p422 = scmp.ne.s32.totalorder %s405, %s421
    %p423 = scmp.eq.s32.totalorder %s31, 0
    %p424 = por %p422, %p423
    %s426 = sadd.s32 %s425, 1
    %p429 = scmp.eq.s32.totalorder %s25, 5
    %p430 = scmp.ne.s32.totalorder %s425, %s427
    %p431 = scmp.eq.s32.totalorder %s25, 0
    %p432 = por %p430, %p431
    %p433 = scmp.ne.s32.totalorder %s425, %s427
    %p434 = scmp.eq.s32.totalorder %s30, 5
    %p435 = por %p433, %p434
    %p436 = scmp.ne.s32.totalorder %s427, %s428
    %p437 = scmp.eq.s32.totalorder %s30, 0
    %p438 = por %p436, %p437
    %p439 = scmp.ne.s32.totalorder %s427, %s428
    %p440 = scmp.eq.s32.totalorder %s31, 5
    %p441 = por %p439, %p440
    %p443 = scmp.ne.s32.totalorder %s428, %s442
    %p444 = scmp.eq.s32.totalorder %s31, 0
    %p445 = por %p443, %p444
    %s447 = sadd.s32 %s446, 1
    %p450 = scmp.eq.s32.totalorder %s25, 5
    %p451 = scmp.ne.s32.totalorder %s446, %s448
    %p452 = scmp.eq.s32.totalorder %s25, 0
    %p453 = por %p451, %p452
    %p454 = scmp.ne.s32.totalorder %s446, %s448
    %p455 = scmp.eq.s32.totalorder %s30, 5
    %p456 = por %p454, %p455
    %p457 = scmp.ne.s32.totalorder %s448, %s449
    %p458 = scmp.eq.s32.totalorder %s30, 0
    %p459 = por %p457, %p458
    %p460 = scmp.ne.s32.totalorder %s448, %s449
    %p461 = scmp.eq.s32.totalorder %s31, 5
    %p462 = por %p460, %p461
    %p464 = scmp.ne.s32.totalorder %s449, %s463
    %p465 = scmp.eq.s32.totalorder %s31, 0
    %p466 = por %p464, %p465
    %s468 = sadd.s32 %s467, 1
    %p471 = scmp.eq.s32.totalorder %s25, 5
    %p472 = scmp.ne.s32.totalorder %s467, %s469
    %p473 = scmp.eq.s32.totalorder %s25, 0
    %p474 = por %p472, %p473
    %p475 = scmp.ne.s32.totalorder %s467, %s469
    %p476 = scmp.eq.s32.totalorder %s30, 5
    %p477 = por %p475, %p476
    %p478 = scmp.ne.s32.totalorder %s469, %s470
    %p479 = scmp.eq.s32.totalorder %s30, 0
    %p480 = por %p478, %p479
    %p481 = scmp.ne.s32.totalorder %s469, %s470
    %p482 = scmp.eq.s32.totalorder %s31, 5
    %p483 = por %p481, %p482
    %p485 = scmp.ne.s32.totalorder %s470, %s484
    %p486 = scmp.eq.s32.totalorder %s31, 0
    %p487 = por %p485, %p486
    %s488 = ssub.s32 %s32, %s44
    %p489 = scmp.eq.s32.totalorder %s488, 0
    %s491 = sadd.s32 %s490, 1
    %s492 = scalar_select %p489, %s490, %s491
    %p495 = pneg %p489
    %p496 = scmp.eq.s32.totalorder %s25, 5
    %p497 = por %p495, %p496
    %p498 = scmp.ne.s32.totalorder %s490, %s493
    %p499 = scmp.eq.s32.totalorder %s25, 0
    %p500 = por %p498, %p499
    %p501 = scmp.ne.s32.totalorder %s490, %s493
    %p502 = scmp.eq.s32.totalorder %s30, 5
    %p503 = por %p501, %p502
    %p504 = scmp.ne.s32.totalorder %s493, %s494
    %p505 = scmp.eq.s32.totalorder %s30, 0
    %p506 = por %p504, %p505
    %p507 = scmp.ne.s32.totalorder %s493, %s494
    %p508 = scmp.eq.s32.totalorder %s31, 5
    %p509 = por %p507, %p508
    %p511 = scmp.ne.s32.totalorder %s494, %s510
    %p512 = scmp.eq.s32.totalorder %s31, 0
    %p513 = por %p511, %p512
    %s514 = ssub.s32 %s32, %s44
    %p515 = scmp.eq.s32.totalorder %s514, 0
    %s517 = sadd.s32 %s516, 1
    %s518 = scalar_select %p515, %s516, %s517
    %p521 = pneg %p515
    %p522 = scmp.eq.s32.totalorder %s25, 5
    %p523 = por %p521, %p522
    %p524 = scmp.ne.s32.totalorder %s516, %s519
    %p525 = scmp.eq.s32.totalorder %s25, 0
    %p526 = por %p524, %p525
    %p527 = scmp.ne.s32.totalorder %s516, %s519
    %p528 = scmp.eq.s32.totalorder %s30, 5
    %p529 = por %p527, %p528
    %p530 = scmp.ne.s32.totalorder %s519, %s520
    %p531 = scmp.eq.s32.totalorder %s30, 0
    %p532 = por %p530, %p531
    %p533 = scmp.ne.s32.totalorder %s519, %s520
    %p534 = scmp.eq.s32.totalorder %s31, 5
    %p535 = por %p533, %p534
    %p537 = scmp.ne.s32.totalorder %s520, %s536
    %p538 = scmp.eq.s32.totalorder %s31, 0
    %p539 = por %p537, %p538
    %p540 = scmp.le.s32.totalorder 1, %s25
    %p541 = scmp.lt.s32.totalorder %s25, 7
    %p542 = pnand %p540, %p541
    %p543 = pneg %p542
    // Predicated region
    $region9: #{forward.2} parent=5 // pred_check
      _
    $region10: #{forward.2} parent=5 // pred_check_branch
      %545 = sbr.rel (%p542) target = $region12
    $region11: #{forward.2} parent=5 // pred_region
      %s546 = ssub.s32 %s25, 1
      // Predicated region
      $region13: #{forward.2} parent=11 // pred_check
        %p547 = pneg %p84
      $region14: #{forward.2} parent=11 // pred_check_branch
        %549 = sbr.rel (%p547) target = $region16
      $region15: #{forward.2} parent=11 // pred_region
        _
      $region16: #{forward.2} parent=11 // pred_fallthru
        _
      // Predicated region
      $region17: #{forward.2} parent=11 // pred_check
        %p550 = pneg %p105
      $region18: #{forward.2} parent=11 // pred_check_branch
        %552 = sbr.rel (%p550) target = $region20
      $region19: #{forward.2} parent=11 // pred_region
        _
      $region20: #{forward.2} parent=11 // pred_fallthru
        _
      // Predicated region
      $region21: #{forward.2} parent=11 // pred_check
        %p553 = pneg %p438
      $region22: #{forward.2} parent=11 // pred_check_branch
        %555 = sbr.rel (%p553) target = $region24
      $region23: #{forward.2} parent=11 // pred_region
        _
      $region24: #{forward.2} parent=11 // pred_fallthru
        _
      // Predicated region
      $region25: #{forward.2} parent=11 // pred_check
        %p556 = pneg %p459
      $region26: #{forward.2} parent=11 // pred_check_branch
        %558 = sbr.rel (%p556) target = $region28
      $region27: #{forward.2} parent=11 // pred_region
        _
      $region28: #{forward.2} parent=11 // pred_fallthru
        _
      // Predicated region
      $region29: #{forward.2} parent=11 // pred_check
        %p559 = pneg %p480
      $region30: #{forward.2} parent=11 // pred_check_branch
        %561 = sbr.rel (%p559) target = $region32
      $region31: #{forward.2} parent=11 // pred_region
        _
      $region32: #{forward.2} parent=11 // pred_fallthru
        _
    $region12: #{forward.2} parent=5 // pred_fallthru
      _
    %p562 = scmp.lt.s32.totalorder %s25, 6
    // Predicated region
    $region33: #{forward.2} parent=5 // pred_check
      %p563 = pneg %p562
    $region34: #{forward.2} parent=5 // pred_check_branch
      %565 = sbr.rel (%p563) target = $region36
    $region35: #{forward.2} parent=5 // pred_region
      // Predicated region
      $region37: #{forward.2} parent=35 // pred_check
        %p566 = pneg %p57
      $region38: #{forward.2} parent=35 // pred_check_branch
        %568 = sbr.rel (%p566) target = $region40
      $region39: #{forward.2} parent=35 // pred_region
        %p569 = scmp.lt.s32.totalorder %s32, 1
        %s570 = scalar_select %p569, %s32, 1
        %s571 = smul.addr %s570, 3
        %s572 = smul.addr %s571, 4
        %s573 = scalar_lea.vmem %s0, %s572
      $region40: #{forward.2} parent=35 // pred_fallthru
        _
      // Predicated region
      $region41: #{forward.2} parent=35 // pred_check
        %p574 = pneg %p125
      $region42: #{forward.2} parent=35 // pred_check_branch
        %576 = sbr.rel (%p574) target = $region44
      $region43: #{forward.2} parent=35 // pred_region
        %p577 = scmp.lt.s32.totalorder %s32, 1
        %s578 = scalar_select %p577, %s32, 1
        %s579 = smul.addr %s578, 8
        %s580 = scalar_lea.vmem %s3, %s579
      $region44: #{forward.2} parent=35 // pred_fallthru
        _
      // Predicated region
      $region45: #{forward.2} parent=35 // pred_check
        %p581 = pneg %p151
      $region46: #{forward.2} parent=35 // pred_check_branch
        %583 = sbr.rel (%p581) target = $region48
      $region47: #{forward.2} parent=35 // pred_region
        %p584 = scmp.lt.s32.totalorder %s33, 2
        %s585 = scalar_select %p584, %s33, 2
        %s586 = scalar_lea.vmem %s4, %s585
      $region48: #{forward.2} parent=35 // pred_fallthru
        _
      // Predicated region
      $region49: #{forward.2} parent=35 // pred_check
        %p587 = pneg %p177
      $region50: #{forward.2} parent=35 // pred_check_branch
        %589 = sbr.rel (%p587) target = $region52
      $region51: #{forward.2} parent=35 // pred_region
        %p590 = scmp.lt.s32.totalorder %s33, 2
        %s591 = scalar_select %p590, %s33, 2
        %s592 = scalar_lea.vmem %s5, %s591
      $region52: #{forward.2} parent=35 // pred_fallthru
        _
      // Predicated region
      $region53: #{forward.2} parent=35 // pred_check
        %p593 = pneg %p203
      $region54: #{forward.2} parent=35 // pred_check_branch
        %595 = sbr.rel (%p593) target = $region56
      $region55: #{forward.2} parent=35 // pred_region
        %p596 = scmp.lt.s32.totalorder %s33, 2
        %s597 = scalar_select %p596, %s33, 2
        %s598 = smul.addr %s597, 16
        %s599 = smul.addr %s598, 4
        %s600 = scalar_lea.vmem %s6, %s599
      $region56: #{forward.2} parent=35 // pred_fallthru
        _
      // Predicated region
      $region57: #{forward.2} parent=35 // pred_check
        %p601 = pneg %p229
      $region58: #{forward.2} parent=35 // pred_check_branch
        %603 = sbr.rel (%p601) target = $region60
      $region59: #{forward.2} parent=35 // pred_region
        %p604 = scmp.lt.s32.totalorder %s33, 2
        %s605 = scalar_select %p604, %s33, 2
        %s606 = smul.addr %s605, 8
        %s607 = smul.addr %s606, 4
        %s608 = scalar_lea.vmem %s7, %s607
      $region60: #{forward.2} parent=35 // pred_fallthru
        _
      // Predicated region
      $region61: #{forward.2} parent=35 // pred_check
        %p609 = pneg %p255
      $region62: #{forward.2} parent=35 // pred_check_branch
        %611 = sbr.rel (%p609) target = $region64
      $region63: #{forward.2} parent=35 // pred_region
        %p612 = scmp.lt.s32.totalorder %s33, 2
        %s613 = scalar_select %p612, %s33, 2
        %s614 = scalar_lea.vmem %s8, %s613
      $region64: #{forward.2} parent=35 // pred_fallthru
        _
      // Predicated region
      $region65: #{forward.2} parent=35 // pred_check
        %p615 = pneg %p281
      $region66: #{forward.2} parent=35 // pred_check_branch
        %617 = sbr.rel (%p615) target = $region68
      $region67: #{forward.2} parent=35 // pred_region
        %p618 = scmp.lt.s32.totalorder %s33, 2
        %s619 = scalar_select %p618, %s33, 2
        %s620 = scalar_lea.vmem %s9, %s619
      $region68: #{forward.2} parent=35 // pred_fallthru
        _
      // Predicated region
      $region69: #{forward.2} parent=35 // pred_check
        %p621 = pneg %p307
      $region70: #{forward.2} parent=35 // pred_check_branch
        %623 = sbr.rel (%p621) target = $region72
      $region71: #{forward.2} parent=35 // pred_region
        %p624 = scmp.lt.s32.totalorder %s33, 2
        %s625 = scalar_select %p624, %s33, 2
        %s626 = scalar_lea.vmem %s10, %s625
      $region72: #{forward.2} parent=35 // pred_fallthru
        _
      // Predicated region
      $region73: #{forward.2} parent=35 // pred_check
        %p627 = pneg %p333
      $region74: #{forward.2} parent=35 // pred_check_branch
        %629 = sbr.rel (%p627) target = $region76
      $region75: #{forward.2} parent=35 // pred_region
        %p630 = scmp.lt.s32.totalorder %s33, 2
        %s631 = scalar_select %p630, %s33, 2
        %s632 = smul.addr %s631, 16
        %s633 = smul.addr %s632, 4
        %s634 = scalar_lea.vmem %s11, %s633
      $region76: #{forward.2} parent=35 // pred_fallthru
        _
      // Predicated region
      $region77: #{forward.2} parent=35 // pred_check
        %p635 = pneg %p359
      $region78: #{forward.2} parent=35 // pred_check_branch
        %637 = sbr.rel (%p635) target = $region80
      $region79: #{forward.2} parent=35 // pred_region
        %p638 = scmp.lt.s32.totalorder %s33, 2
        %s639 = scalar_select %p638, %s33, 2
        %s640 = smul.addr %s639, 2
        %s641 = scalar_lea.vmem %s12, %s640
      $region80: #{forward.2} parent=35 // pred_fallthru
        _
      // Predicated region
      $region81: #{forward.2} parent=35 // pred_check
        %p642 = pneg %p385
      $region82: #{forward.2} parent=35 // pred_check_branch
        %644 = sbr.rel (%p642) target = $region84
      $region83: #{forward.2} parent=35 // pred_region
        %p645 = scmp.lt.s32.totalorder %s33, 2
        %s646 = scalar_select %p645, %s33, 2
        %s647 = smul.addr %s646, 32
        %s648 = smul.addr %s647, 4
        %s649 = scalar_lea.vmem %s13, %s648
      $region84: #{forward.2} parent=35 // pred_fallthru
        _
      // Predicated region
      $region85: #{forward.2} parent=35 // pred_check
        %p650 = pneg %p411
      $region86: #{forward.2} parent=35 // pred_check_branch
        %652 = sbr.rel (%p650) target = $region88
      $region87: #{forward.2} parent=35 // pred_region
        %p653 = scmp.lt.s32.totalorder %s33, 2
        %s654 = scalar_select %p653, %s33, 2
        %s655 = scalar_lea.vmem %s14, %s654
      $region88: #{forward.2} parent=35 // pred_fallthru
        _
      // Predicated region
      $region89: #{forward.2} parent=35 // pred_check
        %p656 = pneg %p500
      $region90: #{forward.2} parent=35 // pred_check_branch
        %658 = sbr.rel (%p656) target = $region92
      $region91: #{forward.2} parent=35 // pred_region
        %p659 = scmp.lt.s32.totalorder %s32, 1
        %s660 = scalar_select %p659, %s32, 1
        %s661 = smul.addr %s660, 8
        %s662 = scalar_lea.vmem %s18, %s661
      $region92: #{forward.2} parent=35 // pred_fallthru
        _
    $region36: #{forward.2} parent=5 // pred_fallthru
      _
    %p663 = scmp.le.s32.totalorder 1, %s25
    %p664 = scmp.lt.s32.totalorder %s25, 7
    %p665 = pnand %p663, %p664
    %p666 = pneg %p665
    // Predicated region
    $region93: #{forward.2} parent=5 // pred_check
      _
    $region94: #{forward.2} parent=5 // pred_check_branch
      %668 = sbr.rel (%p665) target = $region96
    $region95: #{forward.2} parent=5 // pred_region
      %s669 = ssub.s32 %s25, 1
      %p670 = scmp.lt.s32.totalorder %s34, 1
      %s671 = scalar_select %p670, %s34, 1
      %s672 = smul.addr %s671, 3
      %s673 = smul.addr %s672, 4
      %s674 = scalar_lea.vmem %s0, %s673
      %p675 = pneg %p63
      %p676 = pneg %p60
      %p677 = pneg %p84
      %p678 = pneg %p81
      %p679 = pneg %p105
      %p680 = pneg %p102
      %p681 = scmp.lt.s32.totalorder %s34, 1
      %s682 = scalar_select %p681, %s34, 1
      %s683 = smul.addr %s682, 8
      %s684 = scalar_lea.vmem %s3, %s683
      %p685 = pneg %p131
      %p686 = pneg %p128
      %p687 = scmp.lt.s32.totalorder %s35, 2
      %s688 = scalar_select %p687, %s35, 2
      %s689 = scalar_lea.vmem %s4, %s688
      %p690 = pneg %p157
      %p691 = pneg %p154
      %p692 = scmp.lt.s32.totalorder %s35, 2
      %s693 = scalar_select %p692, %s35, 2
      %s694 = scalar_lea.vmem %s5, %s693
      %p695 = pneg %p183
      %p696 = pneg %p180
      %p697 = scmp.lt.s32.totalorder %s35, 2
      %s698 = scalar_select %p697, %s35, 2
      %s699 = smul.addr %s698, 16
      %s700 = smul.addr %s699, 4
      %s701 = scalar_lea.vmem %s6, %s700
      %p702 = pneg %p209
      %p703 = pneg %p206
      %p704 = scmp.lt.s32.totalorder %s35, 2
      %s705 = scalar_select %p704, %s35, 2
      %s706 = smul.addr %s705, 8
      %s707 = smul.addr %s706, 4
      %s708 = scalar_lea.vmem %s7, %s707
      %p709 = pneg %p235
      %p710 = pneg %p232
      %p711 = scmp.lt.s32.totalorder %s35, 2
      %s712 = scalar_select %p711, %s35, 2
      %s713 = scalar_lea.vmem %s8, %s712
      %p714 = pneg %p261
      %p715 = pneg %p258
      %p716 = scmp.lt.s32.totalorder %s35, 2
      %s717 = scalar_select %p716, %s35, 2
      %s718 = scalar_lea.vmem %s9, %s717
      %p719 = pneg %p287
      %p720 = pneg %p284
      %p721 = scmp.lt.s32.totalorder %s35, 2
      %s722 = scalar_select %p721, %s35, 2
      %s723 = scalar_lea.vmem %s10, %s722
      %p724 = pneg %p313
      %p725 = pneg %p310
      %p726 = scmp.lt.s32.totalorder %s35, 2
      %s727 = scalar_select %p726, %s35, 2
      %s728 = smul.addr %s727, 16
      %s729 = smul.addr %s728, 4
      %s730 = scalar_lea.vmem %s11, %s729
      %p731 = pneg %p339
      %p732 = pneg %p336
      %p733 = scmp.lt.s32.totalorder %s35, 2
      %s734 = scalar_select %p733, %s35, 2
      %s735 = smul.addr %s734, 2
      %s736 = scalar_lea.vmem %s12, %s735
      %p737 = pneg %p365
      %p738 = pneg %p362
      %p739 = scmp.lt.s32.totalorder %s35, 2
      %s740 = scalar_select %p739, %s35, 2
      %s741 = smul.addr %s740, 32
      %s742 = smul.addr %s741, 4
      %s743 = scalar_lea.vmem %s13, %s742
      %p744 = pneg %p391
      %p745 = pneg %p388
      %p746 = scmp.lt.s32.totalorder %s35, 2
      %s747 = scalar_select %p746, %s35, 2
      %s748 = scalar_lea.vmem %s14, %s747
      %p749 = pneg %p417
      %p750 = pneg %p414
      %p751 = pneg %p438
      %p752 = pneg %p435
      %p753 = pneg %p459
      %p754 = pneg %p456
      %p755 = pneg %p480
      %p756 = pneg %p477
      %p757 = scmp.lt.s32.totalorder %s34, 1
      %s758 = scalar_select %p757, %s34, 1
      %s759 = smul.addr %s758, 8
      %s760 = scalar_lea.vmem %s18, %s759
      %p761 = pneg %p506
      %p762 = pneg %p503
      %p763 = pneg %p532
      %p764 = pneg %p529
      %p765 = scmp.lt.s32.totalorder %s34, 1
      %s766 = scalar_select %p765, %s34, 1
      %s767 = smul.addr %s766, 8
      %s768 = scalar_lea.vmem %s19, %s767
      %p769 = scmp.lt.s32.totalorder %s34, 1
      %s770 = scalar_select %p769, %s34, 1
      %s771 = smul.addr %s770, 3
      %s772 = smul.addr %s771, 4
      %s773 = scalar_lea.vmem %s0, %s772
      %p774 = scmp.lt.s32.totalorder %s34, 1
      %s775 = scalar_select %p774, %s34, 1
      %s776 = smul.addr %s775, 8
      %s777 = scalar_lea.vmem %s3, %s776
      %p778 = scmp.lt.s32.totalorder %s35, 2
      %s779 = scalar_select %p778, %s35, 2
      %s780 = scalar_lea.vmem %s4, %s779
      %p781 = scmp.lt.s32.totalorder %s35, 2
      %s782 = scalar_select %p781, %s35, 2
      %s783 = scalar_lea.vmem %s5, %s782
      %p784 = scmp.lt.s32.totalorder %s35, 2
      %s785 = scalar_select %p784, %s35, 2
      %s786 = smul.addr %s785, 16
      %s787 = smul.addr %s786, 4
      %s788 = scalar_lea.vmem %s6, %s787
      %p789 = scmp.lt.s32.totalorder %s35, 2
      %s790 = scalar_select %p789, %s35, 2
      %s791 = smul.addr %s790, 8
      %s792 = smul.addr %s791, 4
      %s793 = scalar_lea.vmem %s7, %s792
      %p794 = scmp.lt.s32.totalorder %s35, 2
      %s795 = scalar_select %p794, %s35, 2
      %s796 = scalar_lea.vmem %s8, %s795
      %p797 = scmp.lt.s32.totalorder %s35, 2
      %s798 = scalar_select %p797, %s35, 2
      %s799 = scalar_lea.vmem %s9, %s798
      %p800 = scmp.lt.s32.totalorder %s35, 2
      %s801 = scalar_select %p800, %s35, 2
      %s802 = scalar_lea.vmem %s10, %s801
      %p803 = scmp.lt.s32.totalorder %s35, 2
      %s804 = scalar_select %p803, %s35, 2
      %s805 = smul.addr %s804, 16
      %s806 = smul.addr %s805, 4
      %s807 = scalar_lea.vmem %s11, %s806
      %p808 = scmp.lt.s32.totalorder %s35, 2
      %s809 = scalar_select %p808, %s35, 2
      %s810 = smul.addr %s809, 2
      %s811 = scalar_lea.vmem %s12, %s810
      %p812 = scmp.lt.s32.totalorder %s35, 2
      %s813 = scalar_select %p812, %s35, 2
      %s814 = smul.addr %s813, 32
      %s815 = smul.addr %s814, 4
      %s816 = scalar_lea.vmem %s13, %s815
      %p817 = scmp.lt.s32.totalorder %s35, 2
      %s818 = scalar_select %p817, %s35, 2
      %s819 = scalar_lea.vmem %s14, %s818
      %p820 = scmp.lt.s32.totalorder %s34, 1
      %s821 = scalar_select %p820, %s34, 1
      %s822 = smul.addr %s821, 8
      %s823 = scalar_lea.vmem %s18, %s822
      %p824 = scmp.lt.s32.totalorder %s34, 1
      %s825 = scalar_select %p824, %s34, 1
      %s826 = smul.addr %s825, 8
      %s827 = scalar_lea.vmem %s19, %s826
      %p829 = scmp.eq.s32.totalorder %s35, 0
      // Predicated region
      $region97: #{forward.2} parent=95 // pred_check
        %p830 = pneg %p829
      $region98: #{forward.2} parent=95 // pred_check_branch
        %832 = sbr.rel (%p830) target = $region100
      $region99: #{forward.2} parent=95 // pred_region
        %v833 = vld [vmem:[%s773] sm:$0xff]
        %v834 = vld [vmem:[%s773 + $0x8] sm:$0xf]
        %v835 = vld [vmem:[%s1] sm:$0xf]
        %v836 = vld [vmem:[%s1 + $0x4] sm:$0xf]
        %v837 = vld [vmem:[%s1 + $0x8] sm:$0xf]
        %v838 = vld [vmem:[%s1 + $0xc] sm:$0xf]
        %v839 = vld [vmem:[%s1 + $0x10] sm:$0xf]
        %v840 = vld [vmem:[%s1 + $0x14] sm:$0xf]
        %v841 = vld [vmem:[%s1 + $0x18] sm:$0xf]
        %v842 = vld [vmem:[%s1 + $0x1c] sm:$0xf]
        %v843 = vld [vmem:[%s1 + $0x20] sm:$0xf]
        %v844 = vld [vmem:[%s1 + $0x24] sm:$0xf]
        %v845 = vld [vmem:[%s1 + $0x28] sm:$0xf]
        %v846 = vld [vmem:[%s1 + $0x2c] sm:$0xf]
        %v847 = vld [vmem:[%s1 + $0x30] sm:$0xf]
        %v848 = vld [vmem:[%s1 + $0x34] sm:$0xf]
        %v849 = vld [vmem:[%s1 + $0x38] sm:$0xf]
        %v850 = vld [vmem:[%s1 + $0x3c] sm:$0xf]
        %v851 = vld [vmem:[%s1 + $0x40] sm:$0xf]
        %v852 = vld [vmem:[%s1 + $0x44] sm:$0xf]
        %v853 = vld [vmem:[%s1 + $0x48] sm:$0xf]
        %v854 = vld [vmem:[%s1 + $0x4c] sm:$0xf]
        %v855 = vld [vmem:[%s1 + $0x50] sm:$0xf]
        %v856 = vld [vmem:[%s1 + $0x54] sm:$0xf]
        %v857 = vld [vmem:[%s1 + $0x58] sm:$0xf]
        %v858 = vld [vmem:[%s1 + $0x5c] sm:$0xf]
        %v859 = vld [vmem:[%s1 + $0x60] sm:$0xf]
        %v860 = vld [vmem:[%s1 + $0x64] sm:$0xf]
        %v861 = vld [vmem:[%s1 + $0x68] sm:$0xf]
        %v862 = vld [vmem:[%s1 + $0x6c] sm:$0xf]
        %v863 = vld [vmem:[%s1 + $0x70] sm:$0xf]
        %v864 = vld [vmem:[%s1 + $0x74] sm:$0xf]
        %v865 = vld [vmem:[%s1 + $0x78] sm:$0xf]
        %v866 = vld [vmem:[%s1 + $0x7c] sm:$0xf]
        %v867 = vld [vmem:[%s1 + $0x80] sm:$0xf]
        %v868 = vld [vmem:[%s1 + $0x84] sm:$0xf]
        %v869 = vld [vmem:[%s1 + $0x88] sm:$0xf]
        %v870 = vld [vmem:[%s1 + $0x8c] sm:$0xf]
        %v871 = vld [vmem:[%s1 + $0x90] sm:$0xf]
        %v872 = vld [vmem:[%s1 + $0x94] sm:$0xf]
        %v873 = vld [vmem:[%s1 + $0x98] sm:$0xf]
        %v874 = vld [vmem:[%s1 + $0x9c] sm:$0xf]
        %v875 = vld [vmem:[%s1 + $0xa0] sm:$0xf]
        %v876 = vld [vmem:[%s1 + $0xa4] sm:$0xf]
        %v877 = vld [vmem:[%s1 + $0xa8] sm:$0xf]
        %v878 = vld [vmem:[%s1 + $0xac] sm:$0xf]
        %v879 = vld [vmem:[%s1 + $0xb0] sm:$0xf]
        %v880 = vld [vmem:[%s1 + $0xb4] sm:$0xf]
        %v881 = vld [vmem:[%s1 + $0xb8] sm:$0xf]
        %v882 = vld [vmem:[%s1 + $0xbc] sm:$0xf]
        %v883 = vld [vmem:[%s2] sm:$0x1]
        %v885 = vlaneseq
        %v886 = vshrl.u32 %v885, 7
        %v887 = vsub.s32 0, %v886
        %v888 = vrot.slane %v883, %v887
        %v892 = vunpack.c.l.b16 %v833
        %v893 = vunpack.c.h.b16 %v833
        %v894 = vunpack.c.l.b16 %v834
        %v895 = vpack.c.b16 %v892, %v892
        %v896 = vpack.c.b16 %v893, %v893
        %v897 = vpack.c.b16 %v894, %v894
        %v949 = vunpack.c.l.b16 %v835
        %v950 = vunpack.c.l.b16 %v836
        %v951 = vunpack.c.l.b16 %v837
        %v952 = vunpack.c.l.b16 %v838
        %v953 = vunpack.c.l.b16 %v839
        %v954 = vunpack.c.l.b16 %v840
        %v955 = vunpack.c.l.b16 %v841
        %v956 = vunpack.c.l.b16 %v842
        %v957 = vunpack.c.l.b16 %v843
        %v958 = vunpack.c.l.b16 %v844
        %v959 = vunpack.c.l.b16 %v845
        %v960 = vunpack.c.l.b16 %v846
        %v961 = vunpack.c.l.b16 %v847
        %v962 = vunpack.c.l.b16 %v848
        %v963 = vunpack.c.l.b16 %v849
        %v964 = vunpack.c.l.b16 %v850
        %v965 = vunpack.c.l.b16 %v851
        %v966 = vunpack.c.l.b16 %v852
        %v967 = vunpack.c.l.b16 %v853
        %v968 = vunpack.c.l.b16 %v854
        %v969 = vunpack.c.l.b16 %v855
        %v970 = vunpack.c.l.b16 %v856
        %v971 = vunpack.c.l.b16 %v857
        %v972 = vunpack.c.l.b16 %v858
        %v973 = vunpack.c.l.b16 %v859
        %v974 = vunpack.c.l.b16 %v860
        %v975 = vunpack.c.l.b16 %v861
        %v976 = vunpack.c.l.b16 %v862
        %v977 = vunpack.c.l.b16 %v863
        %v978 = vunpack.c.l.b16 %v864
        %v979 = vunpack.c.l.b16 %v865
        %v980 = vunpack.c.l.b16 %v866
        %v981 = vunpack.c.l.b16 %v867
        %v982 = vunpack.c.l.b16 %v868
        %v983 = vunpack.c.l.b16 %v869
        %v984 = vunpack.c.l.b16 %v870
        %v985 = vunpack.c.l.b16 %v871
        %v986 = vunpack.c.l.b16 %v872
        %v987 = vunpack.c.l.b16 %v873
        %v988 = vunpack.c.l.b16 %v874
        %v989 = vunpack.c.l.b16 %v875
        %v990 = vunpack.c.l.b16 %v876
        %v991 = vunpack.c.l.b16 %v877
        %v992 = vunpack.c.l.b16 %v878
        %v993 = vunpack.c.l.b16 %v879
        %v994 = vunpack.c.l.b16 %v880
        %v995 = vunpack.c.l.b16 %v881
        %v996 = vunpack.c.l.b16 %v882
        %v997 = vpack.c.b16 %v950, %v949
        %v998 = vpack.c.b16 %v952, %v951
        %v999 = vpack.c.b16 %v954, %v953
        %v1000 = vpack.c.b16 %v956, %v955
        %v1001 = vpack.c.b16 %v958, %v957
        %v1002 = vpack.c.b16 %v960, %v959
        %v1003 = vpack.c.b16 %v962, %v961
        %v1004 = vpack.c.b16 %v964, %v963
        %v1005 = vpack.c.b16 %v966, %v965
        %v1006 = vpack.c.b16 %v968, %v967
        %v1007 = vpack.c.b16 %v970, %v969
        %v1008 = vpack.c.b16 %v972, %v971
        %v1009 = vpack.c.b16 %v974, %v973
        %v1010 = vpack.c.b16 %v976, %v975
        %v1011 = vpack.c.b16 %v978, %v977
        %v1012 = vpack.c.b16 %v980, %v979
        %v1013 = vpack.c.b16 %v982, %v981
        %v1014 = vpack.c.b16 %v984, %v983
        %v1015 = vpack.c.b16 %v986, %v985
        %v1016 = vpack.c.b16 %v988, %v987
        %v1017 = vpack.c.b16 %v990, %v989
        %v1018 = vpack.c.b16 %v992, %v991
        %v1019 = vpack.c.b16 %v994, %v993
        %v1020 = vpack.c.b16 %v996, %v995
        %1045 = vmatprep.subr.bf16.mxu0 0
        %1046 = vmatpush1.bf16.msra.mxu0 %v1004
        %1047 = vmatprep.subr.bf16.mxu0 0
        %1048 = vmatpush1.bf16.msra.mxu0 %v1003
        %1049 = vmatprep.subr.bf16.mxu0 0
        %1050 = vmatpush1.bf16.msra.mxu0 %v1002
        %1051 = vmatprep.subr.bf16.mxu0 0
        %1052 = vmatpush1.bf16.msra.mxu0 %v1001
        %1053 = vmatprep.subr.bf16.mxu0 0
        %1054 = vmatpush1.bf16.msra.mxu0 %v1000
        %1055 = vmatprep.subr.bf16.mxu0 0
        %1056 = vmatpush1.bf16.msra.mxu0 %v999
        %1057 = vmatprep.subr.bf16.mxu0 0
        %1058 = vmatpush1.bf16.msra.mxu0 %v998
        %1059 = vmatprep.subr.bf16.mxu0 0
        %1060 = vmatpush1.bf16.msra.mxu0 %v997
        %1061 = vmatprep.subr.bf16.mxu0 0
        %1062 = vmatpush2.bf16.msra.mxu0 %v1012
        %1063 = vmatprep.subr.bf16.mxu0 0
        %1064 = vmatpush2.bf16.msra.mxu0 %v1011
        %1065 = vmatprep.subr.bf16.mxu0 0
        %1066 = vmatpush2.bf16.msra.mxu0 %v1010
        %1067 = vmatprep.subr.bf16.mxu0 0
        %1068 = vmatpush2.bf16.msra.mxu0 %v1009
        %1069 = vmatprep.subr.bf16.mxu0 0
        %1070 = vmatpush2.bf16.msra.mxu0 %v1008
        %1071 = vmatprep.subr.bf16.mxu0 0
        %1072 = vmatpush2.bf16.msra.mxu0 %v1007
        %1073 = vmatprep.subr.bf16.mxu0 0
        %1074 = vmatpush2.bf16.msra.mxu0 %v1006
        %1075 = vmatprep.subr.bf16.mxu0 0
        %1076 = vmatpush2.bf16.msra.mxu0 %v1005
        %1077 = vmatprep.mubr.bf16.mxu0 %v896
        %1078 = vmatmul.mubr.bf16.gmra.mxu0 %v895
        %v1079 = vpop.f32.mrf.mxu0
        %v1080 = vadd.f32 %v888, %v1079
        %v1081 = vpop.f32.mrf.mxu0
        %v1082 = vpop.f32.mrf.mxu0
        %v1083 = vpop.f32.mrf.mxu0
        %1084 = vdwg.mxu0
        %1085 = vmatprep.subr.bf16.mxu0 0
        %1086 = vmatpush1.bf16.msra.mxu0 %v1020
        %1087 = vmatprep.subr.bf16.mxu0 0
        %1088 = vmatpush1.bf16.msra.mxu0 %v1019
        %1089 = vmatprep.subr.bf16.mxu0 0
        %1090 = vmatpush1.bf16.msra.mxu0 %v1018
        %1091 = vmatprep.subr.bf16.mxu0 0
        %1092 = vmatpush1.bf16.msra.mxu0 %v1017
        %1093 = vmatprep.subr.bf16.mxu0 0
        %1094 = vmatpush1.bf16.msra.mxu0 %v1016
        %1095 = vmatprep.subr.bf16.mxu0 0
        %1096 = vmatpush1.bf16.msra.mxu0 %v1015
        %1097 = vmatprep.subr.bf16.mxu0 0
        %1098 = vmatpush1.bf16.msra.mxu0 %v1014
        %1099 = vmatprep.subr.bf16.mxu0 0
        %1100 = vmatpush1.bf16.msra.mxu0 %v1013
        %1101 = vmatprep.subr.bf16.mxu0 0
        %1102 = vmatpush2.bf16.msra.mxu0 0
        %1103 = vmatprep.subr.bf16.mxu0 0
        %1104 = vmatpush2.bf16.msra.mxu0 0
        %1105 = vmatprep.subr.bf16.mxu0 0
        %1106 = vmatpush2.bf16.msra.mxu0 0
        %1107 = vmatprep.subr.bf16.mxu0 0
        %1108 = vmatpush2.bf16.msra.mxu0 0
        %1109 = vmatprep.subr.bf16.mxu0 0
        %1110 = vmatpush2.bf16.msra.mxu0 0
        %1111 = vmatprep.subr.bf16.mxu0 0
        %1112 = vmatpush2.bf16.msra.mxu0 0
        %1113 = vmatprep.subr.bf16.mxu0 0
        %1114 = vmatpush2.bf16.msra.mxu0 0
        %1115 = vmatprep.subr.bf16.mxu0 0
        %1116 = vmatpush2.bf16.msra.mxu0 0
        %1117 = vmatprep.mubr.bf16.mxu0 0
        %1118 = vmatmul.mubr.bf16.gmra.mxu0 %v897
        %v1119 = vpop.f32.mrf.mxu0
        %v1120 = vadd.f32 %v1080, %v1119
        %v1121 = vpop.f32.mrf.mxu0
        %v1122 = vpop.f32.mrf.mxu0
        %v1123 = vpop.f32.mrf.mxu0
        %1124 = vdwg.mxu0
        %v1125 = vld [vmem:[%s777] sm:$0xff]
        %v1126 = vadd.f32 %v1120, %v1125
        %vm1127 = vcmask 523264
        %1128 = vst.msk [vmem:[#allocation2] sm:$0xff] %vm1127, %v1126
      $region100: #{forward.2} parent=95 // pred_fallthru
        _
      %v1129 = vld [vmem:[#allocation2] sm:$0xff]
      %v1130 = vld [vmem:[%s780] sm:$0x1]
      %v1131 = vld [vmem:[%s783] sm:$0x1]
      %v1132 = vld [vmem:[%s788] sm:$0xff]
      %v1133 = vld [vmem:[%s788 + $0x8] sm:$0xff]
      %v1134 = vld [vmem:[%s788 + $0x10] sm:$0xff]
      %v1135 = vld [vmem:[%s788 + $0x18] sm:$0xff]
      %v1136 = vld [vmem:[%s788 + $0x20] sm:$0xff]
      %v1137 = vld [vmem:[%s788 + $0x28] sm:$0xff]
      %v1138 = vld [vmem:[%s788 + $0x30] sm:$0xff]
      %v1139 = vld [vmem:[%s788 + $0x38] sm:$0xff]
      %v1140 = vld [vmem:[%s793] sm:$0xf]
      %v1141 = vld [vmem:[%s793 + $0x4] sm:$0xf]
      %v1142 = vld [vmem:[%s793 + $0x8] sm:$0xf]
      %v1143 = vld [vmem:[%s793 + $0xc] sm:$0xf]
      %v1144 = vld [vmem:[%s793 + $0x10] sm:$0xf]
      %v1145 = vld [vmem:[%s793 + $0x14] sm:$0xf]
      %v1146 = vld [vmem:[%s793 + $0x18] sm:$0xf]
      %v1147 = vld [vmem:[%s793 + $0x1c] sm:$0xf]
      %v1148 = vld [vmem:[%s796] sm:$0x1]
      %v1149 = vld [vmem:[%s799] sm:$0x1]
      %v1150 = vld [vmem:[%s802] sm:$0x1]
      %v1151 = vld [vmem:[%s807] sm:$0xff]
      %v1152 = vld [vmem:[%s807 + $0x8] sm:$0xff]
      %v1153 = vld [vmem:[%s807 + $0x10] sm:$0xff]
      %v1154 = vld [vmem:[%s807 + $0x18] sm:$0xff]
      %v1155 = vld [vmem:[%s807 + $0x20] sm:$0xff]
      %v1156 = vld [vmem:[%s807 + $0x28] sm:$0xff]
      %v1157 = vld [vmem:[%s807 + $0x30] sm:$0xff]
      %v1158 = vld [vmem:[%s807 + $0x38] sm:$0xff]
      %v1159 = vld [vmem:[%s811] sm:$0x3]
      %v1160 = vld [vmem:[%s816] sm:$0xf]
      %v1161 = vld [vmem:[%s816 + $0x4] sm:$0xf]
      %v1162 = vld [vmem:[%s816 + $0x8] sm:$0xf]
      %v1163 = vld [vmem:[%s816 + $0xc] sm:$0xf]
      %v1164 = vld [vmem:[%s816 + $0x10] sm:$0xf]
      %v1165 = vld [vmem:[%s816 + $0x14] sm:$0xf]
      %v1166 = vld [vmem:[%s816 + $0x18] sm:$0xf]
      %v1167 = vld [vmem:[%s816 + $0x1c] sm:$0xf]
      %v1168 = vld [vmem:[%s816 + $0x20] sm:$0xf]
      %v1169 = vld [vmem:[%s816 + $0x24] sm:$0xf]
      %v1170 = vld [vmem:[%s816 + $0x28] sm:$0xf]
      %v1171 = vld [vmem:[%s816 + $0x2c] sm:$0xf]
      %v1172 = vld [vmem:[%s816 + $0x30] sm:$0xf]
      %v1173 = vld [vmem:[%s816 + $0x34] sm:$0xf]
      %v1174 = vld [vmem:[%s816 + $0x38] sm:$0xf]
      %v1175 = vld [vmem:[%s816 + $0x3c] sm:$0xf]
      %v1176 = vld [vmem:[%s816 + $0x40] sm:$0xf]
      %v1177 = vld [vmem:[%s816 + $0x44] sm:$0xf]
      %v1178 = vld [vmem:[%s816 + $0x48] sm:$0xf]
      %v1179 = vld [vmem:[%s816 + $0x4c] sm:$0xf]
      %v1180 = vld [vmem:[%s816 + $0x50] sm:$0xf]
      %v1181 = vld [vmem:[%s816 + $0x54] sm:$0xf]
      %v1182 = vld [vmem:[%s816 + $0x58] sm:$0xf]
      %v1183 = vld [vmem:[%s816 + $0x5c] sm:$0xf]
      %v1184 = vld [vmem:[%s816 + $0x60] sm:$0xf]
      %v1185 = vld [vmem:[%s816 + $0x64] sm:$0xf]
      %v1186 = vld [vmem:[%s816 + $0x68] sm:$0xf]
      %v1187 = vld [vmem:[%s816 + $0x6c] sm:$0xf]
      %v1188 = vld [vmem:[%s816 + $0x70] sm:$0xf]
      %v1189 = vld [vmem:[%s816 + $0x74] sm:$0xf]
      %v1190 = vld [vmem:[%s816 + $0x78] sm:$0xf]
      %v1191 = vld [vmem:[%s816 + $0x7c] sm:$0xf]
      %v1192 = vld [vmem:[%s819] sm:$0x1]
      %vm1193 = vcmask 523264
      %v1194 = vsel %vm1193, %v1129, 0.0
      %1195 = vadd.xlane.f32.xlu0 %v1194
      %v1196 = vpop.xlane.xlu0 %1195
      %v1197 = vrcp.pop 64.0
      %v1198 = vmul.f32 %v1196, %v1197
      %v1199 = vsub.f32 %v1129, %v1198
      %v1200 = vmul.f32 %v1199, %v1199
      %v1201 = vsel %vm1193, %v1200, 0.0
      %1202 = vadd.xlane.f32.xlu0 %v1201
      %v1203 = vpop.xlane.xlu0 %1202
      %v1204 = vmul.f32 %v1203, %v1197
      %v1205 = vadd.f32 %v1204, 1e-05
      %v1206 = vrsqrt.pop %v1205
      %v1207 = vmul.f32 %v1199, %v1206
      %v1209 = vlaneseq
      %v1210 = vshrl.u32 %v1209, 7
      %v1211 = vsub.s32 0, %v1210
      %v1212 = vrot.slane %v1130, %v1211
      %v1214 = vmul.f32 %v1207, %v1212
      %v1216 = vlaneseq
      %v1217 = vshrl.u32 %v1216, 7
      %v1218 = vsub.s32 0, %v1217
      %v1219 = vrot.slane %v1131, %v1218
      %v1221 = vadd.f32 %v1214, %v1219
      %v1222 = vpack.c.bf16 %v1221, %v1221
      %v1231 = vunpack.c.l.b16 %v1132
      %v1232 = vunpack.c.h.b16 %v1132
      %v1233 = vunpack.c.l.b16 %v1133
      %v1234 = vunpack.c.h.b16 %v1133
      %v1235 = vunpack.c.l.b16 %v1134
      %v1236 = vunpack.c.h.b16 %v1134
      %v1237 = vunpack.c.l.b16 %v1135
      %v1238 = vunpack.c.h.b16 %v1135
      %v1239 = vunpack.c.l.b16 %v1136
      %v1240 = vunpack.c.h.b16 %v1136
      %v1241 = vunpack.c.l.b16 %v1137
      %v1242 = vunpack.c.h.b16 %v1137
      %v1243 = vunpack.c.l.b16 %v1138
      %v1244 = vunpack.c.h.b16 %v1138
      %v1245 = vunpack.c.l.b16 %v1139
      %v1246 = vunpack.c.h.b16 %v1139
      %v1247 = vpack.c.b16 %v1233, %v1231
      %v1248 = vpack.c.b16 %v1234, %v1232
      %v1249 = vpack.c.b16 %v1237, %v1235
      %v1250 = vpack.c.b16 %v1238, %v1236
      %v1251 = vpack.c.b16 %v1241, %v1239
      %v1252 = vpack.c.b16 %v1242, %v1240
      %v1253 = vpack.c.b16 %v1245, %v1243
      %v1254 = vpack.c.b16 %v1246, %v1244
      %v1264 = vsel %vm1193, %v1222, 0
      %1266 = vmatprep.subr.bf16.mxu0 0
      %1267 = vmatpush1.bf16.msra.mxu0 0
      %1268 = vmatprep.subr.bf16.mxu0 0
      %1269 = vmatpush1.bf16.msra.mxu0 0
      %1270 = vmatprep.subr.bf16.mxu0 0
      %1271 = vmatpush1.bf16.msra.mxu0 0
      %1272 = vmatprep.subr.bf16.mxu0 0
      %1273 = vmatpush1.bf16.msra.mxu0 0
      %1274 = vmatprep.subr.bf16.mxu0 %v1254
      %1275 = vmatpush1.bf16.msra.mxu0 %v1253
      %1276 = vmatprep.subr.bf16.mxu0 %v1252
      %1277 = vmatpush1.bf16.msra.mxu0 %v1251
      %1278 = vmatprep.subr.bf16.mxu0 %v1250
      %1279 = vmatpush1.bf16.msra.mxu0 %v1249
      %1280 = vmatprep.subr.bf16.mxu0 %v1248
      %1281 = vmatpush1.bf16.msra.mxu0 %v1247
      %1282 = vmatprep.subr.bf16.mxu0 0
      %1283 = vmatpush2.bf16.msra.mxu0 0
      %1284 = vmatprep.subr.bf16.mxu0 0
      %1285 = vmatpush2.bf16.msra.mxu0 0
      %1286 = vmatprep.subr.bf16.mxu0 0
      %1287 = vmatpush2.bf16.msra.mxu0 0
      %1288 = vmatprep.subr.bf16.mxu0 0
      %1289 = vmatpush2.bf16.msra.mxu0 0
      %1290 = vmatprep.subr.bf16.mxu0 0
      %1291 = vmatpush2.bf16.msra.mxu0 0
      %1292 = vmatprep.subr.bf16.mxu0 0
      %1293 = vmatpush2.bf16.msra.mxu0 0
      %1294 = vmatprep.subr.bf16.mxu0 0
      %1295 = vmatpush2.bf16.msra.mxu0 0
      %1296 = vmatprep.subr.bf16.mxu0 0
      %1297 = vmatpush2.bf16.msra.mxu0 0
      %1298 = vmatprep.mubr.bf16.mxu0 0
      %1299 = vmatmul.mubr.bf16.gmra.mxu0 %v1264
      %v1300 = vpop.f32.mrf.mxu0
      %v1301 = vadd.f32 0.0, %v1300
      %v1302 = vpop.f32.mrf.mxu0
      %v1303 = vadd.f32 0.0, %v1302
      %v1304 = vpop.f32.mrf.mxu0
      %v1305 = vpop.f32.mrf.mxu0
      %1306 = vdwg.mxu0
      %v1307 = vpack.c.bf16 %v1301, %v1301
      %v1308 = vpack.c.bf16 %v1303, %v1303
      %1310 = vrot.lane.b32.xlu0 %v1307, 64
      %v1311 = vpop.permute.xlu0 %1310
      %vm1312 = vcmask 130048
      %v1314 = vsel %vm1312, %v1307, 0
      %v1317 = vsel %vm1312, %v1311, 0
      %1319 = vmatprep.subr.bf16.mxu0 0
      %1320 = vmatpush1.bf16.xpose.msra.mxu0 0
      %1321 = vmatprep.subr.bf16.mxu0 0
      %1322 = vmatpush1.bf16.xpose.msra.mxu0 0
      %1323 = vmatprep.subr.bf16.mxu0 0
      %1324 = vmatpush1.bf16.xpose.msra.mxu0 0
      %1325 = vmatprep.subr.bf16.mxu0 0
      %1326 = vmatpush1.bf16.xpose.msra.mxu0 0
      %1327 = vmatprep.subr.bf16.mxu0 0
      %1328 = vmatpush1.bf16.xpose.msra.mxu0 0
      %1329 = vmatprep.subr.bf16.mxu0 0
      %1330 = vmatpush1.bf16.xpose.msra.mxu0 0
      %1331 = vmatprep.subr.bf16.mxu0 0
      %1332 = vmatpush1.bf16.xpose.msra.mxu0 0
      %1333 = vmatprep.subr.bf16.mxu0 0
      %1334 = vmatpush1.bf16.xpose.msra.mxu0 %v1317
      %1335 = vmatprep.subr.bf16.mxu0 0
      %1336 = vmatpush2.bf16.xpose.msra.mxu0 0
      %1337 = vmatprep.subr.bf16.mxu0 0
      %1338 = vmatpush2.bf16.xpose.msra.mxu0 0
      %1339 = vmatprep.subr.bf16.mxu0 0
      %1340 = vmatpush2.bf16.xpose.msra.mxu0 0
      %1341 = vmatprep.subr.bf16.mxu0 0
      %1342 = vmatpush2.bf16.xpose.msra.mxu0 0
      %1343 = vmatprep.subr.bf16.mxu0 0
      %1344 = vmatpush2.bf16.xpose.msra.mxu0 0
      %1345 = vmatprep.subr.bf16.mxu0 0
      %1346 = vmatpush2.bf16.xpose.msra.mxu0 0
      %1347 = vmatprep.subr.bf16.mxu0 0
      %1348 = vmatpush2.bf16.xpose.msra.mxu0 0
      %1349 = vmatprep.subr.bf16.mxu0 0
      %1350 = vmatpush2.bf16.xpose.msra.mxu0 0
      %1351 = vmatprep.mubr.bf16.mxu0 0
      %1352 = vmatmul.mubr.bf16.gmra.mxu0 %v1314
      %v1353 = vpop.f32.mrf.mxu0
      %v1354 = vadd.f32 0.0, %v1353
      %v1355 = vpop.f32.mrf.mxu0
      %v1356 = vpop.f32.mrf.mxu0
      %v1357 = vpop.f32.mrf.mxu0
      %1358 = vdwg.mxu0
      %vm1359 = vcmask 64512
      %v1360 = vsel %vm1359, %v1354, -inf
      %1361 = vmax.xlane.f32.xlu0 %v1360
      %v1362 = vpop.xlane.xlu0 %1361
      %v1363 = vsub.f32 %v1354, %v1362
      %v1364 = vmul.f32 %v1363, 1.442695
      %v1365 = vpow.pop %v1364
      %v1366 = vsel %vm1359, %v1365, 0.0
      %1367 = vadd.xlane.f32.xlu0 %v1366
      %v1368 = vpop.xlane.xlu0 %1367
      %v1369 = vrcp.pop %v1368
      %v1370 = vmul.f32 %v1365, %v1369
      %v1371 = vpack.c.bf16 %v1370, %v1370
      %v1373 = vsel %vm1359, %v1371, 0
      %vm1375 = vcmask 1043456
      %v1377 = vsel %vm1375, %v1308, 0
      %1379 = vmatprep.subr.bf16.mxu0 0
      %1380 = vmatpush1.bf16.msra.mxu0 0
      %1381 = vmatprep.subr.bf16.mxu0 0
      %1382 = vmatpush1.bf16.msra.mxu0 0
      %1383 = vmatprep.subr.bf16.mxu0 0
      %1384 = vmatpush1.bf16.msra.mxu0 0
      %1385 = vmatprep.subr.bf16.mxu0 0
      %1386 = vmatpush1.bf16.msra.mxu0 0
      %1387 = vmatprep.subr.bf16.mxu0 0
      %1388 = vmatpush1.bf16.msra.mxu0 0
      %1389 = vmatprep.subr.bf16.mxu0 0
      %1390 = vmatpush1.bf16.msra.mxu0 0
      %1391 = vmatprep.subr.bf16.mxu0 0
      %1392 = vmatpush1.bf16.msra.mxu0 0
      %1393 = vmatprep.subr.bf16.mxu0 0
      %1394 = vmatpush1.bf16.msra.mxu0 %v1377
      %1395 = vmatprep.subr.bf16.mxu0 0
      %1396 = vmatpush2.bf16.msra.mxu0 0
      %1397 = vmatprep.subr.bf16.mxu0 0
      %1398 = vmatpush2.bf16.msra.mxu0 0
      %1399 = vmatprep.subr.bf16.mxu0 0
      %1400 = vmatpush2.bf16.msra.mxu0 0
      %1401 = vmatprep.subr.bf16.mxu0 0
      %1402 = vmatpush2.bf16.msra.mxu0 0
      %1403 = vmatprep.subr.bf16.mxu0 0
      %1404 = vmatpush2.bf16.msra.mxu0 0
      %1405 = vmatprep.subr.bf16.mxu0 0
      %1406 = vmatpush2.bf16.msra.mxu0 0
      %1407 = vmatprep.subr.bf16.mxu0 0
      %1408 = vmatpush2.bf16.msra.mxu0 0
      %1409 = vmatprep.subr.bf16.mxu0 0
      %1410 = vmatpush2.bf16.msra.mxu0 0
      %1411 = vmatprep.mubr.bf16.mxu0 0
      %1412 = vmatmul.mubr.bf16.gmra.mxu0 %v1373
      %v1413 = vpop.f32.mrf.mxu0
      %v1414 = vadd.f32 0.0, %v1413
      %v1415 = vpop.f32.mrf.mxu0
      %v1416 = vpop.f32.mrf.mxu0
      %v1417 = vpop.f32.mrf.mxu0
      %1418 = vdwg.mxu0
      %1419 = vrot.lane.b32.xlu0 %v1307, 112
      %v1420 = vpop.permute.xlu0 %1419
      %1421 = vrot.lane.b32.xlu0 %v1307, 48
      %v1422 = vpop.permute.xlu0 %1421
      %v1424 = vsel %vm1312, %v1420, 0
      %v1427 = vsel %vm1312, %v1422, 0
      %1429 = vmatprep.subr.bf16.mxu0 0
      %1430 = vmatpush1.bf16.xpose.msra.mxu0 0
      %1431 = vmatprep.subr.bf16.mxu0 0
      %1432 = vmatpush1.bf16.xpose.msra.mxu0 0
      %1433 = vmatprep.subr.bf16.mxu0 0
      %1434 = vmatpush1.bf16.xpose.msra.mxu0 0
      %1435 = vmatprep.subr.bf16.mxu0 0
      %1436 = vmatpush1.bf16.xpose.msra.mxu0 0
      %1437 = vmatprep.subr.bf16.mxu0 0
      %1438 = vmatpush1.bf16.xpose.msra.mxu0 0
      %1439 = vmatprep.subr.bf16.mxu0 0
      %1440 = vmatpush1.bf16.xpose.msra.mxu0 0
      %1441 = vmatprep.subr.bf16.mxu0 0
      %1442 = vmatpush1.bf16.xpose.msra.mxu0 0
      %1443 = vmatprep.subr.bf16.mxu0 0
      %1444 = vmatpush1.bf16.xpose.msra.mxu0 %v1427
      %1445 = vmatprep.subr.bf16.mxu0 0
      %1446 = vmatpush2.bf16.xpose.msra.mxu0 0
      %1447 = vmatprep.subr.bf16.mxu0 0
      %1448 = vmatpush2.bf16.xpose.msra.mxu0 0
      %1449 = vmatprep.subr.bf16.mxu0 0
      %1450 = vmatpush2.bf16.xpose.msra.mxu0 0
      %1451 = vmatprep.subr.bf16.mxu0 0
      %1452 = vmatpush2.bf16.xpose.msra.mxu0 0
      %1453 = vmatprep.subr.bf16.mxu0 0
      %1454 = vmatpush2.bf16.xpose.msra.mxu0 0
      %1455 = vmatprep.subr.bf16.mxu0 0
      %1456 = vmatpush2.bf16.xpose.msra.mxu0 0
      %1457 = vmatprep.subr.bf16.mxu0 0
      %1458 = vmatpush2.bf16.xpose.msra.mxu0 0
      %1459 = vmatprep.subr.bf16.mxu0 0
      %1460 = vmatpush2.bf16.xpose.msra.mxu0 0
      %1461 = vmatprep.mubr.bf16.mxu0 0
      %1462 = vmatmul.mubr.bf16.gmra.mxu0 %v1424
      %v1463 = vpop.f32.mrf.mxu0
      %v1464 = vadd.f32 0.0, %v1463
      %v1465 = vpop.f32.mrf.mxu0
      %v1466 = vpop.f32.mrf.mxu0
      %v1467 = vpop.f32.mrf.mxu0
      %1468 = vdwg.mxu0
      %v1469 = vsel %vm1359, %v1464, -inf
      %1470 = vmax.xlane.f32.xlu0 %v1469
      %v1471 = vpop.xlane.xlu0 %1470
      %v1472 = vsub.f32 %v1464, %v1471
      %v1473 = vmul.f32 %v1472, 1.442695
      %v1474 = vpow.pop %v1473
      %v1475 = vsel %vm1359, %v1474, 0.0
      %1476 = vadd.xlane.f32.xlu0 %v1475
      %v1477 = vpop.xlane.xlu0 %1476
      %v1478 = vrcp.pop %v1477
      %v1479 = vmul.f32 %v1474, %v1478
      %v1480 = vpack.c.bf16 %v1479, %v1479
      %1482 = vrot.lane.b32.xlu0 %v1308, 112
      %v1483 = vpop.permute.xlu0 %1482
      %v1485 = vsel %vm1359, %v1480, 0
      %v1488 = vsel %vm1375, %v1483, 0
      %1490 = vmatprep.subr.bf16.mxu0 0
      %1491 = vmatpush1.bf16.msra.mxu0 0
      %1492 = vmatprep.subr.bf16.mxu0 0
      %1493 = vmatpush1.bf16.msra.mxu0 0
      %1494 = vmatprep.subr.bf16.mxu0 0
      %1495 = vmatpush1.bf16.msra.mxu0 0
      %1496 = vmatprep.subr.bf16.mxu0 0
      %1497 = vmatpush1.bf16.msra.mxu0 0
      %1498 = vmatprep.subr.bf16.mxu0 0
      %1499 = vmatpush1.bf16.msra.mxu0 0
      %1500 = vmatprep.subr.bf16.mxu0 0
      %1501 = vmatpush1.bf16.msra.mxu0 0
      %1502 = vmatprep.subr.bf16.mxu0 0
      %1503 = vmatpush1.bf16.msra.mxu0 0
      %1504 = vmatprep.subr.bf16.mxu0 0
      %1505 = vmatpush1.bf16.msra.mxu0 %v1488
      %1506 = vmatprep.subr.bf16.mxu0 0
      %1507 = vmatpush2.bf16.msra.mxu0 0
      %1508 = vmatprep.subr.bf16.mxu0 0
      %1509 = vmatpush2.bf16.msra.mxu0 0
      %1510 = vmatprep.subr.bf16.mxu0 0
      %1511 = vmatpush2.bf16.msra.mxu0 0
      %1512 = vmatprep.subr.bf16.mxu0 0
      %1513 = vmatpush2.bf16.msra.mxu0 0
      %1514 = vmatprep.subr.bf16.mxu0 0
      %1515 = vmatpush2.bf16.msra.mxu0 0
      %1516 = vmatprep.subr.bf16.mxu0 0
      %1517 = vmatpush2.bf16.msra.mxu0 0
      %1518 = vmatprep.subr.bf16.mxu0 0
      %1519 = vmatpush2.bf16.msra.mxu0 0
      %1520 = vmatprep.subr.bf16.mxu0 0
      %1521 = vmatpush2.bf16.msra.mxu0 0
      %1522 = vmatprep.mubr.bf16.mxu0 0
      %1523 = vmatmul.mubr.bf16.gmra.mxu0 %v1485
      %v1524 = vpop.f32.mrf.mxu0
      %v1525 = vadd.f32 0.0, %v1524
      %v1526 = vpop.f32.mrf.mxu0
      %v1527 = vpop.f32.mrf.mxu0
      %v1528 = vpop.f32.mrf.mxu0
      %1529 = vdwg.mxu0
      %1530 = vrot.lane.b32.xlu0 %v1307, 96
      %v1531 = vpop.permute.xlu0 %1530
      %1532 = vrot.lane.b32.xlu0 %v1307, 32
      %v1533 = vpop.permute.xlu0 %1532
      %v1535 = vsel %vm1312, %v1531, 0
      %v1538 = vsel %vm1312, %v1533, 0
      %1540 = vmatprep.subr.bf16.mxu0 0
      %1541 = vmatpush1.bf16.xpose.msra.mxu0 0
      %1542 = vmatprep.subr.bf16.mxu0 0
      %1543 = vmatpush1.bf16.xpose.msra.mxu0 0
      %1544 = vmatprep.subr.bf16.mxu0 0
      %1545 = vmatpush1.bf16.xpose.msra.mxu0 0
      %1546 = vmatprep.subr.bf16.mxu0 0
      %1547 = vmatpush1.bf16.xpose.msra.mxu0 0
      %1548 = vmatprep.subr.bf16.mxu0 0
      %1549 = vmatpush1.bf16.xpose.msra.mxu0 0
      %1550 = vmatprep.subr.bf16.mxu0 0
      %1551 = vmatpush1.bf16.xpose.msra.mxu0 0
      %1552 = vmatprep.subr.bf16.mxu0 0
      %1553 = vmatpush1.bf16.xpose.msra.mxu0 0
      %1554 = vmatprep.subr.bf16.mxu0 0
      %1555 = vmatpush1.bf16.xpose.msra.mxu0 %v1538
      %1556 = vmatprep.subr.bf16.mxu0 0
      %1557 = vmatpush2.bf16.xpose.msra.mxu0 0
      %1558 = vmatprep.subr.bf16.mxu0 0
      %1559 = vmatpush2.bf16.xpose.msra.mxu0 0
      %1560 = vmatprep.subr.bf16.mxu0 0
      %1561 = vmatpush2.bf16.xpose.msra.mxu0 0
      %1562 = vmatprep.subr.bf16.mxu0 0
      %1563 = vmatpush2.bf16.xpose.msra.mxu0 0
      %1564 = vmatprep.subr.bf16.mxu0 0
      %1565 = vmatpush2.bf16.xpose.msra.mxu0 0
      %1566 = vmatprep.subr.bf16.mxu0 0
      %1567 = vmatpush2.bf16.xpose.msra.mxu0 0
      %1568 = vmatprep.subr.bf16.mxu0 0
      %1569 = vmatpush2.bf16.xpose.msra.mxu0 0
      %1570 = vmatprep.subr.bf16.mxu0 0
      %1571 = vmatpush2.bf16.xpose.msra.mxu0 0
      %1572 = vmatprep.mubr.bf16.mxu0 0
      %1573 = vmatmul.mubr.bf16.gmra.mxu0 %v1535
      %v1574 = vpop.f32.mrf.mxu0
      %v1575 = vadd.f32 0.0, %v1574
      %v1576 = vpop.f32.mrf.mxu0
      %v1577 = vpop.f32.mrf.mxu0
      %v1578 = vpop.f32.mrf.mxu0
      %1579 = vdwg.mxu0
      %v1580 = vsel %vm1359, %v1575, -inf
      %1581 = vmax.xlane.f32.xlu0 %v1580
      %v1582 = vpop.xlane.xlu0 %1581
      %v1583 = vsub.f32 %v1575, %v1582
      %v1584 = vmul.f32 %v1583, 1.442695
      %v1585 = vpow.pop %v1584
      %v1586 = vsel %vm1359, %v1585, 0.0
      %1587 = vadd.xlane.f32.xlu0 %v1586
      %v1588 = vpop.xlane.xlu0 %1587
      %v1589 = vrcp.pop %v1588
      %v1590 = vmul.f32 %v1585, %v1589
      %v1591 = vpack.c.bf16 %v1590, %v1590
      %1592 = vrot.lane.b32.xlu0 %v1308, 96
      %v1593 = vpop.permute.xlu0 %1592
      %v1595 = vsel %vm1359, %v1591, 0
      %v1598 = vsel %vm1375, %v1593, 0
      %1600 = vmatprep.subr.bf16.mxu0 0
      %1601 = vmatpush1.bf16.msra.mxu0 0
      %1602 = vmatprep.subr.bf16.mxu0 0
      %1603 = vmatpush1.bf16.msra.mxu0 0
      %1604 = vmatprep.subr.bf16.mxu0 0
      %1605 = vmatpush1.bf16.msra.mxu0 0
      %1606 = vmatprep.subr.bf16.mxu0 0
      %1607 = vmatpush1.bf16.msra.mxu0 0
      %1608 = vmatprep.subr.bf16.mxu0 0
      %1609 = vmatpush1.bf16.msra.mxu0 0
      %1610 = vmatprep.subr.bf16.mxu0 0
      %1611 = vmatpush1.bf16.msra.mxu0 0
      %1612 = vmatprep.subr.bf16.mxu0 0
      %1613 = vmatpush1.bf16.msra.mxu0 0
      %1614 = vmatprep.subr.bf16.mxu0 0
      %1615 = vmatpush1.bf16.msra.mxu0 %v1598
      %1616 = vmatprep.subr.bf16.mxu0 0
      %1617 = vmatpush2.bf16.msra.mxu0 0
      %1618 = vmatprep.subr.bf16.mxu0 0
      %1619 = vmatpush2.bf16.msra.mxu0 0
      %1620 = vmatprep.subr.bf16.mxu0 0
      %1621 = vmatpush2.bf16.msra.mxu0 0
      %1622 = vmatprep.subr.bf16.mxu0 0
      %1623 = vmatpush2.bf16.msra.mxu0 0
      %1624 = vmatprep.subr.bf16.mxu0 0
      %1625 = vmatpush2.bf16.msra.mxu0 0
      %1626 = vmatprep.subr.bf16.mxu0 0
      %1627 = vmatpush2.bf16.msra.mxu0 0
      %1628 = vmatprep.subr.bf16.mxu0 0
      %1629 = vmatpush2.bf16.msra.mxu0 0
      %1630 = vmatprep.subr.bf16.mxu0 0
      %1631 = vmatpush2.bf16.msra.mxu0 0
      %1632 = vmatprep.mubr.bf16.mxu0 0
      %1633 = vmatmul.mubr.bf16.gmra.mxu0 %v1595
      %v1634 = vpop.f32.mrf.mxu0
      %v1635 = vadd.f32 0.0, %v1634
      %v1636 = vpop.f32.mrf.mxu0
      %v1637 = vpop.f32.mrf.mxu0
      %v1638 = vpop.f32.mrf.mxu0
      %1639 = vdwg.mxu0
      %1640 = vrot.lane.b32.xlu0 %v1307, 80
      %v1641 = vpop.permute.xlu0 %1640
      %1642 = vrot.lane.b32.xlu0 %v1307, 16
      %v1643 = vpop.permute.xlu0 %1642
      %v1645 = vsel %vm1312, %v1641, 0
      %v1648 = vsel %vm1312, %v1643, 0
      %1650 = vmatprep.subr.bf16.mxu0 0
      %1651 = vmatpush1.bf16.xpose.msra.mxu0 0
      %1652 = vmatprep.subr.bf16.mxu0 0
      %1653 = vmatpush1.bf16.xpose.msra.mxu0 0
      %1654 = vmatprep.subr.bf16.mxu0 0
      %1655 = vmatpush1.bf16.xpose.msra.mxu0 0
      %1656 = vmatprep.subr.bf16.mxu0 0
      %1657 = vmatpush1.bf16.xpose.msra.mxu0 0
      %1658 = vmatprep.subr.bf16.mxu0 0
      %1659 = vmatpush1.bf16.xpose.msra.mxu0 0
      %1660 = vmatprep.subr.bf16.mxu0 0
      %1661 = vmatpush1.bf16.xpose.msra.mxu0 0
      %1662 = vmatprep.subr.bf16.mxu0 0
      %1663 = vmatpush1.bf16.xpose.msra.mxu0 0
      %1664 = vmatprep.subr.bf16.mxu0 0
      %1665 = vmatpush1.bf16.xpose.msra.mxu0 %v1648
      %1666 = vmatprep.subr.bf16.mxu0 0
      %1667 = vmatpush2.bf16.xpose.msra.mxu0 0
      %1668 = vmatprep.subr.bf16.mxu0 0
      %1669 = vmatpush2.bf16.xpose.msra.mxu0 0
      %1670 = vmatprep.subr.bf16.mxu0 0
      %1671 = vmatpush2.bf16.xpose.msra.mxu0 0
      %1672 = vmatprep.subr.bf16.mxu0 0
      %1673 = vmatpush2.bf16.xpose.msra.mxu0 0
      %1674 = vmatprep.subr.bf16.mxu0 0
      %1675 = vmatpush2.bf16.xpose.msra.mxu0 0
      %1676 = vmatprep.subr.bf16.mxu0 0
      %1677 = vmatpush2.bf16.xpose.msra.mxu0 0
      %1678 = vmatprep.subr.bf16.mxu0 0
      %1679 = vmatpush2.bf16.xpose.msra.mxu0 0
      %1680 = vmatprep.subr.bf16.mxu0 0
      %1681 = vmatpush2.bf16.xpose.msra.mxu0 0
      %1682 = vmatprep.mubr.bf16.mxu0 0
      %1683 = vmatmul.mubr.bf16.gmra.mxu0 %v1645
      %v1684 = vpop.f32.mrf.mxu0
      %v1685 = vadd.f32 0.0, %v1684
      %v1686 = vpop.f32.mrf.mxu0
      %v1687 = vpop.f32.mrf.mxu0
      %v1688 = vpop.f32.mrf.mxu0
      %1689 = vdwg.mxu0
      %v1690 = vsel %vm1359, %v1685, -inf
      %1691 = vmax.xlane.f32.xlu0 %v1690
      %v1692 = vpop.xlane.xlu0 %1691
      %v1693 = vsub.f32 %v1685, %v1692
      %v1694 = vmul.f32 %v1693, 1.442695
      %v1695 = vpow.pop %v1694
      %v1696 = vsel %vm1359, %v1695, 0.0
      %1697 = vadd.xlane.f32.xlu0 %v1696
      %v1698 = vpop.xlane.xlu0 %1697
      %v1699 = vrcp.pop %v1698
      %v1700 = vmul.f32 %v1695, %v1699
      %v1701 = vpack.c.bf16 %v1700, %v1700
      %1702 = vrot.lane.b32.xlu0 %v1308, 80
      %v1703 = vpop.permute.xlu0 %1702
      %v1705 = vsel %vm1359, %v1701, 0
      %v1708 = vsel %vm1375, %v1703, 0
      %1710 = vmatprep.subr.bf16.mxu0 0
      %1711 = vmatpush1.bf16.msra.mxu0 0
      %1712 = vmatprep.subr.bf16.mxu0 0
      %1713 = vmatpush1.bf16.msra.mxu0 0
      %1714 = vmatprep.subr.bf16.mxu0 0
      %1715 = vmatpush1.bf16.msra.mxu0 0
      %1716 = vmatprep.subr.bf16.mxu0 0
      %1717 = vmatpush1.bf16.msra.mxu0 0
      %1718 = vmatprep.subr.bf16.mxu0 0
      %1719 = vmatpush1.bf16.msra.mxu0 0
      %1720 = vmatprep.subr.bf16.mxu0 0
      %1721 = vmatpush1.bf16.msra.mxu0 0
      %1722 = vmatprep.subr.bf16.mxu0 0
      %1723 = vmatpush1.bf16.msra.mxu0 0
      %1724 = vmatprep.subr.bf16.mxu0 0
      %1725 = vmatpush1.bf16.msra.mxu0 %v1708
      %1726 = vmatprep.subr.bf16.mxu0 0
      %1727 = vmatpush2.bf16.msra.mxu0 0
      %1728 = vmatprep.subr.bf16.mxu0 0
      %1729 = vmatpush2.bf16.msra.mxu0 0
      %1730 = vmatprep.subr.bf16.mxu0 0
      %1731 = vmatpush2.bf16.msra.mxu0 0
      %1732 = vmatprep.subr.bf16.mxu0 0
      %1733 = vmatpush2.bf16.msra.mxu0 0
      %1734 = vmatprep.subr.bf16.mxu0 0
      %1735 = vmatpush2.bf16.msra.mxu0 0
      %1736 = vmatprep.subr.bf16.mxu0 0
      %1737 = vmatpush2.bf16.msra.mxu0 0
      %1738 = vmatprep.subr.bf16.mxu0 0
      %1739 = vmatpush2.bf16.msra.mxu0 0
      %1740 = vmatprep.subr.bf16.mxu0 0
      %1741 = vmatpush2.bf16.msra.mxu0 0
      %1742 = vmatprep.mubr.bf16.mxu0 0
      %1743 = vmatmul.mubr.bf16.gmra.mxu0 %v1705
      %v1744 = vpop.f32.mrf.mxu0
      %v1745 = vadd.f32 0.0, %v1744
      %v1746 = vpop.f32.mrf.mxu0
      %v1747 = vpop.f32.mrf.mxu0
      %v1748 = vpop.f32.mrf.mxu0
      %1749 = vdwg.mxu0
      %1751 = vrot.lane.b32.xlu0 %v1525, 16
      %v1752 = vpop.permute.xlu0 %1751
      %1755 = vrot.lane.b32.xlu0 %v1635, 32
      %v1756 = vpop.permute.xlu0 %1755
      %1759 = vrot.lane.b32.xlu0 %v1745, 48
      %v1760 = vpop.permute.xlu0 %1759
      %v1762 = vsel %vm1312, %v1414, %v1752
      %vm1763 = vcmask 261120
      %v1764 = vsel %vm1763, %v1762, %v1756
      %vm1765 = vcmask 392192
      %v1766 = vsel %vm1765, %v1764, %v1760
      %v1767 = vpack.c.bf16 %v1766, %v1766
      %v1776 = vunpack.c.l.b16 %v1140
      %v1777 = vunpack.c.l.b16 %v1141
      %v1778 = vunpack.c.l.b16 %v1142
      %v1779 = vunpack.c.l.b16 %v1143
      %v1780 = vunpack.c.l.b16 %v1144
      %v1781 = vunpack.c.l.b16 %v1145
      %v1782 = vunpack.c.l.b16 %v1146
      %v1783 = vunpack.c.l.b16 %v1147
      %v1784 = vpack.c.b16 %v1777, %v1776
      %v1785 = vpack.c.b16 %v1779, %v1778
      %v1786 = vpack.c.b16 %v1781, %v1780
      %v1787 = vpack.c.b16 %v1783, %v1782
      %v1793 = vsel %vm1193, %v1767, 0
      %1795 = vmatprep.subr.bf16.mxu0 0
      %1796 = vmatpush1.bf16.msra.mxu0 0
      %1797 = vmatprep.subr.bf16.mxu0 0
      %1798 = vmatpush1.bf16.msra.mxu0 0
      %1799 = vmatprep.subr.bf16.mxu0 0
      %1800 = vmatpush1.bf16.msra.mxu0 0
      %1801 = vmatprep.subr.bf16.mxu0 0
      %1802 = vmatpush1.bf16.msra.mxu0 0
      %1803 = vmatprep.subr.bf16.mxu0 0
      %1804 = vmatpush1.bf16.msra.mxu0 %v1787
      %1805 = vmatprep.subr.bf16.mxu0 0
      %1806 = vmatpush1.bf16.msra.mxu0 %v1786
      %1807 = vmatprep.subr.bf16.mxu0 0
      %1808 = vmatpush1.bf16.msra.mxu0 %v1785
      %1809 = vmatprep.subr.bf16.mxu0 0
      %1810 = vmatpush1.bf16.msra.mxu0 %v1784
      %1811 = vmatprep.subr.bf16.mxu0 0
      %1812 = vmatpush2.bf16.msra.mxu0 0
      %1813 = vmatprep.subr.bf16.mxu0 0
      %1814 = vmatpush2.bf16.msra.mxu0 0
      %1815 = vmatprep.subr.bf16.mxu0 0
      %1816 = vmatpush2.bf16.msra.mxu0 0
      %1817 = vmatprep.subr.bf16.mxu0 0
      %1818 = vmatpush2.bf16.msra.mxu0 0
      %1819 = vmatprep.subr.bf16.mxu0 0
      %1820 = vmatpush2.bf16.msra.mxu0 0
      %1821 = vmatprep.subr.bf16.mxu0 0
      %1822 = vmatpush2.bf16.msra.mxu0 0
      %1823 = vmatprep.subr.bf16.mxu0 0
      %1824 = vmatpush2.bf16.msra.mxu0 0
      %1825 = vmatprep.subr.bf16.mxu0 0
      %1826 = vmatpush2.bf16.msra.mxu0 0
      %1827 = vmatprep.mubr.bf16.mxu0 0
      %1828 = vmatmul.mubr.bf16.gmra.mxu0 %v1793
      %v1829 = vpop.f32.mrf.mxu0
      %v1830 = vadd.f32 0.0, %v1829
      %v1831 = vpop.f32.mrf.mxu0
      %v1832 = vpop.f32.mrf.mxu0
      %v1833 = vpop.f32.mrf.mxu0
      %1834 = vdwg.mxu0
      %v1835 = vadd.f32 %v1129, %v1830
      %v1837 = vlaneseq
      %v1838 = vshrl.u32 %v1837, 7
      %v1839 = vsub.s32 0, %v1838
      %v1840 = vrot.slane %v1148, %v1839
      %v1842 = vadd.f32 %v1835, %v1840
      %v1843 = vsel %vm1193, %v1842, 0.0
      %1844 = vadd.xlane.f32.xlu0 %v1843
      %v1845 = vpop.xlane.xlu0 %1844
      %v1846 = vmul.f32 %v1845, %v1197
      %v1847 = vsub.f32 %v1842, %v1846
      %v1848 = vmul.f32 %v1847, %v1847
      %v1849 = vsel %vm1193, %v1848, 0.0
      %1850 = vadd.xlane.f32.xlu0 %v1849
      %v1851 = vpop.xlane.xlu0 %1850
      %v1852 = vmul.f32 %v1851, %v1197
      %v1853 = vadd.f32 %v1852, 1e-05
      %v1854 = vrsqrt.pop %v1853
      %v1855 = vmul.f32 %v1847, %v1854
      %v1857 = vlaneseq
      %v1858 = vshrl.u32 %v1857, 7
      %v1859 = vsub.s32 0, %v1858
      %v1860 = vrot.slane %v1149, %v1859
      %v1862 = vmul.f32 %v1855, %v1860
      %v1864 = vlaneseq
      %v1865 = vshrl.u32 %v1864, 7
      %v1866 = vsub.s32 0, %v1865
      %v1867 = vrot.slane %v1150, %v1866
      %v1869 = vadd.f32 %v1862, %v1867
      %v1870 = vpack.c.bf16 %v1869, %v1869
      %v1872 = vlaneseq
      %v1873 = vshrl.u32 %v1872, 7
      %v1874 = vsub.s32 0, %v1873
      %v1875 = vrot.slane %v1159, %v1874
      %v1876 = vlaneseq
      %v1877 = vshrl.u32 %v1876, 7
      %v1878 = vsub.s32 1, %v1877
      %v1879 = vrot.slane %v1159, %v1878
      %v1890 = vunpack.c.l.b16 %v1151
      %v1891 = vunpack.c.h.b16 %v1151
      %v1892 = vunpack.c.l.b16 %v1152
      %v1893 = vunpack.c.h.b16 %v1152
      %v1894 = vunpack.c.l.b16 %v1153
      %v1895 = vunpack.c.h.b16 %v1153
      %v1896 = vunpack.c.l.b16 %v1154
      %v1897 = vunpack.c.h.b16 %v1154
      %v1898 = vunpack.c.l.b16 %v1155
      %v1899 = vunpack.c.h.b16 %v1155
      %v1900 = vunpack.c.l.b16 %v1156
      %v1901 = vunpack.c.h.b16 %v1156
      %v1902 = vunpack.c.l.b16 %v1157
      %v1903 = vunpack.c.h.b16 %v1157
      %v1904 = vunpack.c.l.b16 %v1158
      %v1905 = vunpack.c.h.b16 %v1158
      %v1906 = vpack.c.b16 %v1892, %v1890
      %v1907 = vpack.c.b16 %v1893, %v1891
      %v1908 = vpack.c.b16 %v1896, %v1894
      %v1909 = vpack.c.b16 %v1897, %v1895
      %v1910 = vpack.c.b16 %v1900, %v1898
      %v1911 = vpack.c.b16 %v1901, %v1899
      %v1912 = vpack.c.b16 %v1904, %v1902
      %v1913 = vpack.c.b16 %v1905, %v1903
      %v1923 = vsel %vm1193, %v1870, 0
      %1925 = vmatprep.subr.bf16.mxu0 0
      %1926 = vmatpush1.bf16.msra.mxu0 0
      %1927 = vmatprep.subr.bf16.mxu0 0
      %1928 = vmatpush1.bf16.msra.mxu0 0
      %1929 = vmatprep.subr.bf16.mxu0 0
      %1930 = vmatpush1.bf16.msra.mxu0 0
      %1931 = vmatprep.subr.bf16.mxu0 0
      %1932 = vmatpush1.bf16.msra.mxu0 0
      %1933 = vmatprep.subr.bf16.mxu0 %v1913
      %1934 = vmatpush1.bf16.msra.mxu0 %v1912
      %1935 = vmatprep.subr.bf16.mxu0 %v1911
      %1936 = vmatpush1.bf16.msra.mxu0 %v1910
      %1937 = vmatprep.subr.bf16.mxu0 %v1909
      %1938 = vmatpush1.bf16.msra.mxu0 %v1908
      %1939 = vmatprep.subr.bf16.mxu0 %v1907
      %1940 = vmatpush1.bf16.msra.mxu0 %v1906
      %1941 = vmatprep.subr.bf16.mxu0 0
      %1942 = vmatpush2.bf16.msra.mxu0 0
      %1943 = vmatprep.subr.bf16.mxu0 0
      %1944 = vmatpush2.bf16.msra.mxu0 0
      %1945 = vmatprep.subr.bf16.mxu0 0
      %1946 = vmatpush2.bf16.msra.mxu0 0
      %1947 = vmatprep.subr.bf16.mxu0 0
      %1948 = vmatpush2.bf16.msra.mxu0 0
      %1949 = vmatprep.subr.bf16.mxu0 0
      %1950 = vmatpush2.bf16.msra.mxu0 0
      %1951 = vmatprep.subr.bf16.mxu0 0
      %1952 = vmatpush2.bf16.msra.mxu0 0
      %1953 = vmatprep.subr.bf16.mxu0 0
      %1954 = vmatpush2.bf16.msra.mxu0 0
      %1955 = vmatprep.subr.bf16.mxu0 0
      %1956 = vmatpush2.bf16.msra.mxu0 0
      %1957 = vmatprep.mubr.bf16.mxu0 0
      %1958 = vmatmul.mubr.bf16.gmra.mxu0 %v1923
      %v1959 = vpop.f32.mrf.mxu0
      %v1960 = vadd.f32 %v1875, %v1959
      %v1961 = vpop.f32.mrf.mxu0
      %v1962 = vadd.f32 %v1879, %v1961
      %v1963 = vpop.f32.mrf.mxu0
      %v1964 = vpop.f32.mrf.mxu0
      %1965 = vdwg.mxu0
      %v1966 = vmul.f32 %v1960, %v1960
      %v1967 = vmul.f32 %v1962, %v1962
      %v1968 = vmul.f32 %v1960, %v1966
      %v1969 = vmul.f32 %v1962, %v1967
      %v1970 = vmul.f32 %v1968, 0.044715
      %v1971 = vmul.f32 %v1969, 0.044715
      %v1972 = vadd.f32 %v1960, %v1970
      %v1973 = vadd.f32 %v1962, %v1971
      %v1974 = vmul.f32 %v1972, 0.7978846
      %v1975 = vmul.f32 %v1973, 0.7978846
      %v1976 = vtanh.pop %v1974
      %v1977 = vtanh.pop %v1975
      %v1978 = vadd.f32 %v1976, 1.0
      %v1979 = vadd.f32 %v1977, 1.0
      %v1980 = vmul.f32 %v1978, 0.5
      %v1981 = vmul.f32 %v1979, 0.5
      %v1982 = vmul.f32 %v1960, %v1980
      %v1983 = vmul.f32 %v1962, %v1981
      %v1984 = vpack.c.bf16 %v1982, %v1982
      %v1985 = vpack.c.bf16 %v1983, %v1983
      %v1987 = vlaneseq
      %v1988 = vshrl.u32 %v1987, 7
      %v1989 = vsub.s32 0, %v1988
      %v1990 = vrot.slane %v1192, %v1989
      %v2024 = vunpack.c.l.b16 %v1160
      %v2025 = vunpack.c.l.b16 %v1161
      %v2026 = vunpack.c.l.b16 %v1162
      %v2027 = vunpack.c.l.b16 %v1163
      %v2028 = vunpack.c.l.b16 %v1164
      %v2029 = vunpack.c.l.b16 %v1165
      %v2030 = vunpack.c.l.b16 %v1166
      %v2031 = vunpack.c.l.b16 %v1167
      %v2032 = vunpack.c.l.b16 %v1168
      %v2033 = vunpack.c.l.b16 %v1169
      %v2034 = vunpack.c.l.b16 %v1170
      %v2035 = vunpack.c.l.b16 %v1171
      %v2036 = vunpack.c.l.b16 %v1172
      %v2037 = vunpack.c.l.b16 %v1173
      %v2038 = vunpack.c.l.b16 %v1174
      %v2039 = vunpack.c.l.b16 %v1175
      %v2040 = vunpack.c.l.b16 %v1176
      %v2041 = vunpack.c.l.b16 %v1177
      %v2042 = vunpack.c.l.b16 %v1178
      %v2043 = vunpack.c.l.b16 %v1179
      %v2044 = vunpack.c.l.b16 %v1180
      %v2045 = vunpack.c.l.b16 %v1181
      %v2046 = vunpack.c.l.b16 %v1182
      %v2047 = vunpack.c.l.b16 %v1183
      %v2048 = vunpack.c.l.b16 %v1184
      %v2049 = vunpack.c.l.b16 %v1185
      %v2050 = vunpack.c.l.b16 %v1186
      %v2051 = vunpack.c.l.b16 %v1187
      %v2052 = vunpack.c.l.b16 %v1188
      %v2053 = vunpack.c.l.b16 %v1189
      %v2054 = vunpack.c.l.b16 %v1190
      %v2055 = vunpack.c.l.b16 %v1191
      %v2056 = vpack.c.b16 %v2025, %v2024
      %v2057 = vpack.c.b16 %v2027, %v2026
      %v2058 = vpack.c.b16 %v2029, %v2028
      %v2059 = vpack.c.b16 %v2031, %v2030
      %v2060 = vpack.c.b16 %v2033, %v2032
      %v2061 = vpack.c.b16 %v2035, %v2034
      %v2062 = vpack.c.b16 %v2037, %v2036
      %v2063 = vpack.c.b16 %v2039, %v2038
      %v2064 = vpack.c.b16 %v2041, %v2040
      %v2065 = vpack.c.b16 %v2043, %v2042
      %v2066 = vpack.c.b16 %v2045, %v2044
      %v2067 = vpack.c.b16 %v2047, %v2046
      %v2068 = vpack.c.b16 %v2049, %v2048
      %v2069 = vpack.c.b16 %v2051, %v2050
      %v2070 = vpack.c.b16 %v2053, %v2052
      %v2071 = vpack.c.b16 %v2055, %v2054
      %2088 = vmatprep.subr.bf16.mxu0 0
      %2089 = vmatpush1.bf16.msra.mxu0 %v2063
      %2090 = vmatprep.subr.bf16.mxu0 0
      %2091 = vmatpush1.bf16.msra.mxu0 %v2062
      %2092 = vmatprep.subr.bf16.mxu0 0
      %2093 = vmatpush1.bf16.msra.mxu0 %v2061
      %2094 = vmatprep.subr.bf16.mxu0 0
      %2095 = vmatpush1.bf16.msra.mxu0 %v2060
      %2096 = vmatprep.subr.bf16.mxu0 0
      %2097 = vmatpush1.bf16.msra.mxu0 %v2059
      %2098 = vmatprep.subr.bf16.mxu0 0
      %2099 = vmatpush1.bf16.msra.mxu0 %v2058
      %2100 = vmatprep.subr.bf16.mxu0 0
      %2101 = vmatpush1.bf16.msra.mxu0 %v2057
      %2102 = vmatprep.subr.bf16.mxu0 0
      %2103 = vmatpush1.bf16.msra.mxu0 %v2056
      %2104 = vmatprep.subr.bf16.mxu0 0
      %2105 = vmatpush2.bf16.msra.mxu0 %v2071
      %2106 = vmatprep.subr.bf16.mxu0 0
      %2107 = vmatpush2.bf16.msra.mxu0 %v2070
      %2108 = vmatprep.subr.bf16.mxu0 0
      %2109 = vmatpush2.bf16.msra.mxu0 %v2069
      %2110 = vmatprep.subr.bf16.mxu0 0
      %2111 = vmatpush2.bf16.msra.mxu0 %v2068
      %2112 = vmatprep.subr.bf16.mxu0 0
      %2113 = vmatpush2.bf16.msra.mxu0 %v2067
      %2114 = vmatprep.subr.bf16.mxu0 0
      %2115 = vmatpush2.bf16.msra.mxu0 %v2066
      %2116 = vmatprep.subr.bf16.mxu0 0
      %2117 = vmatpush2.bf16.msra.mxu0 %v2065
      %2118 = vmatprep.subr.bf16.mxu0 0
      %2119 = vmatpush2.bf16.msra.mxu0 %v2064
      %2120 = vmatprep.mubr.bf16.mxu0 %v1985
      %2121 = vmatmul.mubr.bf16.gmra.mxu0 %v1984
      %v2122 = vpop.f32.mrf.mxu0
      %v2123 = vadd.f32 %v1990, %v2122
      %v2124 = vpop.f32.mrf.mxu0
      %v2125 = vpop.f32.mrf.mxu0
      %v2126 = vpop.f32.mrf.mxu0
      %2127 = vdwg.mxu0
      %v2128 = vadd.f32 %v1842, %v2123
      %2129 = vst.msk [vmem:[#allocation2] sm:$0xff] %vm1193, %v2128
      %p2130 = scmp.eq.s32.totalorder %s35, 2
      // Predicated region
      $region101: #{forward.2} parent=95 // pred_check
        %p2131 = pneg %p2130
      $region102: #{forward.2} parent=95 // pred_check_branch
        %2133 = sbr.rel (%p2131) target = $region104
      $region103: #{forward.2} parent=95 // pred_region
        %v2134 = vld [vmem:[#allocation2] sm:$0xff]
        %v2135 = vld [vmem:[%s15] sm:$0x1]
        %v2136 = vld [vmem:[%s16] sm:$0x1]
        %v2137 = vsel %vm1193, %v2134, 0.0
        %2138 = vadd.xlane.f32.xlu0 %v2137
        %v2139 = vpop.xlane.xlu0 %2138
        %v2140 = vmul.f32 %v2139, %v1197
        %v2141 = vsub.f32 %v2134, %v2140
        %v2142 = vmul.f32 %v2141, %v2141
        %v2143 = vsel %vm1193, %v2142, 0.0
        %2144 = vadd.xlane.f32.xlu0 %v2143
        %v2145 = vpop.xlane.xlu0 %2144
        %v2146 = vmul.f32 %v2145, %v1197
        %v2147 = vadd.f32 %v2146, 1e-05
        %v2148 = vrsqrt.pop %v2147
        %v2149 = vmul.f32 %v2141, %v2148
        %v2151 = vlaneseq
        %v2152 = vshrl.u32 %v2151, 7
        %v2153 = vsub.s32 0, %v2152
        %v2154 = vrot.slane %v2135, %v2153
        %v2156 = vmul.f32 %v2149, %v2154
        %v2158 = vlaneseq
        %v2159 = vshrl.u32 %v2158, 7
        %v2160 = vsub.s32 0, %v2159
        %v2161 = vrot.slane %v2136, %v2160
        %v2163 = vadd.f32 %v2156, %v2161
        %v2164 = vpack.c.bf16 %v2163, %v2163
        %v2165 = vld [vmem:[%s17] sm:$0xf]
        %v2166 = vld [vmem:[%s17 + $0x4] sm:$0xf]
        %v2167 = vld [vmem:[%s17 + $0x8] sm:$0xf]
        %v2168 = vld [vmem:[%s17 + $0xc] sm:$0xf]
        %v2169 = vld [vmem:[%s17 + $0x10] sm:$0xf]
        %v2170 = vld [vmem:[%s17 + $0x14] sm:$0xf]
        %v2171 = vld [vmem:[%s17 + $0x18] sm:$0xf]
        %v2172 = vld [vmem:[%s17 + $0x1c] sm:$0xf]
        %v2173 = vld [vmem:[%s823] sm:$0xff]
        %v2182 = vunpack.c.l.b16 %v2165
        %v2183 = vunpack.c.l.b16 %v2166
        %v2184 = vunpack.c.l.b16 %v2167
        %v2185 = vunpack.c.l.b16 %v2168
        %v2186 = vunpack.c.l.b16 %v2169
        %v2187 = vunpack.c.l.b16 %v2170
        %v2188 = vunpack.c.l.b16 %v2171
        %v2189 = vunpack.c.l.b16 %v2172
        %v2190 = vpack.c.b16 %v2183, %v2182
        %v2191 = vpack.c.b16 %v2185, %v2184
        %v2192 = vpack.c.b16 %v2187, %v2186
        %v2193 = vpack.c.b16 %v2189, %v2188
        %v2199 = vsel %vm1193, %v2164, 0
        %2201 = vmatprep.subr.bf16.mxu0 0
        %2202 = vmatpush1.bf16.msra.mxu0 0
        %2203 = vmatprep.subr.bf16.mxu0 0
        %2204 = vmatpush1.bf16.msra.mxu0 0
        %2205 = vmatprep.subr.bf16.mxu0 0
        %2206 = vmatpush1.bf16.msra.mxu0 0
        %2207 = vmatprep.subr.bf16.mxu0 0
        %2208 = vmatpush1.bf16.msra.mxu0 0
        %2209 = vmatprep.subr.bf16.mxu0 0
        %2210 = vmatpush1.bf16.msra.mxu0 %v2193
        %2211 = vmatprep.subr.bf16.mxu0 0
        %2212 = vmatpush1.bf16.msra.mxu0 %v2192
        %2213 = vmatprep.subr.bf16.mxu0 0
        %2214 = vmatpush1.bf16.msra.mxu0 %v2191
        %2215 = vmatprep.subr.bf16.mxu0 0
        %2216 = vmatpush1.bf16.msra.mxu0 %v2190
        %2217 = vmatprep.subr.bf16.mxu0 0
        %2218 = vmatpush2.bf16.msra.mxu0 0
        %2219 = vmatprep.subr.bf16.mxu0 0
        %2220 = vmatpush2.bf16.msra.mxu0 0
        %2221 = vmatprep.subr.bf16.mxu0 0
        %2222 = vmatpush2.bf16.msra.mxu0 0
        %2223 = vmatprep.subr.bf16.mxu0 0
        %2224 = vmatpush2.bf16.msra.mxu0 0
        %2225 = vmatprep.subr.bf16.mxu0 0
        %2226 = vmatpush2.bf16.msra.mxu0 0
        %2227 = vmatprep.subr.bf16.mxu0 0
        %2228 = vmatpush2.bf16.msra.mxu0 0
        %2229 = vmatprep.subr.bf16.mxu0 0
        %2230 = vmatpush2.bf16.msra.mxu0 0
        %2231 = vmatprep.subr.bf16.mxu0 0
        %2232 = vmatpush2.bf16.msra.mxu0 0
        %2233 = vmatprep.mubr.bf16.mxu0 0
        %2234 = vmatmul.mubr.bf16.gmra.mxu0 %v2199
        %v2235 = vpop.f32.mrf.mxu0
        %v2236 = vadd.f32 %v2173, %v2235
        %v2237 = vpop.f32.mrf.mxu0
        %v2238 = vpop.f32.mrf.mxu0
        %v2239 = vpop.f32.mrf.mxu0
        %2240 = vdwg.mxu0
        %2241 = vst.msk [vmem:[%s827] sm:$0xff] %vm1763, %v2236
      $region104: #{forward.2} parent=95 // pred_fallthru
        _
      %p2242 = scmp.lt.s32.totalorder %s34, 1
      %s2243 = scalar_select %p2242, %s34, 1
      %s2244 = smul.addr %s2243, 8
      %s2245 = scalar_lea.vmem %s19, %s2244
      // Predicated region
      $region105: #{forward.2} parent=95 // pred_check
        %p2246 = pneg %p529
      $region106: #{forward.2} parent=95 // pred_check_branch
        %2248 = sbr.rel (%p2246) target = $region108
      $region107: #{forward.2} parent=95 // pred_region
        _
      $region108: #{forward.2} parent=95 // pred_fallthru
        _
    $region96: #{forward.2} parent=5 // pred_fallthru
      _
    %p2249 = scmp.le.s32.totalorder 2, %s25
    // Predicated region
    $region109: #{forward.2} parent=5 // pred_check
      %p2250 = pneg %p2249
    $region110: #{forward.2} parent=5 // pred_check_branch
      %2252 = sbr.rel (%p2250) target = $region112
    $region111: #{forward.2} parent=5 // pred_region
      %s2253 = ssub.s32 %s25, 2
      // Predicated region
      $region113: #{forward.2} parent=111 // pred_check
        %p2254 = pneg %p535
      $region114: #{forward.2} parent=111 // pred_check_branch
        %2256 = sbr.rel (%p2254) target = $region116
      $region115: #{forward.2} parent=111 // pred_region
        %p2257 = scmp.lt.s32.totalorder %s36, 1
        %s2258 = scalar_select %p2257, %s36, 1
        %s2259 = smul.addr %s2258, 8
        %s2260 = scalar_lea.vmem %s19, %s2259
      $region116: #{forward.2} parent=111 // pred_fallthru
        _
    $region112: #{forward.2} parent=5 // pred_fallthru
      _
  $region6: #{forward.2} parent=0 // loop_footer
    %s29 = sadd.s32 1, %s25
  $region7: #{forward.2} parent=0 // loop_footer_branch
    %24 = sbr.rel target = $region3
  $region8: #{forward.2} parent=0 // loop_exit
    _

</llo_original>
